<compile_context>
chip_gen: v6e
topology: v6e:2x2x1
jax: 0.10.0
libtpu: 0.0.40
codegen_flags: <defaults>
</compile_context>

<pallas_src>
import jax
import jax.numpy as jnp
from jax.experimental import pallas as pl
from jax.experimental.pallas import tpu as pltpu

# Small, fixed problem size (consistent with (B, 1, *S) -> (B, K, *S)).
B, H, W = 2, 16, 16
C_IN, C_HID, K_CLS = 1, 32, 4
HW = H * W
NPIX = B * HW                   # batch folded into the lane-dense pixel axis (512)
W_SHIFT = W.bit_length() - 1    # log2(W); H and W must be powers of two
assert (1 << W_SHIFT) == W and (H & (H - 1)) == 0

# Tap order matches HWIO weights reshaped to (9, Cin, Cout): t = ky*3 + kx, offset = (ky-1, kx-1).
TAP_OFFSETS = tuple((oy, ox) for oy in (-1, 0, 1) for ox in (-1, 0, 1))


# ---------------------------------------------------------------------------
# Fused Pallas kernel: whole forward pass, single invocation, zero scratch
# ---------------------------------------------------------------------------
def _segnet_kernel(x_ref, w1_ref, b1_ref, w2_ref, b2_ref, w3_ref, b3_ref, o_ref):
    """Fused segnet forward.

    x_ref : (1, NPIX)             flattened image, pixels lane-dense
    w1_ref: (C_HID, 9)            conv1 weights, one column per tap (f32)
    b1_ref: (C_HID, 1)
    w2_ref: (9, C_HID, C_HID)     conv2 weights per tap, (Cout, Cin) layout (bf16)
    b2_ref: (C_HID, 1)
    w3_ref: (K_CLS, C_HID)        1x1 projection, transposed (bf16)
    b3_ref: (K_CLS, 1)
    o_ref : (B, K_CLS, HW)        lane-dense per-batch class probabilities
    """
    f32 = jnp.float32
    bf16 = jnp.bfloat16

    # Per-tap boolean validity masks from the flattened pixel index q = b*HW + y*W + x.
    lane = jax.lax.broadcasted_iota(jnp.int32, (1, NPIX), 1)
    xx = lane & (W - 1)
    yy = (lane >> W_SHIFT) & (H - 1)
    xm = {-1: xx >= 1, 0: None, 1: xx < (W - 1)}
    ym = {-1: yy >= 1, 0: None, 1: yy < (H - 1)}

    def tap_mask(oy, ox):
        mx, my = xm[ox], ym[oy]
        if mx is None:
            return my
        if my is None:
            return mx
        return mx & my

    masks = [tap_mask(oy, ox) for (oy, ox) in TAP_OFFSETS]   # None for the center tap

    def shifted(arr, s):
        # result[:, q] = arr[:, (q + s) mod NPIX].  The wrapped lanes are exactly the lanes the
        # boolean masks kill (image-row / batch boundaries), so the wrap is harmless.
        return arr if s == 0 else pltpu.roll(arr, (-s) % NPIX, 1)

    # ---- layer 1: 3x3 conv (1 -> C_HID) + bias + ReLU ------------------------------
    # C_in == 1 -> pure VPU broadcast-FMA per tap (no contraction-depth-1 MXU matmuls).
    x = x_ref[...]                                            # (1, NPIX) f32
    acc1 = jnp.zeros((C_HID, NPIX), f32)
    for t, (oy, ox) in enumerate(TAP_OFFSETS):
        tap = shifted(x, oy * W + ox)                         # (1, NPIX)
        if masks[t] is not None:
            tap = jnp.where(masks[t], tap, 0.0)
        acc1 = acc1 + w1_ref[:, t:t + 1] * tap                # (C_HID,1)*(1,NPIX)
    h1 = jnp.maximum(acc1 + b1_ref[...], 0.0)                 # (C_HID, NPIX) f32

    # ---- layer 2: 3x3 conv (C_HID -> C_HID) + bias + ReLU --------------------------
    # 9 accumulated bf16 MXU matmuls on register-resident rolled taps (no VMEM scratch).
    h2 = jnp.zeros((C_HID, NPIX), f32)
    for t, (oy, ox) in enumerate(TAP_OFFSETS):
        tap = shifted(h1, oy * W + ox)                        # (C_HID, NPIX) f32
        if masks[t] is not None:
            tap = jnp.where(masks[t], tap, 0.0)
        h2 = h2 + jnp.dot(w2_ref[t], tap.astype(bf16),
                          preferred_element_type=f32)         # (C_HID, NPIX) f32 acc
    h2 = jnp.maximum(h2 + b2_ref[...], 0.0)

    # ---- 1x1 projection to K classes + softmax over classes (sublane axis) --------
    logits = jnp.dot(w3_ref[...], h2.astype(bf16),
                     preferred_element_type=f32) + b3_ref[...]
    m = jnp.max(logits, axis=0, keepdims=True)                # (1, NPIX)
    e = jnp.exp(logits - m)
    denom = jnp.sum(e, axis=0, keepdims=True)
    probs = e * pl.reciprocal(denom, approx=True)             # (K_CLS, NPIX)

    # ---- lane-dense (B, K, HW) output: 128-aligned lane slices --------------------
    for b in range(B):
        o_ref[b] = probs[:, b * HW:(b + 1) * HW]


# ---------------------------------------------------------------------------
# SynthSeg forward (== segnet(x))
# ---------------------------------------------------------------------------
def init_params(key):
    k1, k2, k3 = jax.random.split(key, 3)
    s1 = 1.0 / (9 * C_IN) ** 0.5
    s2 = 1.0 / (9 * C_HID) ** 0.5
    s3 = 1.0 / C_HID ** 0.5
    return {
        "w1": jax.random.normal(k1, (3, 3, C_IN, C_HID), jnp.float32) * s1,
        "b1": jnp.zeros((C_HID,), jnp.float32),
        "w2": jax.random.normal(k2, (3, 3, C_HID, C_HID), jnp.float32) * s2,
        "b2": jnp.zeros((C_HID,), jnp.float32),
        "w3": jax.random.normal(k3, (C_HID, K_CLS), jnp.float32) * s3,
        "b3": jnp.zeros((K_CLS,), jnp.float32),
    }


def pack_params(params):
    """One-time repack of the segnet weights into kernel layouts (hoisted out of the jit body)."""
    return {
        "w1": params["w1"].reshape(9, C_HID).T,                              # (C_HID, 9) f32
        "b1": params["b1"].reshape(C_HID, 1),
        "w2": jnp.transpose(params["w2"].reshape(9, C_HID, C_HID),
                            (0, 2, 1)).astype(jnp.bfloat16),                 # (9, Cout, Cin) bf16
        "b2": params["b2"].reshape(C_HID, 1),
        "w3": params["w3"].T.astype(jnp.bfloat16),                           # (K, C_HID) bf16
        "b3": params["b3"].reshape(K_CLS, 1),
    }


_VMEM_SPEC = pl.BlockSpec(memory_space=pltpu.MemorySpace.VMEM)


@jax.jit
def synthseg_forward(packed, x_nchw):
    """SynthSeg.forward: (B, 1, H, W) -> (B, K, H, W) softmax probabilities."""
    # Flatten (b, y, x) into a single lane-dense pixel axis; no pad, the kernel rolls + masks.
    x_flat = x_nchw.astype(jnp.float32).reshape(1, NPIX)

    probs = pl.pallas_call(
        _segnet_kernel,
        out_shape=jax.ShapeDtypeStruct((B, K_CLS, HW), jnp.float32),
        in_specs=[_VMEM_SPEC] * 7,
        out_specs=_VMEM_SPEC,
    )(x_flat, packed["w1"], packed["b1"], packed["w2"], packed["b2"],
      packed["w3"], packed["b3"])

    return probs.reshape(B, K_CLS, H, W)   # pure reshape, no transpose


def reference_forward(params, x_nchw):
    """Pure-JAX f32 reference of the same segnet (for correctness checking)."""
    dn = ("NCHW", "HWIO", "NCHW")
    h = jax.lax.conv_general_dilated(
        x_nchw, params["w1"], (1, 1), ((1, 1), (1, 1)), dimension_numbers=dn)
    h = jax.nn.relu(h + params["b1"].reshape(1, C_HID, 1, 1))
    h = jax.lax.conv_general_dilated(
        h, params["w2"], (1, 1), ((1, 1), (1, 1)), dimension_numbers=dn)
    h = jax.nn.relu(h + params["b2"].reshape(1, C_HID, 1, 1))
    logits = jnp.einsum("bchw,ck->bkhw", h, params["w3"])
    logits = logits + params["b3"].reshape(1, K_CLS, 1, 1)
    return jax.nn.softmax(logits, axis=1)


if __name__ == "__main__":
    key = jax.random.PRNGKey(0)
    kx, kp = jax.random.split(key)
    x = jax.random.normal(kx, (B, C_IN, H, W), jnp.float32)
    params = init_params(kp)
    packed = pack_params(params)

    y = jax.block_until_ready(synthseg_forward(packed, x))
    assert y.shape == (B, K_CLS, H, W), y.shape

    y_ref = jax.block_until_ready(reference_forward(params, x))
    # Tolerance covers bf16 MXU operands (f32 accumulation) in conv2 / the 1x1 projection and the
    # approximate (EUP) reciprocal in the softmax denominator (probs sum to 1 only to ~1e-3).
    err = float(jnp.max(jnp.abs(y - y_ref)))
    assert err < 2e-2, err

    print("KERNEL_OK")
</pallas_src>

<mosaic_0001>
module attributes {stable_mosaic.version = 11 : i64} {
  func.func @_segnet_kernel(%arg0: memref<1x512xf32, #tpu.memory_space<vmem>>, %arg1: memref<32x9xf32, #tpu.memory_space<vmem>>, %arg2: memref<32x1xf32, #tpu.memory_space<vmem>>, %arg3: memref<9x32x32xbf16, #tpu.memory_space<vmem>>, %arg4: memref<32x1xf32, #tpu.memory_space<vmem>>, %arg5: memref<4x32xbf16, #tpu.memory_space<vmem>>, %arg6: memref<4x1xf32, #tpu.memory_space<vmem>>, %arg7: memref<2x4x256xf32, #tpu.memory_space<vmem>>) attributes {dimension_semantics = [], scalar_prefetch = 0 : i64, scratch_operands = 0 : i64, tpu.core_type = #tpu.core_type<tc>} {
    %0 = tpu.iota {dimensions = array<i32: 1>} : vector<1x512xi32>
    %c15_i32 = arith.constant 15 : i32
    %1 = vector.broadcast %c15_i32 : i32 to vector<1x512xi32>
    %2 = arith.andi %0, %1 : vector<1x512xi32>
    %c4_i32 = arith.constant 4 : i32
    %3 = vector.broadcast %c4_i32 : i32 to vector<1x512xi32>
    %4 = arith.shrsi %0, %3 : vector<1x512xi32>
    %c15_i32_0 = arith.constant 15 : i32
    %5 = vector.broadcast %c15_i32_0 : i32 to vector<1x512xi32>
    %6 = arith.andi %4, %5 : vector<1x512xi32>
    %c1_i32 = arith.constant 1 : i32
    %7 = vector.broadcast %c1_i32 : i32 to vector<1x512xi32>
    %8 = arith.cmpi sge, %2, %7 : vector<1x512xi32>
    %c15_i32_1 = arith.constant 15 : i32
    %9 = vector.broadcast %c15_i32_1 : i32 to vector<1x512xi32>
    %10 = arith.cmpi slt, %2, %9 : vector<1x512xi32>
    %c1_i32_2 = arith.constant 1 : i32
    %11 = vector.broadcast %c1_i32_2 : i32 to vector<1x512xi32>
    %12 = arith.cmpi sge, %6, %11 : vector<1x512xi32>
    %c15_i32_3 = arith.constant 15 : i32
    %13 = vector.broadcast %c15_i32_3 : i32 to vector<1x512xi32>
    %14 = arith.cmpi slt, %6, %13 : vector<1x512xi32>
    %15 = arith.andi %8, %12 : vector<1x512xi1>
    %16 = arith.andi %10, %12 : vector<1x512xi1>
    %17 = arith.andi %8, %14 : vector<1x512xi1>
    %18 = arith.andi %10, %14 : vector<1x512xi1>
    %c0 = arith.constant 0 : index
    %c0_4 = arith.constant 0 : index
    %19 = vector.load %arg0[%c0, %c0_4] : memref<1x512xf32, #tpu.memory_space<vmem>>, vector<1x512xf32>
    %cst = arith.constant 0.000000e+00 : f32
    %20 = vector.broadcast %cst : f32 to vector<32x512xf32>
    %c17_i32 = arith.constant 17 : i32
    %21 = tpu.dynamic_rotate %19 by %c17_i32 dim 1 : vector<1x512xf32>, i32 -> vector<1x512xf32>
    %cst_5 = arith.constant 0.000000e+00 : f32
    %22 = vector.broadcast %cst_5 : f32 to vector<1x512xf32>
    %23 = arith.select %15, %21, %22 : vector<1x512xi1>, vector<1x512xf32>
    %c0_6 = arith.constant 0 : index
    %c0_7 = arith.constant 0 : index
    %24 = vector.load %arg1[%c0_6, %c0_7] : memref<32x9xf32, #tpu.memory_space<vmem>>, vector<32x1xf32>
    %25 = vector.broadcast %24 : vector<32x1xf32> to vector<32x512xf32>
    %26 = vector.broadcast %23 : vector<1x512xf32> to vector<32x512xf32>
    %27 = arith.mulf %25, %26 : vector<32x512xf32>
    %28 = arith.addf %20, %27 : vector<32x512xf32>
    %c16_i32 = arith.constant 16 : i32
    %29 = tpu.dynamic_rotate %19 by %c16_i32 dim 1 : vector<1x512xf32>, i32 -> vector<1x512xf32>
    %cst_8 = arith.constant 0.000000e+00 : f32
    %30 = vector.broadcast %cst_8 : f32 to vector<1x512xf32>
    %31 = arith.select %12, %29, %30 : vector<1x512xi1>, vector<1x512xf32>
    %c0_9 = arith.constant 0 : index
    %c1 = arith.constant 1 : index
    %32 = vector.load %arg1[%c0_9, %c1] : memref<32x9xf32, #tpu.memory_space<vmem>>, vector<32x1xf32>
    %33 = vector.broadcast %32 : vector<32x1xf32> to vector<32x512xf32>
    %34 = vector.broadcast %31 : vector<1x512xf32> to vector<32x512xf32>
    %35 = arith.mulf %33, %34 : vector<32x512xf32>
    %36 = arith.addf %28, %35 : vector<32x512xf32>
    %c15_i32_10 = arith.constant 15 : i32
    %37 = tpu.dynamic_rotate %19 by %c15_i32_10 dim 1 : vector<1x512xf32>, i32 -> vector<1x512xf32>
    %cst_11 = arith.constant 0.000000e+00 : f32
    %38 = vector.broadcast %cst_11 : f32 to vector<1x512xf32>
    %39 = arith.select %16, %37, %38 : vector<1x512xi1>, vector<1x512xf32>
    %c0_12 = arith.constant 0 : index
    %c2 = arith.constant 2 : index
    %40 = vector.load %arg1[%c0_12, %c2] : memref<32x9xf32, #tpu.memory_space<vmem>>, vector<32x1xf32>
    %41 = vector.broadcast %40 : vector<32x1xf32> to vector<32x512xf32>
    %42 = vector.broadcast %39 : vector<1x512xf32> to vector<32x512xf32>
    %43 = arith.mulf %41, %42 : vector<32x512xf32>
    %44 = arith.addf %36, %43 : vector<32x512xf32>
    %c1_i32_13 = arith.constant 1 : i32
    %45 = tpu.dynamic_rotate %19 by %c1_i32_13 dim 1 : vector<1x512xf32>, i32 -> vector<1x512xf32>
    %cst_14 = arith.constant 0.000000e+00 : f32
    %46 = vector.broadcast %cst_14 : f32 to vector<1x512xf32>
    %47 = arith.select %8, %45, %46 : vector<1x512xi1>, vector<1x512xf32>
    %c0_15 = arith.constant 0 : index
    %c3 = arith.constant 3 : index
    %48 = vector.load %arg1[%c0_15, %c3] : memref<32x9xf32, #tpu.memory_space<vmem>>, vector<32x1xf32>
    %49 = vector.broadcast %48 : vector<32x1xf32> to vector<32x512xf32>
    %50 = vector.broadcast %47 : vector<1x512xf32> to vector<32x512xf32>
    %51 = arith.mulf %49, %50 : vector<32x512xf32>
    %52 = arith.addf %44, %51 : vector<32x512xf32>
    %c0_16 = arith.constant 0 : index
    %c4 = arith.constant 4 : index
    %53 = vector.load %arg1[%c0_16, %c4] : memref<32x9xf32, #tpu.memory_space<vmem>>, vector<32x1xf32>
    %54 = vector.broadcast %53 : vector<32x1xf32> to vector<32x512xf32>
    %55 = vector.broadcast %19 : vector<1x512xf32> to vector<32x512xf32>
    %56 = arith.mulf %54, %55 : vector<32x512xf32>
    %57 = arith.addf %52, %56 : vector<32x512xf32>
    %c511_i32 = arith.constant 511 : i32
    %58 = tpu.dynamic_rotate %19 by %c511_i32 dim 1 : vector<1x512xf32>, i32 -> vector<1x512xf32>
    %cst_17 = arith.constant 0.000000e+00 : f32
    %59 = vector.broadcast %cst_17 : f32 to vector<1x512xf32>
    %60 = arith.select %10, %58, %59 : vector<1x512xi1>, vector<1x512xf32>
    %c0_18 = arith.constant 0 : index
    %c5 = arith.constant 5 : index
    %61 = vector.load %arg1[%c0_18, %c5] : memref<32x9xf32, #tpu.memory_space<vmem>>, vector<32x1xf32>
    %62 = vector.broadcast %61 : vector<32x1xf32> to vector<32x512xf32>
    %63 = vector.broadcast %60 : vector<1x512xf32> to vector<32x512xf32>
    %64 = arith.mulf %62, %63 : vector<32x512xf32>
    %65 = arith.addf %57, %64 : vector<32x512xf32>
    %c497_i32 = arith.constant 497 : i32
    %66 = tpu.dynamic_rotate %19 by %c497_i32 dim 1 : vector<1x512xf32>, i32 -> vector<1x512xf32>
    %cst_19 = arith.constant 0.000000e+00 : f32
    %67 = vector.broadcast %cst_19 : f32 to vector<1x512xf32>
    %68 = arith.select %17, %66, %67 : vector<1x512xi1>, vector<1x512xf32>
    %c0_20 = arith.constant 0 : index
    %c6 = arith.constant 6 : index
    %69 = vector.load %arg1[%c0_20, %c6] : memref<32x9xf32, #tpu.memory_space<vmem>>, vector<32x1xf32>
    %70 = vector.broadcast %69 : vector<32x1xf32> to vector<32x512xf32>
    %71 = vector.broadcast %68 : vector<1x512xf32> to vector<32x512xf32>
    %72 = arith.mulf %70, %71 : vector<32x512xf32>
    %73 = arith.addf %65, %72 : vector<32x512xf32>
    %c496_i32 = arith.constant 496 : i32
    %74 = tpu.dynamic_rotate %19 by %c496_i32 dim 1 : vector<1x512xf32>, i32 -> vector<1x512xf32>
    %cst_21 = arith.constant 0.000000e+00 : f32
    %75 = vector.broadcast %cst_21 : f32 to vector<1x512xf32>
    %76 = arith.select %14, %74, %75 : vector<1x512xi1>, vector<1x512xf32>
    %c0_22 = arith.constant 0 : index
    %c7 = arith.constant 7 : index
    %77 = vector.load %arg1[%c0_22, %c7] : memref<32x9xf32, #tpu.memory_space<vmem>>, vector<32x1xf32>
    %78 = vector.broadcast %77 : vector<32x1xf32> to vector<32x512xf32>
    %79 = vector.broadcast %76 : vector<1x512xf32> to vector<32x512xf32>
    %80 = arith.mulf %78, %79 : vector<32x512xf32>
    %81 = arith.addf %73, %80 : vector<32x512xf32>
    %c495_i32 = arith.constant 495 : i32
    %82 = tpu.dynamic_rotate %19 by %c495_i32 dim 1 : vector<1x512xf32>, i32 -> vector<1x512xf32>
    %cst_23 = arith.constant 0.000000e+00 : f32
    %83 = vector.broadcast %cst_23 : f32 to vector<1x512xf32>
    %84 = arith.select %18, %82, %83 : vector<1x512xi1>, vector<1x512xf32>
    %c0_24 = arith.constant 0 : index
    %c8 = arith.constant 8 : index
    %85 = vector.load %arg1[%c0_24, %c8] : memref<32x9xf32, #tpu.memory_space<vmem>>, vector<32x1xf32>
    %86 = vector.broadcast %85 : vector<32x1xf32> to vector<32x512xf32>
    %87 = vector.broadcast %84 : vector<1x512xf32> to vector<32x512xf32>
    %88 = arith.mulf %86, %87 : vector<32x512xf32>
    %89 = arith.addf %81, %88 : vector<32x512xf32>
    %c0_25 = arith.constant 0 : index
    %c0_26 = arith.constant 0 : index
    %90 = vector.load %arg2[%c0_25, %c0_26] : memref<32x1xf32, #tpu.memory_space<vmem>>, vector<32x1xf32>
    %91 = vector.broadcast %90 : vector<32x1xf32> to vector<32x512xf32>
    %92 = arith.addf %89, %91 : vector<32x512xf32>
    %cst_27 = arith.constant 0.000000e+00 : f32
    %93 = vector.broadcast %cst_27 : f32 to vector<32x512xf32>
    %94 = arith.maximumf %92, %93 : vector<32x512xf32>
    %cst_28 = arith.constant 0.000000e+00 : f32
    %95 = vector.broadcast %cst_28 : f32 to vector<32x512xf32>
    %c17_i32_29 = arith.constant 17 : i32
    %96 = tpu.dynamic_rotate %94 by %c17_i32_29 dim 1 : vector<32x512xf32>, i32 -> vector<32x512xf32>
    %cst_30 = arith.constant 0.000000e+00 : f32
    %97 = vector.shape_cast %15 : vector<1x512xi1> to vector<1x512xi1>
    %98 = vector.broadcast %97 : vector<1x512xi1> to vector<32x512xi1>
    %99 = vector.broadcast %cst_30 : f32 to vector<32x512xf32>
    %100 = arith.select %98, %96, %99 : vector<32x512xi1>, vector<32x512xf32>
    %c0_31 = arith.constant 0 : index
    %c0_32 = arith.constant 0 : index
    %c0_33 = arith.constant 0 : index
    %101 = vector.load %arg3[%c0_31, %c0_32, %c0_33] : memref<9x32x32xbf16, #tpu.memory_space<vmem>>, vector<1x32x32xbf16>
    %102 = vector.shape_cast %101 : vector<1x32x32xbf16> to vector<32x32xbf16>
    %103 = arith.truncf %100 : vector<32x512xf32> to vector<32x512xbf16>
    %cst_34 = arith.constant dense<0.000000e+00> : vector<32x512xf32>
    %104 = tpu.matmul %102, %103, %cst_34 {dimension_numbers = #tpu.dot_dimension_numbers<[1], [0], [0], [1], [0, 0, 1, 1], [], []>} : vector<32x32xbf16>, vector<32x512xbf16>, vector<32x512xf32> -> vector<32x512xf32>
    %105 = arith.addf %95, %104 : vector<32x512xf32>
    %c16_i32_35 = arith.constant 16 : i32
    %106 = tpu.dynamic_rotate %94 by %c16_i32_35 dim 1 : vector<32x512xf32>, i32 -> vector<32x512xf32>
    %cst_36 = arith.constant 0.000000e+00 : f32
    %107 = vector.shape_cast %12 : vector<1x512xi1> to vector<1x512xi1>
    %108 = vector.broadcast %107 : vector<1x512xi1> to vector<32x512xi1>
    %109 = vector.broadcast %cst_36 : f32 to vector<32x512xf32>
    %110 = arith.select %108, %106, %109 : vector<32x512xi1>, vector<32x512xf32>
    %c1_37 = arith.constant 1 : index
    %c0_38 = arith.constant 0 : index
    %c0_39 = arith.constant 0 : index
    %111 = vector.load %arg3[%c1_37, %c0_38, %c0_39] : memref<9x32x32xbf16, #tpu.memory_space<vmem>>, vector<1x32x32xbf16>
    %112 = vector.shape_cast %111 : vector<1x32x32xbf16> to vector<32x32xbf16>
    %113 = arith.truncf %110 : vector<32x512xf32> to vector<32x512xbf16>
    %cst_40 = arith.constant dense<0.000000e+00> : vector<32x512xf32>
    %114 = tpu.matmul %112, %113, %cst_40 {dimension_numbers = #tpu.dot_dimension_numbers<[1], [0], [0], [1], [0, 0, 1, 1], [], []>} : vector<32x32xbf16>, vector<32x512xbf16>, vector<32x512xf32> -> vector<32x512xf32>
    %115 = arith.addf %105, %114 : vector<32x512xf32>
    %c15_i32_41 = arith.constant 15 : i32
    %116 = tpu.dynamic_rotate %94 by %c15_i32_41 dim 1 : vector<32x512xf32>, i32 -> vector<32x512xf32>
    %cst_42 = arith.constant 0.000000e+00 : f32
    %117 = vector.shape_cast %16 : vector<1x512xi1> to vector<1x512xi1>
    %118 = vector.broadcast %117 : vector<1x512xi1> to vector<32x512xi1>
    %119 = vector.broadcast %cst_42 : f32 to vector<32x512xf32>
    %120 = arith.select %118, %116, %119 : vector<32x512xi1>, vector<32x512xf32>
    %c2_43 = arith.constant 2 : index
    %c0_44 = arith.constant 0 : index
    %c0_45 = arith.constant 0 : index
    %121 = vector.load %arg3[%c2_43, %c0_44, %c0_45] : memref<9x32x32xbf16, #tpu.memory_space<vmem>>, vector<1x32x32xbf16>
    %122 = vector.shape_cast %121 : vector<1x32x32xbf16> to vector<32x32xbf16>
    %123 = arith.truncf %120 : vector<32x512xf32> to vector<32x512xbf16>
    %cst_46 = arith.constant dense<0.000000e+00> : vector<32x512xf32>
    %124 = tpu.matmul %122, %123, %cst_46 {dimension_numbers = #tpu.dot_dimension_numbers<[1], [0], [0], [1], [0, 0, 1, 1], [], []>} : vector<32x32xbf16>, vector<32x512xbf16>, vector<32x512xf32> -> vector<32x512xf32>
    %125 = arith.addf %115, %124 : vector<32x512xf32>
    %c1_i32_47 = arith.constant 1 : i32
    %126 = tpu.dynamic_rotate %94 by %c1_i32_47 dim 1 : vector<32x512xf32>, i32 -> vector<32x512xf32>
    %cst_48 = arith.constant 0.000000e+00 : f32
    %127 = vector.shape_cast %8 : vector<1x512xi1> to vector<1x512xi1>
    %128 = vector.broadcast %127 : vector<1x512xi1> to vector<32x512xi1>
    %129 = vector.broadcast %cst_48 : f32 to vector<32x512xf32>
    %130 = arith.select %128, %126, %129 : vector<32x512xi1>, vector<32x512xf32>
    %c3_49 = arith.constant 3 : index
    %c0_50 = arith.constant 0 : index
    %c0_51 = arith.constant 0 : index
    %131 = vector.load %arg3[%c3_49, %c0_50, %c0_51] : memref<9x32x32xbf16, #tpu.memory_space<vmem>>, vector<1x32x32xbf16>
    %132 = vector.shape_cast %131 : vector<1x32x32xbf16> to vector<32x32xbf16>
    %133 = arith.truncf %130 : vector<32x512xf32> to vector<32x512xbf16>
    %cst_52 = arith.constant dense<0.000000e+00> : vector<32x512xf32>
    %134 = tpu.matmul %132, %133, %cst_52 {dimension_numbers = #tpu.dot_dimension_numbers<[1], [0], [0], [1], [0, 0, 1, 1], [], []>} : vector<32x32xbf16>, vector<32x512xbf16>, vector<32x512xf32> -> vector<32x512xf32>
    %135 = arith.addf %125, %134 : vector<32x512xf32>
    %c4_53 = arith.constant 4 : index
    %c0_54 = arith.constant 0 : index
    %c0_55 = arith.constant 0 : index
    %136 = vector.load %arg3[%c4_53, %c0_54, %c0_55] : memref<9x32x32xbf16, #tpu.memory_space<vmem>>, vector<1x32x32xbf16>
    %137 = vector.shape_cast %136 : vector<1x32x32xbf16> to vector<32x32xbf16>
    %138 = arith.truncf %94 : vector<32x512xf32> to vector<32x512xbf16>
    %cst_56 = arith.constant dense<0.000000e+00> : vector<32x512xf32>
    %139 = tpu.matmul %137, %138, %cst_56 {dimension_numbers = #tpu.dot_dimension_numbers<[1], [0], [0], [1], [0, 0, 1, 1], [], []>} : vector<32x32xbf16>, vector<32x512xbf16>, vector<32x512xf32> -> vector<32x512xf32>
    %140 = arith.addf %135, %139 : vector<32x512xf32>
    %c511_i32_57 = arith.constant 511 : i32
    %141 = tpu.dynamic_rotate %94 by %c511_i32_57 dim 1 : vector<32x512xf32>, i32 -> vector<32x512xf32>
    %cst_58 = arith.constant 0.000000e+00 : f32
    %142 = vector.shape_cast %10 : vector<1x512xi1> to vector<1x512xi1>
    %143 = vector.broadcast %142 : vector<1x512xi1> to vector<32x512xi1>
    %144 = vector.broadcast %cst_58 : f32 to vector<32x512xf32>
    %145 = arith.select %143, %141, %144 : vector<32x512xi1>, vector<32x512xf32>
    %c5_59 = arith.constant 5 : index
    %c0_60 = arith.constant 0 : index
    %c0_61 = arith.constant 0 : index
    %146 = vector.load %arg3[%c5_59, %c0_60, %c0_61] : memref<9x32x32xbf16, #tpu.memory_space<vmem>>, vector<1x32x32xbf16>
    %147 = vector.shape_cast %146 : vector<1x32x32xbf16> to vector<32x32xbf16>
    %148 = arith.truncf %145 : vector<32x512xf32> to vector<32x512xbf16>
    %cst_62 = arith.constant dense<0.000000e+00> : vector<32x512xf32>
    %149 = tpu.matmul %147, %148, %cst_62 {dimension_numbers = #tpu.dot_dimension_numbers<[1], [0], [0], [1], [0, 0, 1, 1], [], []>} : vector<32x32xbf16>, vector<32x512xbf16>, vector<32x512xf32> -> vector<32x512xf32>
    %150 = arith.addf %140, %149 : vector<32x512xf32>
    %c497_i32_63 = arith.constant 497 : i32
    %151 = tpu.dynamic_rotate %94 by %c497_i32_63 dim 1 : vector<32x512xf32>, i32 -> vector<32x512xf32>
    %cst_64 = arith.constant 0.000000e+00 : f32
    %152 = vector.shape_cast %17 : vector<1x512xi1> to vector<1x512xi1>
    %153 = vector.broadcast %152 : vector<1x512xi1> to vector<32x512xi1>
    %154 = vector.broadcast %cst_64 : f32 to vector<32x512xf32>
    %155 = arith.select %153, %151, %154 : vector<32x512xi1>, vector<32x512xf32>
    %c6_65 = arith.constant 6 : index
    %c0_66 = arith.constant 0 : index
    %c0_67 = arith.constant 0 : index
    %156 = vector.load %arg3[%c6_65, %c0_66, %c0_67] : memref<9x32x32xbf16, #tpu.memory_space<vmem>>, vector<1x32x32xbf16>
    %157 = vector.shape_cast %156 : vector<1x32x32xbf16> to vector<32x32xbf16>
    %158 = arith.truncf %155 : vector<32x512xf32> to vector<32x512xbf16>
    %cst_68 = arith.constant dense<0.000000e+00> : vector<32x512xf32>
    %159 = tpu.matmul %157, %158, %cst_68 {dimension_numbers = #tpu.dot_dimension_numbers<[1], [0], [0], [1], [0, 0, 1, 1], [], []>} : vector<32x32xbf16>, vector<32x512xbf16>, vector<32x512xf32> -> vector<32x512xf32>
    %160 = arith.addf %150, %159 : vector<32x512xf32>
    %c496_i32_69 = arith.constant 496 : i32
    %161 = tpu.dynamic_rotate %94 by %c496_i32_69 dim 1 : vector<32x512xf32>, i32 -> vector<32x512xf32>
    %cst_70 = arith.constant 0.000000e+00 : f32
    %162 = vector.shape_cast %14 : vector<1x512xi1> to vector<1x512xi1>
    %163 = vector.broadcast %162 : vector<1x512xi1> to vector<32x512xi1>
    %164 = vector.broadcast %cst_70 : f32 to vector<32x512xf32>
    %165 = arith.select %163, %161, %164 : vector<32x512xi1>, vector<32x512xf32>
    %c7_71 = arith.constant 7 : index
    %c0_72 = arith.constant 0 : index
    %c0_73 = arith.constant 0 : index
    %166 = vector.load %arg3[%c7_71, %c0_72, %c0_73] : memref<9x32x32xbf16, #tpu.memory_space<vmem>>, vector<1x32x32xbf16>
    %167 = vector.shape_cast %166 : vector<1x32x32xbf16> to vector<32x32xbf16>
    %168 = arith.truncf %165 : vector<32x512xf32> to vector<32x512xbf16>
    %cst_74 = arith.constant dense<0.000000e+00> : vector<32x512xf32>
    %169 = tpu.matmul %167, %168, %cst_74 {dimension_numbers = #tpu.dot_dimension_numbers<[1], [0], [0], [1], [0, 0, 1, 1], [], []>} : vector<32x32xbf16>, vector<32x512xbf16>, vector<32x512xf32> -> vector<32x512xf32>
    %170 = arith.addf %160, %169 : vector<32x512xf32>
    %c495_i32_75 = arith.constant 495 : i32
    %171 = tpu.dynamic_rotate %94 by %c495_i32_75 dim 1 : vector<32x512xf32>, i32 -> vector<32x512xf32>
    %cst_76 = arith.constant 0.000000e+00 : f32
    %172 = vector.shape_cast %18 : vector<1x512xi1> to vector<1x512xi1>
    %173 = vector.broadcast %172 : vector<1x512xi1> to vector<32x512xi1>
    %174 = vector.broadcast %cst_76 : f32 to vector<32x512xf32>
    %175 = arith.select %173, %171, %174 : vector<32x512xi1>, vector<32x512xf32>
    %c8_77 = arith.constant 8 : index
    %c0_78 = arith.constant 0 : index
    %c0_79 = arith.constant 0 : index
    %176 = vector.load %arg3[%c8_77, %c0_78, %c0_79] : memref<9x32x32xbf16, #tpu.memory_space<vmem>>, vector<1x32x32xbf16>
    %177 = vector.shape_cast %176 : vector<1x32x32xbf16> to vector<32x32xbf16>
    %178 = arith.truncf %175 : vector<32x512xf32> to vector<32x512xbf16>
    %cst_80 = arith.constant dense<0.000000e+00> : vector<32x512xf32>
    %179 = tpu.matmul %177, %178, %cst_80 {dimension_numbers = #tpu.dot_dimension_numbers<[1], [0], [0], [1], [0, 0, 1, 1], [], []>} : vector<32x32xbf16>, vector<32x512xbf16>, vector<32x512xf32> -> vector<32x512xf32>
    %180 = arith.addf %170, %179 : vector<32x512xf32>
    %c0_81 = arith.constant 0 : index
    %c0_82 = arith.constant 0 : index
    %181 = vector.load %arg4[%c0_81, %c0_82] : memref<32x1xf32, #tpu.memory_space<vmem>>, vector<32x1xf32>
    %182 = vector.broadcast %181 : vector<32x1xf32> to vector<32x512xf32>
    %183 = arith.addf %180, %182 : vector<32x512xf32>
    %cst_83 = arith.constant 0.000000e+00 : f32
    %184 = vector.broadcast %cst_83 : f32 to vector<32x512xf32>
    %185 = arith.maximumf %183, %184 : vector<32x512xf32>
    %c0_84 = arith.constant 0 : index
    %c0_85 = arith.constant 0 : index
    %186 = vector.load %arg5[%c0_84, %c0_85] : memref<4x32xbf16, #tpu.memory_space<vmem>>, vector<4x32xbf16>
    %187 = arith.truncf %185 : vector<32x512xf32> to vector<32x512xbf16>
    %cst_86 = arith.constant dense<0.000000e+00> : vector<4x512xf32>
    %188 = tpu.matmul %186, %187, %cst_86 {dimension_numbers = #tpu.dot_dimension_numbers<[1], [0], [0], [1], [0, 0, 1, 1], [], []>} : vector<4x32xbf16>, vector<32x512xbf16>, vector<4x512xf32> -> vector<4x512xf32>
    %c0_87 = arith.constant 0 : index
    %c0_88 = arith.constant 0 : index
    %189 = vector.load %arg6[%c0_87, %c0_88] : memref<4x1xf32, #tpu.memory_space<vmem>>, vector<4x1xf32>
    %190 = vector.broadcast %189 : vector<4x1xf32> to vector<4x512xf32>
    %191 = arith.addf %188, %190 : vector<4x512xf32>
    %cst_89 = arith.constant dense<0xFF800000> : vector<512xf32>
    %192 = vector.multi_reduction <maximumf>, %191, %cst_89 [0] : vector<4x512xf32> to vector<512xf32>
    %193 = vector.shape_cast %192 : vector<512xf32> to vector<1x512xf32>
    %194 = vector.broadcast %193 : vector<1x512xf32> to vector<4x512xf32>
    %195 = arith.subf %191, %194 : vector<4x512xf32>
    %196 = math.exp %195 : vector<4x512xf32>
    %cst_90 = arith.constant dense<0.000000e+00> : vector<512xf32>
    %197 = vector.multi_reduction <add>, %196, %cst_90 [0] : vector<4x512xf32> to vector<512xf32>
    %198 = vector.shape_cast %197 : vector<512xf32> to vector<1x512xf32>
    %199 = tpu.reciprocal %198 {approx = true} : vector<1x512xf32> -> vector<1x512xf32>
    %200 = vector.broadcast %199 : vector<1x512xf32> to vector<4x512xf32>
    %201 = arith.mulf %196, %200 : vector<4x512xf32>
    %202 = vector.extract_strided_slice %201 {offsets = [0, 0], sizes = [4, 256], strides = [1, 1]} : vector<4x512xf32> to vector<4x256xf32>
    %c0_91 = arith.constant 0 : index
    %c0_92 = arith.constant 0 : index
    %c0_93 = arith.constant 0 : index
    %203 = vector.load %arg7[%c0_91, %c0_92, %c0_93] : memref<2x4x256xf32, #tpu.memory_space<vmem>>, vector<1x4x256xf32>
    %204 = vector.shape_cast %203 : vector<1x4x256xf32> to vector<4x256xf32>
    %205 = vector.shape_cast %202 : vector<4x256xf32> to vector<1x4x256xf32>
    tpu.vector_store %arg7[%c0_91, %c0_92, %c0_93], %205 {strides = array<i32>} : memref<2x4x256xf32, #tpu.memory_space<vmem>>, vector<1x4x256xf32>,
    %206 = vector.extract_strided_slice %201 {offsets = [0, 256], sizes = [4, 256], strides = [1, 1]} : vector<4x512xf32> to vector<4x256xf32>
    %c1_94 = arith.constant 1 : index
    %c0_95 = arith.constant 0 : index
    %c0_96 = arith.constant 0 : index
    %207 = vector.load %arg7[%c1_94, %c0_95, %c0_96] : memref<2x4x256xf32, #tpu.memory_space<vmem>>, vector<1x4x256xf32>
    %208 = vector.shape_cast %207 : vector<1x4x256xf32> to vector<4x256xf32>
    %209 = vector.shape_cast %206 : vector<4x256xf32> to vector<1x4x256xf32>
    tpu.vector_store %arg7[%c1_94, %c0_95, %c0_96], %209 {strides = array<i32>} : memref<2x4x256xf32, #tpu.memory_space<vmem>>, vector<1x4x256xf32>,
    return
  }
}

</mosaic_0001>

<llo_original>
// kernel: synthseg_forward.1
$region0: #{synthseg_forward.1}
  #allocation0 [shape = 'u32[]', space=smem, size = 0x4, offset = 0x4, fixed_abs, tag = 'smem constant byte address 0x4 - core index']
  #allocation1 [shape = 'u32[144,128]{1,0:T(1,128)}', space=vmem, size = 0x12000, scoped, tag = 'internal scratch']
  %s0 = inlined_call_operand.vmem [shape: f32[1,512], index: 0, kind: input, shape index: {}]
  %s1 = inlined_call_operand.vmem [shape: f32[32,9], index: 1, kind: input, shape index: {}]
  %s2 = inlined_call_operand.vmem [shape: f32[32,1], index: 2, kind: input, shape index: {}]
  %s3 = inlined_call_operand.vmem [shape: bf16[9,32,32], index: 3, kind: input, shape index: {}]
  %s4 = inlined_call_operand.vmem [shape: f32[32,1], index: 4, kind: input, shape index: {}]
  %s5 = inlined_call_operand.vmem [shape: bf16[4,32], index: 5, kind: input, shape index: {}]
  %s6 = inlined_call_operand.vmem [shape: f32[4,1], index: 6, kind: input, shape index: {}]
  %s7 = inlined_call_operand.vmem [shape: f32[2,4,256], index: 7, kind: output, shape index: {}]
  %s8 = sld [smem:[#allocation0]]
  $region38: #{synthseg_forward.1} parent=0
    _
  %s10 = ssub.s32 1, %s8
  %s11 = scalar_select 0, %s10, %s8
  // Predicated region
  $region2: #{synthseg_forward.1} parent=0 // pred_check
    _
  $region3: #{synthseg_forward.1} parent=0 // pred_check_branch
    %13 = sbr.rel (0) target = $region5
  $region4: #{synthseg_forward.1} parent=0 // pred_region
    _
  $region5: #{synthseg_forward.1} parent=0 // pred_fallthru
    _
  // Predicated region
  $region6: #{synthseg_forward.1} parent=0 // pred_check
    _
  $region7: #{synthseg_forward.1} parent=0 // pred_check_branch
    %15 = sbr.rel (0) target = $region9
  $region8: #{synthseg_forward.1} parent=0 // pred_region
    _
  $region9: #{synthseg_forward.1} parent=0 // pred_fallthru
    _
  // Predicated region
  $region10: #{synthseg_forward.1} parent=0 // pred_check
    _
  $region11: #{synthseg_forward.1} parent=0 // pred_check_branch
    %17 = sbr.rel (0) target = $region13
  $region12: #{synthseg_forward.1} parent=0 // pred_region
    _
  $region13: #{synthseg_forward.1} parent=0 // pred_fallthru
    _
  // Predicated region
  $region14: #{synthseg_forward.1} parent=0 // pred_check
    _
  $region15: #{synthseg_forward.1} parent=0 // pred_check_branch
    %19 = sbr.rel (0) target = $region17
  $region16: #{synthseg_forward.1} parent=0 // pred_region
    _
  $region17: #{synthseg_forward.1} parent=0 // pred_fallthru
    _
  // Predicated region
  $region18: #{synthseg_forward.1} parent=0 // pred_check
    _
  $region19: #{synthseg_forward.1} parent=0 // pred_check_branch
    %21 = sbr.rel (0) target = $region21
  $region20: #{synthseg_forward.1} parent=0 // pred_region
    _
  $region21: #{synthseg_forward.1} parent=0 // pred_fallthru
    _
  // Predicated region
  $region22: #{synthseg_forward.1} parent=0 // pred_check
    _
  $region23: #{synthseg_forward.1} parent=0 // pred_check_branch
    %23 = sbr.rel (0) target = $region25
  $region24: #{synthseg_forward.1} parent=0 // pred_region
    _
  $region25: #{synthseg_forward.1} parent=0 // pred_fallthru
    _
  // Predicated region
  $region26: #{synthseg_forward.1} parent=0 // pred_check
    _
  $region27: #{synthseg_forward.1} parent=0 // pred_check_branch
    %25 = sbr.rel (0) target = $region29
  $region28: #{synthseg_forward.1} parent=0 // pred_region
    _
  $region29: #{synthseg_forward.1} parent=0 // pred_fallthru
    _
  %v27 = vlaneseq
  %v28 = vand.u32 %v27, 127
  %v29 = vadd.s32 %v28, 128
  %v30 = vadd.s32 %v28, 256
  %v31 = vadd.s32 %v28, 384
  %v32 = vand.u32 %v28, 15
  %v33 = vand.u32 %v29, 15
  %v34 = vand.u32 %v30, 15
  %v35 = vand.u32 %v31, 15
  %v36 = vshra.s32 %v28, 4
  %v37 = vshra.s32 %v29, 4
  %v38 = vshra.s32 %v30, 4
  %v39 = vshra.s32 %v31, 4
  %v40 = vand.u32 %v36, 15
  %v41 = vand.u32 %v37, 15
  %v42 = vand.u32 %v38, 15
  %v43 = vand.u32 %v39, 15
  %vm44 = vcmp.ge.s32.totalorder %v32, 1
  %vm45 = vcmp.ge.s32.totalorder %v33, 1
  %vm46 = vcmp.ge.s32.totalorder %v34, 1
  %vm47 = vcmp.ge.s32.totalorder %v35, 1
  %vm48 = vcmp.lt.s32.totalorder %v32, 15
  %vm49 = vcmp.lt.s32.totalorder %v33, 15
  %vm50 = vcmp.lt.s32.totalorder %v34, 15
  %vm51 = vcmp.lt.s32.totalorder %v35, 15
  %vm52 = vcmp.ge.s32.totalorder %v40, 1
  %vm53 = vcmp.ge.s32.totalorder %v41, 1
  %vm54 = vcmp.ge.s32.totalorder %v42, 1
  %vm55 = vcmp.ge.s32.totalorder %v43, 1
  %vm56 = vcmp.lt.s32.totalorder %v40, 15
  %vm57 = vcmp.lt.s32.totalorder %v41, 15
  %vm58 = vcmp.lt.s32.totalorder %v42, 15
  %vm59 = vcmp.lt.s32.totalorder %v43, 15
  %vm60 = vmand %vm44, %vm52
  %vm61 = vmand %vm45, %vm53
  %vm62 = vmand %vm46, %vm54
  %vm63 = vmand %vm47, %vm55
  %vm64 = vmand %vm48, %vm52
  %vm65 = vmand %vm49, %vm53
  %vm66 = vmand %vm50, %vm54
  %vm67 = vmand %vm51, %vm55
  %vm68 = vmand %vm44, %vm56
  %vm69 = vmand %vm45, %vm57
  %vm70 = vmand %vm46, %vm58
  %vm71 = vmand %vm47, %vm59
  %vm72 = vmand %vm48, %vm56
  %vm73 = vmand %vm49, %vm57
  %vm74 = vmand %vm50, %vm58
  %vm75 = vmand %vm51, %vm59
  %v76 = vld [vmem:[%s0] sm:$0xf]
  %v78 = vlaneseq
  %v79 = vshrl.u32 %v78, 7
  %v80 = vsub.s32 0, %v79
  %v81 = vrot.slane %v76, %v80
  %v82 = vlaneseq
  %v83 = vshrl.u32 %v82, 7
  %v84 = vsub.s32 1, %v83
  %v85 = vrot.slane %v76, %v84
  %v86 = vlaneseq
  %v87 = vshrl.u32 %v86, 7
  %v88 = vsub.s32 2, %v87
  %v89 = vrot.slane %v76, %v88
  %v90 = vlaneseq
  %v91 = vshrl.u32 %v90, 7
  %v92 = vsub.s32 3, %v91
  %v93 = vrot.slane %v76, %v92
  %98 = vrot.lane.b32.xlu0 %v81, 17
  %v99 = vpop.permute.xlu0 %98
  %100 = vrot.lane.b32.xlu0 %v85, 17
  %v101 = vpop.permute.xlu0 %100
  %102 = vrot.lane.b32.xlu0 %v89, 17
  %v103 = vpop.permute.xlu0 %102
  %104 = vrot.lane.b32.xlu0 %v93, 17
  %v105 = vpop.permute.xlu0 %104
  %vm106 = vcmp.lt.s32.totalorder %v28, 17
  %v107 = vsel %vm106, %v103, %v105
  %v108 = vsel %vm106, %v101, %v103
  %v109 = vsel %vm106, %v99, %v101
  %v110 = vsel %vm106, %v105, %v99
  %v111 = vsel %vm60, %v110, 0.0
  %v112 = vsel %vm61, %v109, 0.0
  %v113 = vsel %vm62, %v108, 0.0
  %v114 = vsel %vm63, %v107, 0.0
  %v115 = vld [vmem:[%s1] sm:$0xff]
  %v116 = vld [vmem:[%s1 + $0x8] sm:$0xff]
  %v117 = vld [vmem:[%s1 + $0x10] sm:$0xff]
  %v118 = vld [vmem:[%s1 + $0x18] sm:$0xff]
  %120 = vset.pattern.permute.xlu0 0
  %121 = vperm.xlu0 %120, %v115
  %v122 = vpop.permute.xlu0 %121
  %125 = vset.pattern.permute.xlu0 0
  %126 = vperm.xlu0 %125, %v116
  %v127 = vpop.permute.xlu0 %126
  %130 = vset.pattern.permute.xlu0 0
  %131 = vperm.xlu0 %130, %v117
  %v132 = vpop.permute.xlu0 %131
  %135 = vset.pattern.permute.xlu0 0
  %136 = vperm.xlu0 %135, %v118
  %v137 = vpop.permute.xlu0 %136
  %v139 = vlaneseq
  %v140 = vshrl.u32 %v139, 7
  %v141 = vsub.s32 0, %v140
  %v142 = vrot.slane %v111, %v141
  %v143 = vlaneseq
  %v144 = vshrl.u32 %v143, 7
  %v145 = vsub.s32 0, %v144
  %v146 = vrot.slane %v112, %v145
  %v147 = vlaneseq
  %v148 = vshrl.u32 %v147, 7
  %v149 = vsub.s32 0, %v148
  %v150 = vrot.slane %v113, %v149
  %v151 = vlaneseq
  %v152 = vshrl.u32 %v151, 7
  %v153 = vsub.s32 0, %v152
  %v154 = vrot.slane %v114, %v153
  %v155 = vmul.f32 %v122, %v142
  %v156 = vmul.f32 %v122, %v146
  %v157 = vmul.f32 %v122, %v150
  %v158 = vmul.f32 %v122, %v154
  %v159 = vmul.f32 %v127, %v142
  %v160 = vmul.f32 %v127, %v146
  %v161 = vmul.f32 %v127, %v150
  %v162 = vmul.f32 %v127, %v154
  %v163 = vmul.f32 %v132, %v142
  %v164 = vmul.f32 %v132, %v146
  %v165 = vmul.f32 %v132, %v150
  %v166 = vmul.f32 %v132, %v154
  %v167 = vmul.f32 %v137, %v142
  %v168 = vmul.f32 %v137, %v146
  %v169 = vmul.f32 %v137, %v150
  %v170 = vmul.f32 %v137, %v154
  %v171 = vadd.f32 %v155, 0.0
  %v172 = vadd.f32 %v156, 0.0
  %v173 = vadd.f32 %v157, 0.0
  %v174 = vadd.f32 %v158, 0.0
  %v175 = vadd.f32 %v159, 0.0
  %v176 = vadd.f32 %v160, 0.0
  %v177 = vadd.f32 %v161, 0.0
  %v178 = vadd.f32 %v162, 0.0
  %v179 = vadd.f32 %v163, 0.0
  %v180 = vadd.f32 %v164, 0.0
  %v181 = vadd.f32 %v165, 0.0
  %v182 = vadd.f32 %v166, 0.0
  %v183 = vadd.f32 %v167, 0.0
  %v184 = vadd.f32 %v168, 0.0
  %v185 = vadd.f32 %v169, 0.0
  %v186 = vadd.f32 %v170, 0.0
  %187 = vrot.lane.b32.xlu0 %v81, 16
  %v188 = vpop.permute.xlu0 %187
  %189 = vrot.lane.b32.xlu0 %v85, 16
  %v190 = vpop.permute.xlu0 %189
  %191 = vrot.lane.b32.xlu0 %v89, 16
  %v192 = vpop.permute.xlu0 %191
  %193 = vrot.lane.b32.xlu0 %v93, 16
  %v194 = vpop.permute.xlu0 %193
  %vm195 = vcmp.lt.s32.totalorder %v28, 16
  %v196 = vsel %vm195, %v192, %v194
  %v197 = vsel %vm195, %v190, %v192
  %v198 = vsel %vm195, %v188, %v190
  %v199 = vsel %vm195, %v194, %v188
  %v200 = vsel %vm52, %v199, 0.0
  %v201 = vsel %vm53, %v198, 0.0
  %v202 = vsel %vm54, %v197, 0.0
  %v203 = vsel %vm55, %v196, 0.0
  %204 = vset.pattern.permute.xlu0 1
  %205 = vperm.xlu0 %204, %v115
  %v206 = vpop.permute.xlu0 %205
  %208 = vset.pattern.permute.xlu0 1
  %209 = vperm.xlu0 %208, %v116
  %v210 = vpop.permute.xlu0 %209
  %212 = vset.pattern.permute.xlu0 1
  %213 = vperm.xlu0 %212, %v117
  %v214 = vpop.permute.xlu0 %213
  %216 = vset.pattern.permute.xlu0 1
  %217 = vperm.xlu0 %216, %v118
  %v218 = vpop.permute.xlu0 %217
  %v220 = vlaneseq
  %v221 = vshrl.u32 %v220, 7
  %v222 = vsub.s32 0, %v221
  %v223 = vrot.slane %v200, %v222
  %v224 = vlaneseq
  %v225 = vshrl.u32 %v224, 7
  %v226 = vsub.s32 0, %v225
  %v227 = vrot.slane %v201, %v226
  %v228 = vlaneseq
  %v229 = vshrl.u32 %v228, 7
  %v230 = vsub.s32 0, %v229
  %v231 = vrot.slane %v202, %v230
  %v232 = vlaneseq
  %v233 = vshrl.u32 %v232, 7
  %v234 = vsub.s32 0, %v233
  %v235 = vrot.slane %v203, %v234
  %v236 = vmul.f32 %v206, %v223
  %v237 = vmul.f32 %v206, %v227
  %v238 = vmul.f32 %v206, %v231
  %v239 = vmul.f32 %v206, %v235
  %v240 = vmul.f32 %v210, %v223
  %v241 = vmul.f32 %v210, %v227
  %v242 = vmul.f32 %v210, %v231
  %v243 = vmul.f32 %v210, %v235
  %v244 = vmul.f32 %v214, %v223
  %v245 = vmul.f32 %v214, %v227
  %v246 = vmul.f32 %v214, %v231
  %v247 = vmul.f32 %v214, %v235
  %v248 = vmul.f32 %v218, %v223
  %v249 = vmul.f32 %v218, %v227
  %v250 = vmul.f32 %v218, %v231
  %v251 = vmul.f32 %v218, %v235
  %v252 = vadd.f32 %v171, %v236
  %v253 = vadd.f32 %v172, %v237
  %v254 = vadd.f32 %v173, %v238
  %v255 = vadd.f32 %v174, %v239
  %v256 = vadd.f32 %v175, %v240
  %v257 = vadd.f32 %v176, %v241
  %v258 = vadd.f32 %v177, %v242
  %v259 = vadd.f32 %v178, %v243
  %v260 = vadd.f32 %v179, %v244
  %v261 = vadd.f32 %v180, %v245
  %v262 = vadd.f32 %v181, %v246
  %v263 = vadd.f32 %v182, %v247
  %v264 = vadd.f32 %v183, %v248
  %v265 = vadd.f32 %v184, %v249
  %v266 = vadd.f32 %v185, %v250
  %v267 = vadd.f32 %v186, %v251
  %268 = vrot.lane.b32.xlu0 %v81, 15
  %v269 = vpop.permute.xlu0 %268
  %270 = vrot.lane.b32.xlu0 %v85, 15
  %v271 = vpop.permute.xlu0 %270
  %272 = vrot.lane.b32.xlu0 %v89, 15
  %v273 = vpop.permute.xlu0 %272
  %274 = vrot.lane.b32.xlu0 %v93, 15
  %v275 = vpop.permute.xlu0 %274
  %vm276 = vcmp.lt.s32.totalorder %v28, 15
  %v277 = vsel %vm276, %v273, %v275
  %v278 = vsel %vm276, %v271, %v273
  %v279 = vsel %vm276, %v269, %v271
  %v280 = vsel %vm276, %v275, %v269
  %v281 = vsel %vm64, %v280, 0.0
  %v282 = vsel %vm65, %v279, 0.0
  %v283 = vsel %vm66, %v278, 0.0
  %v284 = vsel %vm67, %v277, 0.0
  %285 = vset.pattern.permute.xlu0 2
  %286 = vperm.xlu0 %285, %v115
  %v287 = vpop.permute.xlu0 %286
  %289 = vset.pattern.permute.xlu0 2
  %290 = vperm.xlu0 %289, %v116
  %v291 = vpop.permute.xlu0 %290
  %293 = vset.pattern.permute.xlu0 2
  %294 = vperm.xlu0 %293, %v117
  %v295 = vpop.permute.xlu0 %294
  %297 = vset.pattern.permute.xlu0 2
  %298 = vperm.xlu0 %297, %v118
  %v299 = vpop.permute.xlu0 %298
  %v301 = vlaneseq
  %v302 = vshrl.u32 %v301, 7
  %v303 = vsub.s32 0, %v302
  %v304 = vrot.slane %v281, %v303
  %v305 = vlaneseq
  %v306 = vshrl.u32 %v305, 7
  %v307 = vsub.s32 0, %v306
  %v308 = vrot.slane %v282, %v307
  %v309 = vlaneseq
  %v310 = vshrl.u32 %v309, 7
  %v311 = vsub.s32 0, %v310
  %v312 = vrot.slane %v283, %v311
  %v313 = vlaneseq
  %v314 = vshrl.u32 %v313, 7
  %v315 = vsub.s32 0, %v314
  %v316 = vrot.slane %v284, %v315
  %v317 = vmul.f32 %v287, %v304
  %v318 = vmul.f32 %v287, %v308
  %v319 = vmul.f32 %v287, %v312
  %v320 = vmul.f32 %v287, %v316
  %v321 = vmul.f32 %v291, %v304
  %v322 = vmul.f32 %v291, %v308
  %v323 = vmul.f32 %v291, %v312
  %v324 = vmul.f32 %v291, %v316
  %v325 = vmul.f32 %v295, %v304
  %v326 = vmul.f32 %v295, %v308
  %v327 = vmul.f32 %v295, %v312
  %v328 = vmul.f32 %v295, %v316
  %v329 = vmul.f32 %v299, %v304
  %v330 = vmul.f32 %v299, %v308
  %v331 = vmul.f32 %v299, %v312
  %v332 = vmul.f32 %v299, %v316
  %v333 = vadd.f32 %v252, %v317
  %v334 = vadd.f32 %v253, %v318
  %v335 = vadd.f32 %v254, %v319
  %v336 = vadd.f32 %v255, %v320
  %v337 = vadd.f32 %v256, %v321
  %v338 = vadd.f32 %v257, %v322
  %v339 = vadd.f32 %v258, %v323
  %v340 = vadd.f32 %v259, %v324
  %v341 = vadd.f32 %v260, %v325
  %v342 = vadd.f32 %v261, %v326
  %v343 = vadd.f32 %v262, %v327
  %v344 = vadd.f32 %v263, %v328
  %v345 = vadd.f32 %v264, %v329
  %v346 = vadd.f32 %v265, %v330
  %v347 = vadd.f32 %v266, %v331
  %v348 = vadd.f32 %v267, %v332
  %349 = vrot.lane.b32.xlu0 %v81, 1
  %v350 = vpop.permute.xlu0 %349
  %351 = vrot.lane.b32.xlu0 %v85, 1
  %v352 = vpop.permute.xlu0 %351
  %353 = vrot.lane.b32.xlu0 %v89, 1
  %v354 = vpop.permute.xlu0 %353
  %355 = vrot.lane.b32.xlu0 %v93, 1
  %v356 = vpop.permute.xlu0 %355
  %vm357 = vcmp.lt.s32.totalorder %v28, 1
  %v358 = vsel %vm357, %v354, %v356
  %v359 = vsel %vm357, %v352, %v354
  %v360 = vsel %vm357, %v350, %v352
  %v361 = vsel %vm357, %v356, %v350
  %v362 = vsel %vm44, %v361, 0.0
  %v363 = vsel %vm45, %v360, 0.0
  %v364 = vsel %vm46, %v359, 0.0
  %v365 = vsel %vm47, %v358, 0.0
  %366 = vset.pattern.permute.xlu0 3
  %367 = vperm.xlu0 %366, %v115
  %v368 = vpop.permute.xlu0 %367
  %370 = vset.pattern.permute.xlu0 3
  %371 = vperm.xlu0 %370, %v116
  %v372 = vpop.permute.xlu0 %371
  %374 = vset.pattern.permute.xlu0 3
  %375 = vperm.xlu0 %374, %v117
  %v376 = vpop.permute.xlu0 %375
  %378 = vset.pattern.permute.xlu0 3
  %379 = vperm.xlu0 %378, %v118
  %v380 = vpop.permute.xlu0 %379
  %v382 = vlaneseq
  %v383 = vshrl.u32 %v382, 7
  %v384 = vsub.s32 0, %v383
  %v385 = vrot.slane %v362, %v384
  %v386 = vlaneseq
  %v387 = vshrl.u32 %v386, 7
  %v388 = vsub.s32 0, %v387
  %v389 = vrot.slane %v363, %v388
  %v390 = vlaneseq
  %v391 = vshrl.u32 %v390, 7
  %v392 = vsub.s32 0, %v391
  %v393 = vrot.slane %v364, %v392
  %v394 = vlaneseq
  %v395 = vshrl.u32 %v394, 7
  %v396 = vsub.s32 0, %v395
  %v397 = vrot.slane %v365, %v396
  %v398 = vmul.f32 %v368, %v385
  %v399 = vmul.f32 %v368, %v389
  %v400 = vmul.f32 %v368, %v393
  %v401 = vmul.f32 %v368, %v397
  %v402 = vmul.f32 %v372, %v385
  %v403 = vmul.f32 %v372, %v389
  %v404 = vmul.f32 %v372, %v393
  %v405 = vmul.f32 %v372, %v397
  %v406 = vmul.f32 %v376, %v385
  %v407 = vmul.f32 %v376, %v389
  %v408 = vmul.f32 %v376, %v393
  %v409 = vmul.f32 %v376, %v397
  %v410 = vmul.f32 %v380, %v385
  %v411 = vmul.f32 %v380, %v389
  %v412 = vmul.f32 %v380, %v393
  %v413 = vmul.f32 %v380, %v397
  %v414 = vadd.f32 %v333, %v398
  %v415 = vadd.f32 %v334, %v399
  %v416 = vadd.f32 %v335, %v400
  %v417 = vadd.f32 %v336, %v401
  %v418 = vadd.f32 %v337, %v402
  %v419 = vadd.f32 %v338, %v403
  %v420 = vadd.f32 %v339, %v404
  %v421 = vadd.f32 %v340, %v405
  %v422 = vadd.f32 %v341, %v406
  %v423 = vadd.f32 %v342, %v407
  %v424 = vadd.f32 %v343, %v408
  %v425 = vadd.f32 %v344, %v409
  %v426 = vadd.f32 %v345, %v410
  %v427 = vadd.f32 %v346, %v411
  %v428 = vadd.f32 %v347, %v412
  %v429 = vadd.f32 %v348, %v413
  %430 = vset.pattern.permute.xlu0 4
  %431 = vperm.xlu0 %430, %v115
  %v432 = vpop.permute.xlu0 %431
  %434 = vset.pattern.permute.xlu0 4
  %435 = vperm.xlu0 %434, %v116
  %v436 = vpop.permute.xlu0 %435
  %438 = vset.pattern.permute.xlu0 4
  %439 = vperm.xlu0 %438, %v117
  %v440 = vpop.permute.xlu0 %439
  %442 = vset.pattern.permute.xlu0 4
  %443 = vperm.xlu0 %442, %v118
  %v444 = vpop.permute.xlu0 %443
  %v446 = vmul.f32 %v432, %v81
  %v447 = vmul.f32 %v432, %v85
  %v448 = vmul.f32 %v432, %v89
  %v449 = vmul.f32 %v432, %v93
  %v450 = vmul.f32 %v436, %v81
  %v451 = vmul.f32 %v436, %v85
  %v452 = vmul.f32 %v436, %v89
  %v453 = vmul.f32 %v436, %v93
  %v454 = vmul.f32 %v440, %v81
  %v455 = vmul.f32 %v440, %v85
  %v456 = vmul.f32 %v440, %v89
  %v457 = vmul.f32 %v440, %v93
  %v458 = vmul.f32 %v444, %v81
  %v459 = vmul.f32 %v444, %v85
  %v460 = vmul.f32 %v444, %v89
  %v461 = vmul.f32 %v444, %v93
  %v462 = vadd.f32 %v414, %v446
  %v463 = vadd.f32 %v415, %v447
  %v464 = vadd.f32 %v416, %v448
  %v465 = vadd.f32 %v417, %v449
  %v466 = vadd.f32 %v418, %v450
  %v467 = vadd.f32 %v419, %v451
  %v468 = vadd.f32 %v420, %v452
  %v469 = vadd.f32 %v421, %v453
  %v470 = vadd.f32 %v422, %v454
  %v471 = vadd.f32 %v423, %v455
  %v472 = vadd.f32 %v424, %v456
  %v473 = vadd.f32 %v425, %v457
  %v474 = vadd.f32 %v426, %v458
  %v475 = vadd.f32 %v427, %v459
  %v476 = vadd.f32 %v428, %v460
  %v477 = vadd.f32 %v429, %v461
  %478 = vrot.lane.b32.xlu0 %v81, 127
  %v479 = vpop.permute.xlu0 %478
  %480 = vrot.lane.b32.xlu0 %v85, 127
  %v481 = vpop.permute.xlu0 %480
  %482 = vrot.lane.b32.xlu0 %v89, 127
  %v483 = vpop.permute.xlu0 %482
  %484 = vrot.lane.b32.xlu0 %v93, 127
  %v485 = vpop.permute.xlu0 %484
  %vm486 = vcmp.lt.s32.totalorder %v28, 127
  %v487 = vsel %vm486, %v483, %v485
  %v488 = vsel %vm486, %v481, %v483
  %v489 = vsel %vm486, %v479, %v481
  %v490 = vsel %vm486, %v485, %v479
  %v491 = vsel %vm48, %v489, 0.0
  %v492 = vsel %vm49, %v488, 0.0
  %v493 = vsel %vm50, %v487, 0.0
  %v494 = vsel %vm51, %v490, 0.0
  %495 = vset.pattern.permute.xlu0 5
  %496 = vperm.xlu0 %495, %v115
  %v497 = vpop.permute.xlu0 %496
  %499 = vset.pattern.permute.xlu0 5
  %500 = vperm.xlu0 %499, %v116
  %v501 = vpop.permute.xlu0 %500
  %503 = vset.pattern.permute.xlu0 5
  %504 = vperm.xlu0 %503, %v117
  %v505 = vpop.permute.xlu0 %504
  %507 = vset.pattern.permute.xlu0 5
  %508 = vperm.xlu0 %507, %v118
  %v509 = vpop.permute.xlu0 %508
  %v511 = vlaneseq
  %v512 = vshrl.u32 %v511, 7
  %v513 = vsub.s32 0, %v512
  %v514 = vrot.slane %v491, %v513
  %v515 = vlaneseq
  %v516 = vshrl.u32 %v515, 7
  %v517 = vsub.s32 0, %v516
  %v518 = vrot.slane %v492, %v517
  %v519 = vlaneseq
  %v520 = vshrl.u32 %v519, 7
  %v521 = vsub.s32 0, %v520
  %v522 = vrot.slane %v493, %v521
  %v523 = vlaneseq
  %v524 = vshrl.u32 %v523, 7
  %v525 = vsub.s32 0, %v524
  %v526 = vrot.slane %v494, %v525
  %v527 = vmul.f32 %v497, %v514
  %v528 = vmul.f32 %v497, %v518
  %v529 = vmul.f32 %v497, %v522
  %v530 = vmul.f32 %v497, %v526
  %v531 = vmul.f32 %v501, %v514
  %v532 = vmul.f32 %v501, %v518
  %v533 = vmul.f32 %v501, %v522
  %v534 = vmul.f32 %v501, %v526
  %v535 = vmul.f32 %v505, %v514
  %v536 = vmul.f32 %v505, %v518
  %v537 = vmul.f32 %v505, %v522
  %v538 = vmul.f32 %v505, %v526
  %v539 = vmul.f32 %v509, %v514
  %v540 = vmul.f32 %v509, %v518
  %v541 = vmul.f32 %v509, %v522
  %v542 = vmul.f32 %v509, %v526
  %v543 = vadd.f32 %v462, %v527
  %v544 = vadd.f32 %v463, %v528
  %v545 = vadd.f32 %v464, %v529
  %v546 = vadd.f32 %v465, %v530
  %v547 = vadd.f32 %v466, %v531
  %v548 = vadd.f32 %v467, %v532
  %v549 = vadd.f32 %v468, %v533
  %v550 = vadd.f32 %v469, %v534
  %v551 = vadd.f32 %v470, %v535
  %v552 = vadd.f32 %v471, %v536
  %v553 = vadd.f32 %v472, %v537
  %v554 = vadd.f32 %v473, %v538
  %v555 = vadd.f32 %v474, %v539
  %v556 = vadd.f32 %v475, %v540
  %v557 = vadd.f32 %v476, %v541
  %v558 = vadd.f32 %v477, %v542
  %559 = vrot.lane.b32.xlu0 %v81, 113
  %v560 = vpop.permute.xlu0 %559
  %561 = vrot.lane.b32.xlu0 %v85, 113
  %v562 = vpop.permute.xlu0 %561
  %563 = vrot.lane.b32.xlu0 %v89, 113
  %v564 = vpop.permute.xlu0 %563
  %565 = vrot.lane.b32.xlu0 %v93, 113
  %v566 = vpop.permute.xlu0 %565
  %vm567 = vcmp.lt.s32.totalorder %v28, 113
  %v568 = vsel %vm567, %v564, %v566
  %v569 = vsel %vm567, %v562, %v564
  %v570 = vsel %vm567, %v560, %v562
  %v571 = vsel %vm567, %v566, %v560
  %v572 = vsel %vm68, %v570, 0.0
  %v573 = vsel %vm69, %v569, 0.0
  %v574 = vsel %vm70, %v568, 0.0
  %v575 = vsel %vm71, %v571, 0.0
  %576 = vset.pattern.permute.xlu0 6
  %577 = vperm.xlu0 %576, %v115
  %v578 = vpop.permute.xlu0 %577
  %580 = vset.pattern.permute.xlu0 6
  %581 = vperm.xlu0 %580, %v116
  %v582 = vpop.permute.xlu0 %581
  %584 = vset.pattern.permute.xlu0 6
  %585 = vperm.xlu0 %584, %v117
  %v586 = vpop.permute.xlu0 %585
  %588 = vset.pattern.permute.xlu0 6
  %589 = vperm.xlu0 %588, %v118
  %v590 = vpop.permute.xlu0 %589
  %v592 = vlaneseq
  %v593 = vshrl.u32 %v592, 7
  %v594 = vsub.s32 0, %v593
  %v595 = vrot.slane %v572, %v594
  %v596 = vlaneseq
  %v597 = vshrl.u32 %v596, 7
  %v598 = vsub.s32 0, %v597
  %v599 = vrot.slane %v573, %v598
  %v600 = vlaneseq
  %v601 = vshrl.u32 %v600, 7
  %v602 = vsub.s32 0, %v601
  %v603 = vrot.slane %v574, %v602
  %v604 = vlaneseq
  %v605 = vshrl.u32 %v604, 7
  %v606 = vsub.s32 0, %v605
  %v607 = vrot.slane %v575, %v606
  %v608 = vmul.f32 %v578, %v595
  %v609 = vmul.f32 %v578, %v599
  %v610 = vmul.f32 %v578, %v603
  %v611 = vmul.f32 %v578, %v607
  %v612 = vmul.f32 %v582, %v595
  %v613 = vmul.f32 %v582, %v599
  %v614 = vmul.f32 %v582, %v603
  %v615 = vmul.f32 %v582, %v607
  %v616 = vmul.f32 %v586, %v595
  %v617 = vmul.f32 %v586, %v599
  %v618 = vmul.f32 %v586, %v603
  %v619 = vmul.f32 %v586, %v607
  %v620 = vmul.f32 %v590, %v595
  %v621 = vmul.f32 %v590, %v599
  %v622 = vmul.f32 %v590, %v603
  %v623 = vmul.f32 %v590, %v607
  %v624 = vadd.f32 %v543, %v608
  %v625 = vadd.f32 %v544, %v609
  %v626 = vadd.f32 %v545, %v610
  %v627 = vadd.f32 %v546, %v611
  %v628 = vadd.f32 %v547, %v612
  %v629 = vadd.f32 %v548, %v613
  %v630 = vadd.f32 %v549, %v614
  %v631 = vadd.f32 %v550, %v615
  %v632 = vadd.f32 %v551, %v616
  %v633 = vadd.f32 %v552, %v617
  %v634 = vadd.f32 %v553, %v618
  %v635 = vadd.f32 %v554, %v619
  %v636 = vadd.f32 %v555, %v620
  %v637 = vadd.f32 %v556, %v621
  %v638 = vadd.f32 %v557, %v622
  %v639 = vadd.f32 %v558, %v623
  %640 = vrot.lane.b32.xlu0 %v81, 112
  %v641 = vpop.permute.xlu0 %640
  %642 = vrot.lane.b32.xlu0 %v85, 112
  %v643 = vpop.permute.xlu0 %642
  %644 = vrot.lane.b32.xlu0 %v89, 112
  %v645 = vpop.permute.xlu0 %644
  %646 = vrot.lane.b32.xlu0 %v93, 112
  %v647 = vpop.permute.xlu0 %646
  %vm648 = vcmp.lt.s32.totalorder %v28, 112
  %v649 = vsel %vm648, %v645, %v647
  %v650 = vsel %vm648, %v643, %v645
  %v651 = vsel %vm648, %v641, %v643
  %v652 = vsel %vm648, %v647, %v641
  %v653 = vsel %vm56, %v651, 0.0
  %v654 = vsel %vm57, %v650, 0.0
  %v655 = vsel %vm58, %v649, 0.0
  %v656 = vsel %vm59, %v652, 0.0
  %657 = vset.pattern.permute.xlu0 7
  %658 = vperm.xlu0 %657, %v115
  %v659 = vpop.permute.xlu0 %658
  %661 = vset.pattern.permute.xlu0 7
  %662 = vperm.xlu0 %661, %v116
  %v663 = vpop.permute.xlu0 %662
  %665 = vset.pattern.permute.xlu0 7
  %666 = vperm.xlu0 %665, %v117
  %v667 = vpop.permute.xlu0 %666
  %669 = vset.pattern.permute.xlu0 7
  %670 = vperm.xlu0 %669, %v118
  %v671 = vpop.permute.xlu0 %670
  %v673 = vlaneseq
  %v674 = vshrl.u32 %v673, 7
  %v675 = vsub.s32 0, %v674
  %v676 = vrot.slane %v653, %v675
  %v677 = vlaneseq
  %v678 = vshrl.u32 %v677, 7
  %v679 = vsub.s32 0, %v678
  %v680 = vrot.slane %v654, %v679
  %v681 = vlaneseq
  %v682 = vshrl.u32 %v681, 7
  %v683 = vsub.s32 0, %v682
  %v684 = vrot.slane %v655, %v683
  %v685 = vlaneseq
  %v686 = vshrl.u32 %v685, 7
  %v687 = vsub.s32 0, %v686
  %v688 = vrot.slane %v656, %v687
  %v689 = vmul.f32 %v659, %v676
  %v690 = vmul.f32 %v659, %v680
  %v691 = vmul.f32 %v659, %v684
  %v692 = vmul.f32 %v659, %v688
  %v693 = vmul.f32 %v663, %v676
  %v694 = vmul.f32 %v663, %v680
  %v695 = vmul.f32 %v663, %v684
  %v696 = vmul.f32 %v663, %v688
  %v697 = vmul.f32 %v667, %v676
  %v698 = vmul.f32 %v667, %v680
  %v699 = vmul.f32 %v667, %v684
  %v700 = vmul.f32 %v667, %v688
  %v701 = vmul.f32 %v671, %v676
  %v702 = vmul.f32 %v671, %v680
  %v703 = vmul.f32 %v671, %v684
  %v704 = vmul.f32 %v671, %v688
  %v705 = vadd.f32 %v624, %v689
  %v706 = vadd.f32 %v625, %v690
  %v707 = vadd.f32 %v626, %v691
  %v708 = vadd.f32 %v627, %v692
  %v709 = vadd.f32 %v628, %v693
  %v710 = vadd.f32 %v629, %v694
  %v711 = vadd.f32 %v630, %v695
  %v712 = vadd.f32 %v631, %v696
  %v713 = vadd.f32 %v632, %v697
  %v714 = vadd.f32 %v633, %v698
  %v715 = vadd.f32 %v634, %v699
  %v716 = vadd.f32 %v635, %v700
  %v717 = vadd.f32 %v636, %v701
  %v718 = vadd.f32 %v637, %v702
  %v719 = vadd.f32 %v638, %v703
  %v720 = vadd.f32 %v639, %v704
  %721 = vrot.lane.b32.xlu0 %v81, 111
  %v722 = vpop.permute.xlu0 %721
  %723 = vrot.lane.b32.xlu0 %v85, 111
  %v724 = vpop.permute.xlu0 %723
  %725 = vrot.lane.b32.xlu0 %v89, 111
  %v726 = vpop.permute.xlu0 %725
  %727 = vrot.lane.b32.xlu0 %v93, 111
  %v728 = vpop.permute.xlu0 %727
  %vm729 = vcmp.lt.s32.totalorder %v28, 111
  %v730 = vsel %vm729, %v726, %v728
  %v731 = vsel %vm729, %v724, %v726
  %v732 = vsel %vm729, %v722, %v724
  %v733 = vsel %vm729, %v728, %v722
  %v734 = vsel %vm72, %v732, 0.0
  %v735 = vsel %vm73, %v731, 0.0
  %v736 = vsel %vm74, %v730, 0.0
  %v737 = vsel %vm75, %v733, 0.0
  %738 = vset.pattern.permute.xlu0 8
  %739 = vperm.xlu0 %738, %v115
  %v740 = vpop.permute.xlu0 %739
  %742 = vset.pattern.permute.xlu0 8
  %743 = vperm.xlu0 %742, %v116
  %v744 = vpop.permute.xlu0 %743
  %746 = vset.pattern.permute.xlu0 8
  %747 = vperm.xlu0 %746, %v117
  %v748 = vpop.permute.xlu0 %747
  %750 = vset.pattern.permute.xlu0 8
  %751 = vperm.xlu0 %750, %v118
  %v752 = vpop.permute.xlu0 %751
  %v754 = vlaneseq
  %v755 = vshrl.u32 %v754, 7
  %v756 = vsub.s32 0, %v755
  %v757 = vrot.slane %v734, %v756
  %v758 = vlaneseq
  %v759 = vshrl.u32 %v758, 7
  %v760 = vsub.s32 0, %v759
  %v761 = vrot.slane %v735, %v760
  %v762 = vlaneseq
  %v763 = vshrl.u32 %v762, 7
  %v764 = vsub.s32 0, %v763
  %v765 = vrot.slane %v736, %v764
  %v766 = vlaneseq
  %v767 = vshrl.u32 %v766, 7
  %v768 = vsub.s32 0, %v767
  %v769 = vrot.slane %v737, %v768
  %v770 = vmul.f32 %v740, %v757
  %v771 = vmul.f32 %v740, %v761
  %v772 = vmul.f32 %v740, %v765
  %v773 = vmul.f32 %v740, %v769
  %v774 = vmul.f32 %v744, %v757
  %v775 = vmul.f32 %v744, %v761
  %v776 = vmul.f32 %v744, %v765
  %v777 = vmul.f32 %v744, %v769
  %v778 = vmul.f32 %v748, %v757
  %v779 = vmul.f32 %v748, %v761
  %v780 = vmul.f32 %v748, %v765
  %v781 = vmul.f32 %v748, %v769
  %v782 = vmul.f32 %v752, %v757
  %v783 = vmul.f32 %v752, %v761
  %v784 = vmul.f32 %v752, %v765
  %v785 = vmul.f32 %v752, %v769
  %v786 = vadd.f32 %v705, %v770
  %v787 = vadd.f32 %v706, %v771
  %v788 = vadd.f32 %v707, %v772
  %v789 = vadd.f32 %v708, %v773
  %v790 = vadd.f32 %v709, %v774
  %v791 = vadd.f32 %v710, %v775
  %v792 = vadd.f32 %v711, %v776
  %v793 = vadd.f32 %v712, %v777
  %v794 = vadd.f32 %v713, %v778
  %v795 = vadd.f32 %v714, %v779
  %v796 = vadd.f32 %v715, %v780
  %v797 = vadd.f32 %v716, %v781
  %v798 = vadd.f32 %v717, %v782
  %v799 = vadd.f32 %v718, %v783
  %v800 = vadd.f32 %v719, %v784
  %v801 = vadd.f32 %v720, %v785
  %v802 = vld [vmem:[%s2] sm:$0xff]
  %v803 = vld [vmem:[%s2 + $0x8] sm:$0xff]
  %v804 = vld [vmem:[%s2 + $0x10] sm:$0xff]
  %v805 = vld [vmem:[%s2 + $0x18] sm:$0xff]
  %807 = vset.pattern.permute.xlu0 0
  %808 = vperm.xlu0 %807, %v802
  %v809 = vpop.permute.xlu0 %808
  %812 = vset.pattern.permute.xlu0 0
  %813 = vperm.xlu0 %812, %v803
  %v814 = vpop.permute.xlu0 %813
  %817 = vset.pattern.permute.xlu0 0
  %818 = vperm.xlu0 %817, %v804
  %v819 = vpop.permute.xlu0 %818
  %822 = vset.pattern.permute.xlu0 0
  %823 = vperm.xlu0 %822, %v805
  %v824 = vpop.permute.xlu0 %823
  %v826 = vadd.f32 %v786, %v809
  %v827 = vadd.f32 %v787, %v809
  %v828 = vadd.f32 %v788, %v809
  %v829 = vadd.f32 %v789, %v809
  %v830 = vadd.f32 %v790, %v814
  %v831 = vadd.f32 %v791, %v814
  %v832 = vadd.f32 %v792, %v814
  %v833 = vadd.f32 %v793, %v814
  %v834 = vadd.f32 %v794, %v819
  %v835 = vadd.f32 %v795, %v819
  %v836 = vadd.f32 %v796, %v819
  %v837 = vadd.f32 %v797, %v819
  %v838 = vadd.f32 %v798, %v824
  %v839 = vadd.f32 %v799, %v824
  %v840 = vadd.f32 %v800, %v824
  %v841 = vadd.f32 %v801, %v824
  %v842 = vmax.f32 %v826, 0.0
  %v843 = vmax.f32 %v827, 0.0
  %v844 = vmax.f32 %v828, 0.0
  %v845 = vmax.f32 %v829, 0.0
  %v846 = vmax.f32 %v830, 0.0
  %v847 = vmax.f32 %v831, 0.0
  %v848 = vmax.f32 %v832, 0.0
  %v849 = vmax.f32 %v833, 0.0
  %v850 = vmax.f32 %v834, 0.0
  %v851 = vmax.f32 %v835, 0.0
  %v852 = vmax.f32 %v836, 0.0
  %v853 = vmax.f32 %v837, 0.0
  %v854 = vmax.f32 %v838, 0.0
  %v855 = vmax.f32 %v839, 0.0
  %v856 = vmax.f32 %v840, 0.0
  %v857 = vmax.f32 %v841, 0.0
  %858 = vrot.lane.b32.xlu0 %v842, 17
  %v859 = vpop.permute.xlu0 %858
  %860 = vrot.lane.b32.xlu0 %v846, 17
  %v861 = vpop.permute.xlu0 %860
  %862 = vrot.lane.b32.xlu0 %v850, 17
  %v863 = vpop.permute.xlu0 %862
  %864 = vrot.lane.b32.xlu0 %v854, 17
  %v865 = vpop.permute.xlu0 %864
  %866 = vrot.lane.b32.xlu0 %v843, 17
  %v867 = vpop.permute.xlu0 %866
  %868 = vrot.lane.b32.xlu0 %v847, 17
  %v869 = vpop.permute.xlu0 %868
  %870 = vrot.lane.b32.xlu0 %v851, 17
  %v871 = vpop.permute.xlu0 %870
  %872 = vrot.lane.b32.xlu0 %v855, 17
  %v873 = vpop.permute.xlu0 %872
  %874 = vrot.lane.b32.xlu0 %v844, 17
  %v875 = vpop.permute.xlu0 %874
  %876 = vrot.lane.b32.xlu0 %v848, 17
  %v877 = vpop.permute.xlu0 %876
  %878 = vrot.lane.b32.xlu0 %v852, 17
  %v879 = vpop.permute.xlu0 %878
  %880 = vrot.lane.b32.xlu0 %v856, 17
  %v881 = vpop.permute.xlu0 %880
  %882 = vrot.lane.b32.xlu0 %v845, 17
  %v883 = vpop.permute.xlu0 %882
  %884 = vrot.lane.b32.xlu0 %v849, 17
  %v885 = vpop.permute.xlu0 %884
  %886 = vrot.lane.b32.xlu0 %v853, 17
  %v887 = vpop.permute.xlu0 %886
  %888 = vrot.lane.b32.xlu0 %v857, 17
  %v889 = vpop.permute.xlu0 %888
  %v890 = vsel %vm106, %v875, %v883
  %v891 = vsel %vm106, %v877, %v885
  %v892 = vsel %vm106, %v879, %v887
  %v893 = vsel %vm106, %v881, %v889
  %v894 = vsel %vm106, %v867, %v875
  %v895 = vsel %vm106, %v869, %v877
  %v896 = vsel %vm106, %v871, %v879
  %v897 = vsel %vm106, %v873, %v881
  %v898 = vsel %vm106, %v859, %v867
  %v899 = vsel %vm106, %v861, %v869
  %v900 = vsel %vm106, %v863, %v871
  %v901 = vsel %vm106, %v865, %v873
  %v902 = vsel %vm106, %v883, %v859
  %v903 = vsel %vm106, %v885, %v861
  %v904 = vsel %vm106, %v887, %v863
  %v905 = vsel %vm106, %v889, %v865
  %v906 = vsel %vm60, 1, 0
  %v907 = vsel %vm61, 1, 0
  %v908 = vsel %vm62, 1, 0
  %v909 = vsel %vm63, 1, 0
  %vm910 = vcmp.eq.s32.totalorder %v906, 1
  %vm911 = vcmp.eq.s32.totalorder %v907, 1
  %vm912 = vcmp.eq.s32.totalorder %v908, 1
  %vm913 = vcmp.eq.s32.totalorder %v909, 1
  %v914 = vsel %vm910, %v902, 0.0
  %v915 = vsel %vm911, %v898, 0.0
  %v916 = vsel %vm912, %v894, 0.0
  %v917 = vsel %vm913, %v890, 0.0
  %v918 = vsel %vm910, %v903, 0.0
  %v919 = vsel %vm911, %v899, 0.0
  %v920 = vsel %vm912, %v895, 0.0
  %v921 = vsel %vm913, %v891, 0.0
  %v922 = vsel %vm910, %v904, 0.0
  %v923 = vsel %vm911, %v900, 0.0
  %v924 = vsel %vm912, %v896, 0.0
  %v925 = vsel %vm913, %v892, 0.0
  %v926 = vsel %vm910, %v905, 0.0
  %v927 = vsel %vm911, %v901, 0.0
  %v928 = vsel %vm912, %v897, 0.0
  %v929 = vsel %vm913, %v893, 0.0
  %v930 = vld [vmem:[%s3] sm:$0xf]
  %v931 = vld [vmem:[%s3 + $0x4] sm:$0xf]
  %v932 = vld [vmem:[%s3 + $0x8] sm:$0xf]
  %v933 = vld [vmem:[%s3 + $0xc] sm:$0xf]
  %v934 = vpack.c.bf16 %v918, %v914
  %v935 = vpack.c.bf16 %v919, %v915
  %v936 = vpack.c.bf16 %v920, %v916
  %v937 = vpack.c.bf16 %v921, %v917
  %v938 = vpack.c.bf16 %v926, %v922
  %v939 = vpack.c.bf16 %v927, %v923
  %v940 = vpack.c.bf16 %v928, %v924
  %v941 = vpack.c.bf16 %v929, %v925
  %942 = vrot.lane.b32.xlu0 %v842, 16
  %v943 = vpop.permute.xlu0 %942
  %944 = vrot.lane.b32.xlu0 %v846, 16
  %v945 = vpop.permute.xlu0 %944
  %946 = vrot.lane.b32.xlu0 %v850, 16
  %v947 = vpop.permute.xlu0 %946
  %948 = vrot.lane.b32.xlu0 %v854, 16
  %v949 = vpop.permute.xlu0 %948
  %950 = vrot.lane.b32.xlu0 %v843, 16
  %v951 = vpop.permute.xlu0 %950
  %952 = vrot.lane.b32.xlu0 %v847, 16
  %v953 = vpop.permute.xlu0 %952
  %954 = vrot.lane.b32.xlu0 %v851, 16
  %v955 = vpop.permute.xlu0 %954
  %956 = vrot.lane.b32.xlu0 %v855, 16
  %v957 = vpop.permute.xlu0 %956
  %958 = vrot.lane.b32.xlu0 %v844, 16
  %v959 = vpop.permute.xlu0 %958
  %960 = vrot.lane.b32.xlu0 %v848, 16
  %v961 = vpop.permute.xlu0 %960
  %962 = vrot.lane.b32.xlu0 %v852, 16
  %v963 = vpop.permute.xlu0 %962
  %964 = vrot.lane.b32.xlu0 %v856, 16
  %v965 = vpop.permute.xlu0 %964
  %966 = vrot.lane.b32.xlu0 %v845, 16
  %v967 = vpop.permute.xlu0 %966
  %968 = vrot.lane.b32.xlu0 %v849, 16
  %v969 = vpop.permute.xlu0 %968
  %970 = vrot.lane.b32.xlu0 %v853, 16
  %v971 = vpop.permute.xlu0 %970
  %972 = vrot.lane.b32.xlu0 %v857, 16
  %v973 = vpop.permute.xlu0 %972
  %v974 = vsel %vm195, %v959, %v967
  %v975 = vsel %vm195, %v961, %v969
  %v976 = vsel %vm195, %v963, %v971
  %v977 = vsel %vm195, %v965, %v973
  %v978 = vsel %vm195, %v951, %v959
  %v979 = vsel %vm195, %v953, %v961
  %v980 = vsel %vm195, %v955, %v963
  %v981 = vsel %vm195, %v957, %v965
  %v982 = vsel %vm195, %v943, %v951
  %v983 = vsel %vm195, %v945, %v953
  %v984 = vsel %vm195, %v947, %v955
  %v985 = vsel %vm195, %v949, %v957
  %v986 = vsel %vm195, %v967, %v943
  %v987 = vsel %vm195, %v969, %v945
  %v988 = vsel %vm195, %v971, %v947
  %v989 = vsel %vm195, %v973, %v949
  %v990 = vsel %vm52, 1, 0
  %v991 = vsel %vm53, 1, 0
  %v992 = vsel %vm54, 1, 0
  %v993 = vsel %vm55, 1, 0
  %vm994 = vcmp.eq.s32.totalorder %v990, 1
  %vm995 = vcmp.eq.s32.totalorder %v991, 1
  %vm996 = vcmp.eq.s32.totalorder %v992, 1
  %vm997 = vcmp.eq.s32.totalorder %v993, 1
  %v998 = vsel %vm994, %v986, 0.0
  %v999 = vsel %vm995, %v982, 0.0
  %v1000 = vsel %vm996, %v978, 0.0
  %v1001 = vsel %vm997, %v974, 0.0
  %v1002 = vsel %vm994, %v987, 0.0
  %v1003 = vsel %vm995, %v983, 0.0
  %v1004 = vsel %vm996, %v979, 0.0
  %v1005 = vsel %vm997, %v975, 0.0
  %v1006 = vsel %vm994, %v988, 0.0
  %v1007 = vsel %vm995, %v984, 0.0
  %v1008 = vsel %vm996, %v980, 0.0
  %v1009 = vsel %vm997, %v976, 0.0
  %v1010 = vsel %vm994, %v989, 0.0
  %v1011 = vsel %vm995, %v985, 0.0
  %v1012 = vsel %vm996, %v981, 0.0
  %v1013 = vsel %vm997, %v977, 0.0
  %s1014 = scalar_lea.vmem %s3, 16
  %v1015 = vld [vmem:[%s1014] sm:$0xf]
  %v1016 = vld [vmem:[%s1014 + $0x4] sm:$0xf]
  %v1017 = vld [vmem:[%s1014 + $0x8] sm:$0xf]
  %v1018 = vld [vmem:[%s1014 + $0xc] sm:$0xf]
  %v1019 = vpack.c.bf16 %v1002, %v998
  %v1020 = vpack.c.bf16 %v1003, %v999
  %v1021 = vpack.c.bf16 %v1004, %v1000
  %v1022 = vpack.c.bf16 %v1005, %v1001
  %v1023 = vpack.c.bf16 %v1010, %v1006
  %v1024 = vpack.c.bf16 %v1011, %v1007
  %v1025 = vpack.c.bf16 %v1012, %v1008
  %v1026 = vpack.c.bf16 %v1013, %v1009
  %v1031 = vunpack.c.l.b16 %v1015
  %v1032 = vunpack.c.l.b16 %v1016
  %v1033 = vunpack.c.l.b16 %v1017
  %v1034 = vunpack.c.l.b16 %v1018
  %v1035 = vpack.c.b16 %v1032, %v1031
  %v1036 = vpack.c.b16 %v1034, %v1033
  %vm1037 = vcmask 261120
  %v1039 = vsel %vm1037, %v1035, 0
  %v1042 = vsel %vm1037, %v1036, 0
  %1044 = vmatprep.subr.bf16.mxu0 0
  %1045 = vmatpush1.bf16.msra.mxu0 0
  %1046 = vmatprep.subr.bf16.mxu0 0
  %1047 = vmatpush1.bf16.msra.mxu0 0
  %1048 = vmatprep.subr.bf16.mxu0 0
  %1049 = vmatpush1.bf16.msra.mxu0 0
  %1050 = vmatprep.subr.bf16.mxu0 0
  %1051 = vmatpush1.bf16.msra.mxu0 0
  %1052 = vmatprep.subr.bf16.mxu0 0
  %1053 = vmatpush1.bf16.msra.mxu0 0
  %1054 = vmatprep.subr.bf16.mxu0 0
  %1055 = vmatpush1.bf16.msra.mxu0 0
  %1056 = vmatprep.subr.bf16.mxu0 %v1024
  %1057 = vmatpush1.bf16.msra.mxu0 %v1023
  %1058 = vmatprep.subr.bf16.mxu0 %v1020
  %1059 = vmatpush1.bf16.msra.mxu0 %v1019
  %1060 = vmatprep.subr.bf16.mxu0 0
  %1061 = vmatpush2.bf16.msra.mxu0 0
  %1062 = vmatprep.subr.bf16.mxu0 0
  %1063 = vmatpush2.bf16.msra.mxu0 0
  %1064 = vmatprep.subr.bf16.mxu0 0
  %1065 = vmatpush2.bf16.msra.mxu0 0
  %1066 = vmatprep.subr.bf16.mxu0 0
  %1067 = vmatpush2.bf16.msra.mxu0 0
  %1068 = vmatprep.subr.bf16.mxu0 0
  %1069 = vmatpush2.bf16.msra.mxu0 0
  %1070 = vmatprep.subr.bf16.mxu0 0
  %1071 = vmatpush2.bf16.msra.mxu0 0
  %1072 = vmatprep.subr.bf16.mxu0 0
  %1073 = vmatpush2.bf16.msra.mxu0 0
  %1074 = vmatprep.subr.bf16.mxu0 0
  %1075 = vmatpush2.bf16.msra.mxu0 0
  %1076 = vmatprep.mubr.bf16.mxu0 0
  %1077 = vmatmul.mubr.bf16.gmra.mxu0 %v1039
  %v1078 = vpop.f32.mrf.mxu0
  %v1079 = vadd.f32 0.0, %v1078
  %v1080 = vpop.f32.mrf.mxu0
  %v1081 = vadd.f32 0.0, %v1080
  %v1082 = vpop.f32.mrf.mxu0
  %v1083 = vadd.f32 0.0, %v1082
  %v1084 = vpop.f32.mrf.mxu0
  %v1085 = vadd.f32 0.0, %v1084
  %1086 = vmatprep.mubr.bf16.mxu0 0
  %1087 = vmatmul.mubr.bf16.gmra.mxu0 %v1042
  %v1088 = vpop.f32.mrf.mxu0
  %v1089 = vadd.f32 0.0, %v1088
  %v1090 = vpop.f32.mrf.mxu0
  %v1091 = vadd.f32 0.0, %v1090
  %v1092 = vpop.f32.mrf.mxu0
  %v1093 = vadd.f32 0.0, %v1092
  %v1094 = vpop.f32.mrf.mxu0
  %v1095 = vadd.f32 0.0, %v1094
  %1096 = vdwg.mxu0
  %1097 = vmatprep.subr.bf16.mxu0 0
  %1098 = vmatpush1.bf16.msra.mxu0 0
  %1099 = vmatprep.subr.bf16.mxu0 0
  %1100 = vmatpush1.bf16.msra.mxu0 0
  %1101 = vmatprep.subr.bf16.mxu0 0
  %1102 = vmatpush1.bf16.msra.mxu0 0
  %1103 = vmatprep.subr.bf16.mxu0 0
  %1104 = vmatpush1.bf16.msra.mxu0 0
  %1105 = vmatprep.subr.bf16.mxu0 0
  %1106 = vmatpush1.bf16.msra.mxu0 0
  %1107 = vmatprep.subr.bf16.mxu0 0
  %1108 = vmatpush1.bf16.msra.mxu0 0
  %1109 = vmatprep.subr.bf16.mxu0 %v1026
  %1110 = vmatpush1.bf16.msra.mxu0 %v1025
  %1111 = vmatprep.subr.bf16.mxu0 %v1022
  %1112 = vmatpush1.bf16.msra.mxu0 %v1021
  %1113 = vmatprep.subr.bf16.mxu0 0
  %1114 = vmatpush2.bf16.msra.mxu0 0
  %1115 = vmatprep.subr.bf16.mxu0 0
  %1116 = vmatpush2.bf16.msra.mxu0 0
  %1117 = vmatprep.subr.bf16.mxu0 0
  %1118 = vmatpush2.bf16.msra.mxu0 0
  %1119 = vmatprep.subr.bf16.mxu0 0
  %1120 = vmatpush2.bf16.msra.mxu0 0
  %1121 = vmatprep.subr.bf16.mxu0 0
  %1122 = vmatpush2.bf16.msra.mxu0 0
  %1123 = vmatprep.subr.bf16.mxu0 0
  %1124 = vmatpush2.bf16.msra.mxu0 0
  %1125 = vmatprep.subr.bf16.mxu0 0
  %1126 = vmatpush2.bf16.msra.mxu0 0
  %1127 = vmatprep.subr.bf16.mxu0 0
  %1128 = vmatpush2.bf16.msra.mxu0 0
  %1129 = vmatprep.mubr.bf16.mxu0 0
  %1130 = vmatmul.mubr.bf16.gmra.mxu0 %v1039
  %v1131 = vpop.f32.mrf.mxu0
  %v1132 = vadd.f32 0.0, %v1131
  %v1133 = vpop.f32.mrf.mxu0
  %v1134 = vadd.f32 0.0, %v1133
  %v1135 = vpop.f32.mrf.mxu0
  %v1136 = vadd.f32 0.0, %v1135
  %v1137 = vpop.f32.mrf.mxu0
  %v1138 = vadd.f32 0.0, %v1137
  %1139 = vmatprep.mubr.bf16.mxu0 0
  %1140 = vmatmul.mubr.bf16.gmra.mxu0 %v1042
  %v1141 = vpop.f32.mrf.mxu0
  %v1142 = vadd.f32 0.0, %v1141
  %v1143 = vpop.f32.mrf.mxu0
  %v1144 = vadd.f32 0.0, %v1143
  %v1145 = vpop.f32.mrf.mxu0
  %v1146 = vadd.f32 0.0, %v1145
  %v1147 = vpop.f32.mrf.mxu0
  %v1148 = vadd.f32 0.0, %v1147
  %1149 = vdwg.mxu0
  %v1154 = vunpack.c.l.b16 %v930
  %v1155 = vunpack.c.l.b16 %v931
  %v1156 = vunpack.c.l.b16 %v932
  %v1157 = vunpack.c.l.b16 %v933
  %v1158 = vpack.c.b16 %v1155, %v1154
  %v1159 = vpack.c.b16 %v1157, %v1156
  %v1161 = vsel %vm1037, %v1158, 0
  %v1164 = vsel %vm1037, %v1159, 0
  %1166 = vmatprep.subr.bf16.mxu0 0
  %1167 = vmatpush1.bf16.msra.mxu0 0
  %1168 = vmatprep.subr.bf16.mxu0 0
  %1169 = vmatpush1.bf16.msra.mxu0 0
  %1170 = vmatprep.subr.bf16.mxu0 0
  %1171 = vmatpush1.bf16.msra.mxu0 0
  %1172 = vmatprep.subr.bf16.mxu0 0
  %1173 = vmatpush1.bf16.msra.mxu0 0
  %1174 = vmatprep.subr.bf16.mxu0 0
  %1175 = vmatpush1.bf16.msra.mxu0 0
  %1176 = vmatprep.subr.bf16.mxu0 0
  %1177 = vmatpush1.bf16.msra.mxu0 0
  %1178 = vmatprep.subr.bf16.mxu0 %v939
  %1179 = vmatpush1.bf16.msra.mxu0 %v938
  %1180 = vmatprep.subr.bf16.mxu0 %v935
  %1181 = vmatpush1.bf16.msra.mxu0 %v934
  %1182 = vmatprep.subr.bf16.mxu0 0
  %1183 = vmatpush2.bf16.msra.mxu0 0
  %1184 = vmatprep.subr.bf16.mxu0 0
  %1185 = vmatpush2.bf16.msra.mxu0 0
  %1186 = vmatprep.subr.bf16.mxu0 0
  %1187 = vmatpush2.bf16.msra.mxu0 0
  %1188 = vmatprep.subr.bf16.mxu0 0
  %1189 = vmatpush2.bf16.msra.mxu0 0
  %1190 = vmatprep.subr.bf16.mxu0 0
  %1191 = vmatpush2.bf16.msra.mxu0 0
  %1192 = vmatprep.subr.bf16.mxu0 0
  %1193 = vmatpush2.bf16.msra.mxu0 0
  %1194 = vmatprep.subr.bf16.mxu0 0
  %1195 = vmatpush2.bf16.msra.mxu0 0
  %1196 = vmatprep.subr.bf16.mxu0 0
  %1197 = vmatpush2.bf16.msra.mxu0 0
  %1198 = vmatprep.mubr.bf16.mxu0 0
  %1199 = vmatmul.mubr.bf16.gmra.mxu0 %v1161
  %v1200 = vpop.f32.mrf.mxu0
  %v1201 = vadd.f32 %v1079, %v1200
  %v1202 = vpop.f32.mrf.mxu0
  %v1203 = vadd.f32 %v1081, %v1202
  %v1204 = vpop.f32.mrf.mxu0
  %v1205 = vadd.f32 %v1083, %v1204
  %v1206 = vpop.f32.mrf.mxu0
  %v1207 = vadd.f32 %v1085, %v1206
  %1208 = vmatprep.mubr.bf16.mxu0 0
  %1209 = vmatmul.mubr.bf16.gmra.mxu0 %v1164
  %v1210 = vpop.f32.mrf.mxu0
  %v1211 = vadd.f32 %v1089, %v1210
  %v1212 = vpop.f32.mrf.mxu0
  %v1213 = vadd.f32 %v1091, %v1212
  %v1214 = vpop.f32.mrf.mxu0
  %v1215 = vadd.f32 %v1093, %v1214
  %v1216 = vpop.f32.mrf.mxu0
  %v1217 = vadd.f32 %v1095, %v1216
  %1218 = vdwg.mxu0
  %1219 = vmatprep.subr.bf16.mxu0 0
  %1220 = vmatpush1.bf16.msra.mxu0 0
  %1221 = vmatprep.subr.bf16.mxu0 0
  %1222 = vmatpush1.bf16.msra.mxu0 0
  %1223 = vmatprep.subr.bf16.mxu0 0
  %1224 = vmatpush1.bf16.msra.mxu0 0
  %1225 = vmatprep.subr.bf16.mxu0 0
  %1226 = vmatpush1.bf16.msra.mxu0 0
  %1227 = vmatprep.subr.bf16.mxu0 0
  %1228 = vmatpush1.bf16.msra.mxu0 0
  %1229 = vmatprep.subr.bf16.mxu0 0
  %1230 = vmatpush1.bf16.msra.mxu0 0
  %1231 = vmatprep.subr.bf16.mxu0 %v941
  %1232 = vmatpush1.bf16.msra.mxu0 %v940
  %1233 = vmatprep.subr.bf16.mxu0 %v937
  %1234 = vmatpush1.bf16.msra.mxu0 %v936
  %1235 = vmatprep.subr.bf16.mxu0 0
  %1236 = vmatpush2.bf16.msra.mxu0 0
  %1237 = vmatprep.subr.bf16.mxu0 0
  %1238 = vmatpush2.bf16.msra.mxu0 0
  %1239 = vmatprep.subr.bf16.mxu0 0
  %1240 = vmatpush2.bf16.msra.mxu0 0
  %1241 = vmatprep.subr.bf16.mxu0 0
  %1242 = vmatpush2.bf16.msra.mxu0 0
  %1243 = vmatprep.subr.bf16.mxu0 0
  %1244 = vmatpush2.bf16.msra.mxu0 0
  %1245 = vmatprep.subr.bf16.mxu0 0
  %1246 = vmatpush2.bf16.msra.mxu0 0
  %1247 = vmatprep.subr.bf16.mxu0 0
  %1248 = vmatpush2.bf16.msra.mxu0 0
  %1249 = vmatprep.subr.bf16.mxu0 0
  %1250 = vmatpush2.bf16.msra.mxu0 0
  %1251 = vmatprep.mubr.bf16.mxu0 0
  %1252 = vmatmul.mubr.bf16.gmra.mxu0 %v1161
  %v1253 = vpop.f32.mrf.mxu0
  %v1254 = vadd.f32 %v1132, %v1253
  %v1255 = vpop.f32.mrf.mxu0
  %v1256 = vadd.f32 %v1134, %v1255
  %v1257 = vpop.f32.mrf.mxu0
  %v1258 = vadd.f32 %v1136, %v1257
  %v1259 = vpop.f32.mrf.mxu0
  %v1260 = vadd.f32 %v1138, %v1259
  %1261 = vmatprep.mubr.bf16.mxu0 0
  %1262 = vmatmul.mubr.bf16.gmra.mxu0 %v1164
  %v1263 = vpop.f32.mrf.mxu0
  %v1264 = vadd.f32 %v1142, %v1263
  %v1265 = vpop.f32.mrf.mxu0
  %v1266 = vadd.f32 %v1144, %v1265
  %v1267 = vpop.f32.mrf.mxu0
  %v1268 = vadd.f32 %v1146, %v1267
  %v1269 = vpop.f32.mrf.mxu0
  %v1270 = vadd.f32 %v1148, %v1269
  %1271 = vdwg.mxu0
  %1272 = vrot.lane.b32.xlu0 %v842, 15
  %v1273 = vpop.permute.xlu0 %1272
  %1274 = vrot.lane.b32.xlu0 %v846, 15
  %v1275 = vpop.permute.xlu0 %1274
  %1276 = vrot.lane.b32.xlu0 %v850, 15
  %v1277 = vpop.permute.xlu0 %1276
  %1278 = vrot.lane.b32.xlu0 %v854, 15
  %v1279 = vpop.permute.xlu0 %1278
  %1280 = vrot.lane.b32.xlu0 %v843, 15
  %v1281 = vpop.permute.xlu0 %1280
  %1282 = vrot.lane.b32.xlu0 %v847, 15
  %v1283 = vpop.permute.xlu0 %1282
  %1284 = vrot.lane.b32.xlu0 %v851, 15
  %v1285 = vpop.permute.xlu0 %1284
  %1286 = vrot.lane.b32.xlu0 %v855, 15
  %v1287 = vpop.permute.xlu0 %1286
  %1288 = vrot.lane.b32.xlu0 %v844, 15
  %v1289 = vpop.permute.xlu0 %1288
  %1290 = vrot.lane.b32.xlu0 %v848, 15
  %v1291 = vpop.permute.xlu0 %1290
  %1292 = vrot.lane.b32.xlu0 %v852, 15
  %v1293 = vpop.permute.xlu0 %1292
  %1294 = vrot.lane.b32.xlu0 %v856, 15
  %v1295 = vpop.permute.xlu0 %1294
  %1296 = vrot.lane.b32.xlu0 %v845, 15
  %v1297 = vpop.permute.xlu0 %1296
  %1298 = vrot.lane.b32.xlu0 %v849, 15
  %v1299 = vpop.permute.xlu0 %1298
  %1300 = vrot.lane.b32.xlu0 %v853, 15
  %v1301 = vpop.permute.xlu0 %1300
  %1302 = vrot.lane.b32.xlu0 %v857, 15
  %v1303 = vpop.permute.xlu0 %1302
  %v1304 = vsel %vm276, %v1289, %v1297
  %v1305 = vsel %vm276, %v1291, %v1299
  %v1306 = vsel %vm276, %v1293, %v1301
  %v1307 = vsel %vm276, %v1295, %v1303
  %v1308 = vsel %vm276, %v1281, %v1289
  %v1309 = vsel %vm276, %v1283, %v1291
  %v1310 = vsel %vm276, %v1285, %v1293
  %v1311 = vsel %vm276, %v1287, %v1295
  %v1312 = vsel %vm276, %v1273, %v1281
  %v1313 = vsel %vm276, %v1275, %v1283
  %v1314 = vsel %vm276, %v1277, %v1285
  %v1315 = vsel %vm276, %v1279, %v1287
  %v1316 = vsel %vm276, %v1297, %v1273
  %v1317 = vsel %vm276, %v1299, %v1275
  %v1318 = vsel %vm276, %v1301, %v1277
  %v1319 = vsel %vm276, %v1303, %v1279
  %v1320 = vsel %vm64, 1, 0
  %v1321 = vsel %vm65, 1, 0
  %v1322 = vsel %vm66, 1, 0
  %v1323 = vsel %vm67, 1, 0
  %vm1324 = vcmp.eq.s32.totalorder %v1320, 1
  %vm1325 = vcmp.eq.s32.totalorder %v1321, 1
  %vm1326 = vcmp.eq.s32.totalorder %v1322, 1
  %vm1327 = vcmp.eq.s32.totalorder %v1323, 1
  %v1328 = vsel %vm1324, %v1316, 0.0
  %v1329 = vsel %vm1325, %v1312, 0.0
  %v1330 = vsel %vm1326, %v1308, 0.0
  %v1331 = vsel %vm1327, %v1304, 0.0
  %v1332 = vsel %vm1324, %v1317, 0.0
  %v1333 = vsel %vm1325, %v1313, 0.0
  %v1334 = vsel %vm1326, %v1309, 0.0
  %v1335 = vsel %vm1327, %v1305, 0.0
  %v1336 = vsel %vm1324, %v1318, 0.0
  %v1337 = vsel %vm1325, %v1314, 0.0
  %v1338 = vsel %vm1326, %v1310, 0.0
  %v1339 = vsel %vm1327, %v1306, 0.0
  %v1340 = vsel %vm1324, %v1319, 0.0
  %v1341 = vsel %vm1325, %v1315, 0.0
  %v1342 = vsel %vm1326, %v1311, 0.0
  %v1343 = vsel %vm1327, %v1307, 0.0
  %s1344 = scalar_lea.vmem %s3, 32
  %v1345 = vld [vmem:[%s1344] sm:$0xf]
  %v1346 = vld [vmem:[%s1344 + $0x4] sm:$0xf]
  %v1347 = vld [vmem:[%s1344 + $0x8] sm:$0xf]
  %v1348 = vld [vmem:[%s1344 + $0xc] sm:$0xf]
  %v1349 = vpack.c.bf16 %v1332, %v1328
  %v1350 = vpack.c.bf16 %v1333, %v1329
  %v1351 = vpack.c.bf16 %v1334, %v1330
  %v1352 = vpack.c.bf16 %v1335, %v1331
  %v1353 = vpack.c.bf16 %v1340, %v1336
  %v1354 = vpack.c.bf16 %v1341, %v1337
  %v1355 = vpack.c.bf16 %v1342, %v1338
  %v1356 = vpack.c.bf16 %v1343, %v1339
  %v1361 = vunpack.c.l.b16 %v1345
  %v1362 = vunpack.c.l.b16 %v1346
  %v1363 = vunpack.c.l.b16 %v1347
  %v1364 = vunpack.c.l.b16 %v1348
  %v1365 = vpack.c.b16 %v1362, %v1361
  %v1366 = vpack.c.b16 %v1364, %v1363
  %v1368 = vsel %vm1037, %v1365, 0
  %v1371 = vsel %vm1037, %v1366, 0
  %1373 = vmatprep.subr.bf16.mxu0 0
  %1374 = vmatpush1.bf16.msra.mxu0 0
  %1375 = vmatprep.subr.bf16.mxu0 0
  %1376 = vmatpush1.bf16.msra.mxu0 0
  %1377 = vmatprep.subr.bf16.mxu0 0
  %1378 = vmatpush1.bf16.msra.mxu0 0
  %1379 = vmatprep.subr.bf16.mxu0 0
  %1380 = vmatpush1.bf16.msra.mxu0 0
  %1381 = vmatprep.subr.bf16.mxu0 0
  %1382 = vmatpush1.bf16.msra.mxu0 0
  %1383 = vmatprep.subr.bf16.mxu0 0
  %1384 = vmatpush1.bf16.msra.mxu0 0
  %1385 = vmatprep.subr.bf16.mxu0 %v1354
  %1386 = vmatpush1.bf16.msra.mxu0 %v1353
  %1387 = vmatprep.subr.bf16.mxu0 %v1350
  %1388 = vmatpush1.bf16.msra.mxu0 %v1349
  %1389 = vmatprep.subr.bf16.mxu0 0
  %1390 = vmatpush2.bf16.msra.mxu0 0
  %1391 = vmatprep.subr.bf16.mxu0 0
  %1392 = vmatpush2.bf16.msra.mxu0 0
  %1393 = vmatprep.subr.bf16.mxu0 0
  %1394 = vmatpush2.bf16.msra.mxu0 0
  %1395 = vmatprep.subr.bf16.mxu0 0
  %1396 = vmatpush2.bf16.msra.mxu0 0
  %1397 = vmatprep.subr.bf16.mxu0 0
  %1398 = vmatpush2.bf16.msra.mxu0 0
  %1399 = vmatprep.subr.bf16.mxu0 0
  %1400 = vmatpush2.bf16.msra.mxu0 0
  %1401 = vmatprep.subr.bf16.mxu0 0
  %1402 = vmatpush2.bf16.msra.mxu0 0
  %1403 = vmatprep.subr.bf16.mxu0 0
  %1404 = vmatpush2.bf16.msra.mxu0 0
  %1405 = vmatprep.mubr.bf16.mxu0 0
  %1406 = vmatmul.mubr.bf16.gmra.mxu0 %v1368
  %v1407 = vpop.f32.mrf.mxu0
  %v1408 = vadd.f32 0.0, %v1407
  %v1409 = vpop.f32.mrf.mxu0
  %v1410 = vadd.f32 0.0, %v1409
  %v1411 = vpop.f32.mrf.mxu0
  %v1412 = vadd.f32 0.0, %v1411
  %v1413 = vpop.f32.mrf.mxu0
  %v1414 = vadd.f32 0.0, %v1413
  %1415 = vmatprep.mubr.bf16.mxu0 0
  %1416 = vmatmul.mubr.bf16.gmra.mxu0 %v1371
  %v1417 = vpop.f32.mrf.mxu0
  %v1418 = vadd.f32 0.0, %v1417
  %v1419 = vpop.f32.mrf.mxu0
  %v1420 = vadd.f32 0.0, %v1419
  %v1421 = vpop.f32.mrf.mxu0
  %v1422 = vadd.f32 0.0, %v1421
  %v1423 = vpop.f32.mrf.mxu0
  %v1424 = vadd.f32 0.0, %v1423
  %1425 = vdwg.mxu0
  %1426 = vmatprep.subr.bf16.mxu0 0
  %1427 = vmatpush1.bf16.msra.mxu0 0
  %1428 = vmatprep.subr.bf16.mxu0 0
  %1429 = vmatpush1.bf16.msra.mxu0 0
  %1430 = vmatprep.subr.bf16.mxu0 0
  %1431 = vmatpush1.bf16.msra.mxu0 0
  %1432 = vmatprep.subr.bf16.mxu0 0
  %1433 = vmatpush1.bf16.msra.mxu0 0
  %1434 = vmatprep.subr.bf16.mxu0 0
  %1435 = vmatpush1.bf16.msra.mxu0 0
  %1436 = vmatprep.subr.bf16.mxu0 0
  %1437 = vmatpush1.bf16.msra.mxu0 0
  %1438 = vmatprep.subr.bf16.mxu0 %v1356
  %1439 = vmatpush1.bf16.msra.mxu0 %v1355
  %1440 = vmatprep.subr.bf16.mxu0 %v1352
  %1441 = vmatpush1.bf16.msra.mxu0 %v1351
  %1442 = vmatprep.subr.bf16.mxu0 0
  %1443 = vmatpush2.bf16.msra.mxu0 0
  %1444 = vmatprep.subr.bf16.mxu0 0
  %1445 = vmatpush2.bf16.msra.mxu0 0
  %1446 = vmatprep.subr.bf16.mxu0 0
  %1447 = vmatpush2.bf16.msra.mxu0 0
  %1448 = vmatprep.subr.bf16.mxu0 0
  %1449 = vmatpush2.bf16.msra.mxu0 0
  %1450 = vmatprep.subr.bf16.mxu0 0
  %1451 = vmatpush2.bf16.msra.mxu0 0
  %1452 = vmatprep.subr.bf16.mxu0 0
  %1453 = vmatpush2.bf16.msra.mxu0 0
  %1454 = vmatprep.subr.bf16.mxu0 0
  %1455 = vmatpush2.bf16.msra.mxu0 0
  %1456 = vmatprep.subr.bf16.mxu0 0
  %1457 = vmatpush2.bf16.msra.mxu0 0
  %1458 = vmatprep.mubr.bf16.mxu0 0
  %1459 = vmatmul.mubr.bf16.gmra.mxu0 %v1368
  %v1460 = vpop.f32.mrf.mxu0
  %v1461 = vadd.f32 0.0, %v1460
  %v1462 = vpop.f32.mrf.mxu0
  %v1463 = vadd.f32 0.0, %v1462
  %v1464 = vpop.f32.mrf.mxu0
  %v1465 = vadd.f32 0.0, %v1464
  %v1466 = vpop.f32.mrf.mxu0
  %v1467 = vadd.f32 0.0, %v1466
  %1468 = vmatprep.mubr.bf16.mxu0 0
  %1469 = vmatmul.mubr.bf16.gmra.mxu0 %v1371
  %v1470 = vpop.f32.mrf.mxu0
  %v1471 = vadd.f32 0.0, %v1470
  %v1472 = vpop.f32.mrf.mxu0
  %v1473 = vadd.f32 0.0, %v1472
  %v1474 = vpop.f32.mrf.mxu0
  %v1475 = vadd.f32 0.0, %v1474
  %v1476 = vpop.f32.mrf.mxu0
  %v1477 = vadd.f32 0.0, %v1476
  %1478 = vdwg.mxu0
  %v1479 = vadd.f32 %v1201, %v1408
  %v1480 = vadd.f32 %v1203, %v1410
  %v1481 = vadd.f32 %v1254, %v1461
  %v1482 = vadd.f32 %v1256, %v1463
  %v1483 = vadd.f32 %v1205, %v1412
  %v1484 = vadd.f32 %v1207, %v1414
  %v1485 = vadd.f32 %v1258, %v1465
  %v1486 = vadd.f32 %v1260, %v1467
  %v1487 = vadd.f32 %v1211, %v1418
  %v1488 = vadd.f32 %v1213, %v1420
  %v1489 = vadd.f32 %v1264, %v1471
  %v1490 = vadd.f32 %v1266, %v1473
  %v1491 = vadd.f32 %v1215, %v1422
  %v1492 = vadd.f32 %v1217, %v1424
  %v1493 = vadd.f32 %v1268, %v1475
  %v1494 = vadd.f32 %v1270, %v1477
  %1495 = vrot.lane.b32.xlu0 %v842, 1
  %v1496 = vpop.permute.xlu0 %1495
  %1497 = vrot.lane.b32.xlu0 %v846, 1
  %v1498 = vpop.permute.xlu0 %1497
  %1499 = vrot.lane.b32.xlu0 %v850, 1
  %v1500 = vpop.permute.xlu0 %1499
  %1501 = vrot.lane.b32.xlu0 %v854, 1
  %v1502 = vpop.permute.xlu0 %1501
  %1503 = vrot.lane.b32.xlu0 %v843, 1
  %v1504 = vpop.permute.xlu0 %1503
  %1505 = vrot.lane.b32.xlu0 %v847, 1
  %v1506 = vpop.permute.xlu0 %1505
  %1507 = vrot.lane.b32.xlu0 %v851, 1
  %v1508 = vpop.permute.xlu0 %1507
  %1509 = vrot.lane.b32.xlu0 %v855, 1
  %v1510 = vpop.permute.xlu0 %1509
  %1511 = vrot.lane.b32.xlu0 %v844, 1
  %v1512 = vpop.permute.xlu0 %1511
  %1513 = vrot.lane.b32.xlu0 %v848, 1
  %v1514 = vpop.permute.xlu0 %1513
  %1515 = vrot.lane.b32.xlu0 %v852, 1
  %v1516 = vpop.permute.xlu0 %1515
  %1517 = vrot.lane.b32.xlu0 %v856, 1
  %v1518 = vpop.permute.xlu0 %1517
  %1519 = vrot.lane.b32.xlu0 %v845, 1
  %v1520 = vpop.permute.xlu0 %1519
  %1521 = vrot.lane.b32.xlu0 %v849, 1
  %v1522 = vpop.permute.xlu0 %1521
  %1523 = vrot.lane.b32.xlu0 %v853, 1
  %v1524 = vpop.permute.xlu0 %1523
  %1525 = vrot.lane.b32.xlu0 %v857, 1
  %v1526 = vpop.permute.xlu0 %1525
  %v1527 = vsel %vm357, %v1512, %v1520
  %v1528 = vsel %vm357, %v1514, %v1522
  %v1529 = vsel %vm357, %v1516, %v1524
  %v1530 = vsel %vm357, %v1518, %v1526
  %v1531 = vsel %vm357, %v1504, %v1512
  %v1532 = vsel %vm357, %v1506, %v1514
  %v1533 = vsel %vm357, %v1508, %v1516
  %v1534 = vsel %vm357, %v1510, %v1518
  %v1535 = vsel %vm357, %v1496, %v1504
  %v1536 = vsel %vm357, %v1498, %v1506
  %v1537 = vsel %vm357, %v1500, %v1508
  %v1538 = vsel %vm357, %v1502, %v1510
  %v1539 = vsel %vm357, %v1520, %v1496
  %v1540 = vsel %vm357, %v1522, %v1498
  %v1541 = vsel %vm357, %v1524, %v1500
  %v1542 = vsel %vm357, %v1526, %v1502
  %v1543 = vsel %vm44, 1, 0
  %v1544 = vsel %vm45, 1, 0
  %v1545 = vsel %vm46, 1, 0
  %v1546 = vsel %vm47, 1, 0
  %vm1547 = vcmp.eq.s32.totalorder %v1543, 1
  %vm1548 = vcmp.eq.s32.totalorder %v1544, 1
  %vm1549 = vcmp.eq.s32.totalorder %v1545, 1
  %vm1550 = vcmp.eq.s32.totalorder %v1546, 1
  %v1551 = vsel %vm1547, %v1539, 0.0
  %v1552 = vsel %vm1548, %v1535, 0.0
  %v1553 = vsel %vm1549, %v1531, 0.0
  %v1554 = vsel %vm1550, %v1527, 0.0
  %v1555 = vsel %vm1547, %v1540, 0.0
  %v1556 = vsel %vm1548, %v1536, 0.0
  %v1557 = vsel %vm1549, %v1532, 0.0
  %v1558 = vsel %vm1550, %v1528, 0.0
  %v1559 = vsel %vm1547, %v1541, 0.0
  %v1560 = vsel %vm1548, %v1537, 0.0
  %v1561 = vsel %vm1549, %v1533, 0.0
  %v1562 = vsel %vm1550, %v1529, 0.0
  %v1563 = vsel %vm1547, %v1542, 0.0
  %v1564 = vsel %vm1548, %v1538, 0.0
  %v1565 = vsel %vm1549, %v1534, 0.0
  %v1566 = vsel %vm1550, %v1530, 0.0
  %s1567 = scalar_lea.vmem %s3, 48
  %v1568 = vld [vmem:[%s1567] sm:$0xf]
  %v1569 = vld [vmem:[%s1567 + $0x4] sm:$0xf]
  %v1570 = vld [vmem:[%s1567 + $0x8] sm:$0xf]
  %v1571 = vld [vmem:[%s1567 + $0xc] sm:$0xf]
  %v1572 = vpack.c.bf16 %v1555, %v1551
  %v1573 = vpack.c.bf16 %v1556, %v1552
  %v1574 = vpack.c.bf16 %v1557, %v1553
  %v1575 = vpack.c.bf16 %v1558, %v1554
  %v1576 = vpack.c.bf16 %v1563, %v1559
  %v1577 = vpack.c.bf16 %v1564, %v1560
  %v1578 = vpack.c.bf16 %v1565, %v1561
  %v1579 = vpack.c.bf16 %v1566, %v1562
  %v1584 = vunpack.c.l.b16 %v1568
  %v1585 = vunpack.c.l.b16 %v1569
  %v1586 = vunpack.c.l.b16 %v1570
  %v1587 = vunpack.c.l.b16 %v1571
  %v1588 = vpack.c.b16 %v1585, %v1584
  %v1589 = vpack.c.b16 %v1587, %v1586
  %v1591 = vsel %vm1037, %v1588, 0
  %v1594 = vsel %vm1037, %v1589, 0
  %1596 = vmatprep.subr.bf16.mxu0 0
  %1597 = vmatpush1.bf16.msra.mxu0 0
  %1598 = vmatprep.subr.bf16.mxu0 0
  %1599 = vmatpush1.bf16.msra.mxu0 0
  %1600 = vmatprep.subr.bf16.mxu0 0
  %1601 = vmatpush1.bf16.msra.mxu0 0
  %1602 = vmatprep.subr.bf16.mxu0 0
  %1603 = vmatpush1.bf16.msra.mxu0 0
  %1604 = vmatprep.subr.bf16.mxu0 0
  %1605 = vmatpush1.bf16.msra.mxu0 0
  %1606 = vmatprep.subr.bf16.mxu0 0
  %1607 = vmatpush1.bf16.msra.mxu0 0
  %1608 = vmatprep.subr.bf16.mxu0 %v1577
  %1609 = vmatpush1.bf16.msra.mxu0 %v1576
  %1610 = vmatprep.subr.bf16.mxu0 %v1573
  %1611 = vmatpush1.bf16.msra.mxu0 %v1572
  %1612 = vmatprep.subr.bf16.mxu0 0
  %1613 = vmatpush2.bf16.msra.mxu0 0
  %1614 = vmatprep.subr.bf16.mxu0 0
  %1615 = vmatpush2.bf16.msra.mxu0 0
  %1616 = vmatprep.subr.bf16.mxu0 0
  %1617 = vmatpush2.bf16.msra.mxu0 0
  %1618 = vmatprep.subr.bf16.mxu0 0
  %1619 = vmatpush2.bf16.msra.mxu0 0
  %1620 = vmatprep.subr.bf16.mxu0 0
  %1621 = vmatpush2.bf16.msra.mxu0 0
  %1622 = vmatprep.subr.bf16.mxu0 0
  %1623 = vmatpush2.bf16.msra.mxu0 0
  %1624 = vmatprep.subr.bf16.mxu0 0
  %1625 = vmatpush2.bf16.msra.mxu0 0
  %1626 = vmatprep.subr.bf16.mxu0 0
  %1627 = vmatpush2.bf16.msra.mxu0 0
  %1628 = vmatprep.mubr.bf16.mxu0 0
  %1629 = vmatmul.mubr.bf16.gmra.mxu0 %v1591
  %v1630 = vpop.f32.mrf.mxu0
  %v1631 = vadd.f32 0.0, %v1630
  %v1632 = vpop.f32.mrf.mxu0
  %v1633 = vadd.f32 0.0, %v1632
  %v1634 = vpop.f32.mrf.mxu0
  %v1635 = vadd.f32 0.0, %v1634
  %v1636 = vpop.f32.mrf.mxu0
  %v1637 = vadd.f32 0.0, %v1636
  %1638 = vmatprep.mubr.bf16.mxu0 0
  %1639 = vmatmul.mubr.bf16.gmra.mxu0 %v1594
  %v1640 = vpop.f32.mrf.mxu0
  %v1641 = vadd.f32 0.0, %v1640
  %v1642 = vpop.f32.mrf.mxu0
  %v1643 = vadd.f32 0.0, %v1642
  %v1644 = vpop.f32.mrf.mxu0
  %v1645 = vadd.f32 0.0, %v1644
  %v1646 = vpop.f32.mrf.mxu0
  %v1647 = vadd.f32 0.0, %v1646
  %1648 = vdwg.mxu0
  %1649 = vmatprep.subr.bf16.mxu0 0
  %1650 = vmatpush1.bf16.msra.mxu0 0
  %1651 = vmatprep.subr.bf16.mxu0 0
  %1652 = vmatpush1.bf16.msra.mxu0 0
  %1653 = vmatprep.subr.bf16.mxu0 0
  %1654 = vmatpush1.bf16.msra.mxu0 0
  %1655 = vmatprep.subr.bf16.mxu0 0
  %1656 = vmatpush1.bf16.msra.mxu0 0
  %1657 = vmatprep.subr.bf16.mxu0 0
  %1658 = vmatpush1.bf16.msra.mxu0 0
  %1659 = vmatprep.subr.bf16.mxu0 0
  %1660 = vmatpush1.bf16.msra.mxu0 0
  %1661 = vmatprep.subr.bf16.mxu0 %v1579
  %1662 = vmatpush1.bf16.msra.mxu0 %v1578
  %1663 = vmatprep.subr.bf16.mxu0 %v1575
  %1664 = vmatpush1.bf16.msra.mxu0 %v1574
  %1665 = vmatprep.subr.bf16.mxu0 0
  %1666 = vmatpush2.bf16.msra.mxu0 0
  %1667 = vmatprep.subr.bf16.mxu0 0
  %1668 = vmatpush2.bf16.msra.mxu0 0
  %1669 = vmatprep.subr.bf16.mxu0 0
  %1670 = vmatpush2.bf16.msra.mxu0 0
  %1671 = vmatprep.subr.bf16.mxu0 0
  %1672 = vmatpush2.bf16.msra.mxu0 0
  %1673 = vmatprep.subr.bf16.mxu0 0
  %1674 = vmatpush2.bf16.msra.mxu0 0
  %1675 = vmatprep.subr.bf16.mxu0 0
  %1676 = vmatpush2.bf16.msra.mxu0 0
  %1677 = vmatprep.subr.bf16.mxu0 0
  %1678 = vmatpush2.bf16.msra.mxu0 0
  %1679 = vmatprep.subr.bf16.mxu0 0
  %1680 = vmatpush2.bf16.msra.mxu0 0
  %1681 = vmatprep.mubr.bf16.mxu0 0
  %1682 = vmatmul.mubr.bf16.gmra.mxu0 %v1591
  %v1683 = vpop.f32.mrf.mxu0
  %v1684 = vadd.f32 0.0, %v1683
  %v1685 = vpop.f32.mrf.mxu0
  %v1686 = vadd.f32 0.0, %v1685
  %v1687 = vpop.f32.mrf.mxu0
  %v1688 = vadd.f32 0.0, %v1687
  %v1689 = vpop.f32.mrf.mxu0
  %v1690 = vadd.f32 0.0, %v1689
  %1691 = vmatprep.mubr.bf16.mxu0 0
  %1692 = vmatmul.mubr.bf16.gmra.mxu0 %v1594
  %v1693 = vpop.f32.mrf.mxu0
  %v1694 = vadd.f32 0.0, %v1693
  %v1695 = vpop.f32.mrf.mxu0
  %v1696 = vadd.f32 0.0, %v1695
  %v1697 = vpop.f32.mrf.mxu0
  %v1698 = vadd.f32 0.0, %v1697
  %v1699 = vpop.f32.mrf.mxu0
  %v1700 = vadd.f32 0.0, %v1699
  %1701 = vdwg.mxu0
  %v1702 = vadd.f32 %v1479, %v1631
  %v1703 = vadd.f32 %v1480, %v1633
  %v1704 = vadd.f32 %v1481, %v1684
  %v1705 = vadd.f32 %v1482, %v1686
  %v1706 = vadd.f32 %v1483, %v1635
  %v1707 = vadd.f32 %v1484, %v1637
  %v1708 = vadd.f32 %v1485, %v1688
  %v1709 = vadd.f32 %v1486, %v1690
  %v1710 = vadd.f32 %v1487, %v1641
  %v1711 = vadd.f32 %v1488, %v1643
  %v1712 = vadd.f32 %v1489, %v1694
  %v1713 = vadd.f32 %v1490, %v1696
  %v1714 = vadd.f32 %v1491, %v1645
  %v1715 = vadd.f32 %v1492, %v1647
  %v1716 = vadd.f32 %v1493, %v1698
  %v1717 = vadd.f32 %v1494, %v1700
  %s1718 = scalar_lea.vmem %s3, 64
  %v1719 = vld [vmem:[%s1718] sm:$0xf]
  %v1720 = vld [vmem:[%s1718 + $0x4] sm:$0xf]
  %v1721 = vld [vmem:[%s1718 + $0x8] sm:$0xf]
  %v1722 = vld [vmem:[%s1718 + $0xc] sm:$0xf]
  %v1723 = vpack.c.bf16 %v846, %v842
  %v1724 = vpack.c.bf16 %v847, %v843
  %v1725 = vpack.c.bf16 %v848, %v844
  %v1726 = vpack.c.bf16 %v849, %v845
  %v1727 = vpack.c.bf16 %v854, %v850
  %v1728 = vpack.c.bf16 %v855, %v851
  %v1729 = vpack.c.bf16 %v856, %v852
  %v1730 = vpack.c.bf16 %v857, %v853
  %v1735 = vunpack.c.l.b16 %v1719
  %v1736 = vunpack.c.l.b16 %v1720
  %v1737 = vunpack.c.l.b16 %v1721
  %v1738 = vunpack.c.l.b16 %v1722
  %v1739 = vpack.c.b16 %v1736, %v1735
  %v1740 = vpack.c.b16 %v1738, %v1737
  %v1742 = vsel %vm1037, %v1739, 0
  %v1745 = vsel %vm1037, %v1740, 0
  %1747 = vmatprep.subr.bf16.mxu0 0
  %1748 = vmatpush1.bf16.msra.mxu0 0
  %1749 = vmatprep.subr.bf16.mxu0 0
  %1750 = vmatpush1.bf16.msra.mxu0 0
  %1751 = vmatprep.subr.bf16.mxu0 0
  %1752 = vmatpush1.bf16.msra.mxu0 0
  %1753 = vmatprep.subr.bf16.mxu0 0
  %1754 = vmatpush1.bf16.msra.mxu0 0
  %1755 = vmatprep.subr.bf16.mxu0 0
  %1756 = vmatpush1.bf16.msra.mxu0 0
  %1757 = vmatprep.subr.bf16.mxu0 0
  %1758 = vmatpush1.bf16.msra.mxu0 0
  %1759 = vmatprep.subr.bf16.mxu0 %v1728
  %1760 = vmatpush1.bf16.msra.mxu0 %v1727
  %1761 = vmatprep.subr.bf16.mxu0 %v1724
  %1762 = vmatpush1.bf16.msra.mxu0 %v1723
  %1763 = vmatprep.subr.bf16.mxu0 0
  %1764 = vmatpush2.bf16.msra.mxu0 0
  %1765 = vmatprep.subr.bf16.mxu0 0
  %1766 = vmatpush2.bf16.msra.mxu0 0
  %1767 = vmatprep.subr.bf16.mxu0 0
  %1768 = vmatpush2.bf16.msra.mxu0 0
  %1769 = vmatprep.subr.bf16.mxu0 0
  %1770 = vmatpush2.bf16.msra.mxu0 0
  %1771 = vmatprep.subr.bf16.mxu0 0
  %1772 = vmatpush2.bf16.msra.mxu0 0
  %1773 = vmatprep.subr.bf16.mxu0 0
  %1774 = vmatpush2.bf16.msra.mxu0 0
  %1775 = vmatprep.subr.bf16.mxu0 0
  %1776 = vmatpush2.bf16.msra.mxu0 0
  %1777 = vmatprep.subr.bf16.mxu0 0
  %1778 = vmatpush2.bf16.msra.mxu0 0
  %1779 = vmatprep.mubr.bf16.mxu0 0
  %1780 = vmatmul.mubr.bf16.gmra.mxu0 %v1742
  %v1781 = vpop.f32.mrf.mxu0
  %v1782 = vadd.f32 0.0, %v1781
  %v1783 = vpop.f32.mrf.mxu0
  %v1784 = vadd.f32 0.0, %v1783
  %v1785 = vpop.f32.mrf.mxu0
  %v1786 = vadd.f32 0.0, %v1785
  %v1787 = vpop.f32.mrf.mxu0
  %v1788 = vadd.f32 0.0, %v1787
  %1789 = vmatprep.mubr.bf16.mxu0 0
  %1790 = vmatmul.mubr.bf16.gmra.mxu0 %v1745
  %v1791 = vpop.f32.mrf.mxu0
  %v1792 = vadd.f32 0.0, %v1791
  %v1793 = vpop.f32.mrf.mxu0
  %v1794 = vadd.f32 0.0, %v1793
  %v1795 = vpop.f32.mrf.mxu0
  %v1796 = vadd.f32 0.0, %v1795
  %v1797 = vpop.f32.mrf.mxu0
  %v1798 = vadd.f32 0.0, %v1797
  %1799 = vdwg.mxu0
  %1800 = vmatprep.subr.bf16.mxu0 0
  %1801 = vmatpush1.bf16.msra.mxu0 0
  %1802 = vmatprep.subr.bf16.mxu0 0
  %1803 = vmatpush1.bf16.msra.mxu0 0
  %1804 = vmatprep.subr.bf16.mxu0 0
  %1805 = vmatpush1.bf16.msra.mxu0 0
  %1806 = vmatprep.subr.bf16.mxu0 0
  %1807 = vmatpush1.bf16.msra.mxu0 0
  %1808 = vmatprep.subr.bf16.mxu0 0
  %1809 = vmatpush1.bf16.msra.mxu0 0
  %1810 = vmatprep.subr.bf16.mxu0 0
  %1811 = vmatpush1.bf16.msra.mxu0 0
  %1812 = vmatprep.subr.bf16.mxu0 %v1730
  %1813 = vmatpush1.bf16.msra.mxu0 %v1729
  %1814 = vmatprep.subr.bf16.mxu0 %v1726
  %1815 = vmatpush1.bf16.msra.mxu0 %v1725
  %1816 = vmatprep.subr.bf16.mxu0 0
  %1817 = vmatpush2.bf16.msra.mxu0 0
  %1818 = vmatprep.subr.bf16.mxu0 0
  %1819 = vmatpush2.bf16.msra.mxu0 0
  %1820 = vmatprep.subr.bf16.mxu0 0
  %1821 = vmatpush2.bf16.msra.mxu0 0
  %1822 = vmatprep.subr.bf16.mxu0 0
  %1823 = vmatpush2.bf16.msra.mxu0 0
  %1824 = vmatprep.subr.bf16.mxu0 0
  %1825 = vmatpush2.bf16.msra.mxu0 0
  %1826 = vmatprep.subr.bf16.mxu0 0
  %1827 = vmatpush2.bf16.msra.mxu0 0
  %1828 = vmatprep.subr.bf16.mxu0 0
  %1829 = vmatpush2.bf16.msra.mxu0 0
  %1830 = vmatprep.subr.bf16.mxu0 0
  %1831 = vmatpush2.bf16.msra.mxu0 0
  %1832 = vmatprep.mubr.bf16.mxu0 0
  %1833 = vmatmul.mubr.bf16.gmra.mxu0 %v1742
  %v1834 = vpop.f32.mrf.mxu0
  %v1835 = vadd.f32 0.0, %v1834
  %v1836 = vpop.f32.mrf.mxu0
  %v1837 = vadd.f32 0.0, %v1836
  %v1838 = vpop.f32.mrf.mxu0
  %v1839 = vadd.f32 0.0, %v1838
  %v1840 = vpop.f32.mrf.mxu0
  %v1841 = vadd.f32 0.0, %v1840
  %1842 = vmatprep.mubr.bf16.mxu0 0
  %1843 = vmatmul.mubr.bf16.gmra.mxu0 %v1745
  %v1844 = vpop.f32.mrf.mxu0
  %v1845 = vadd.f32 0.0, %v1844
  %v1846 = vpop.f32.mrf.mxu0
  %v1847 = vadd.f32 0.0, %v1846
  %v1848 = vpop.f32.mrf.mxu0
  %v1849 = vadd.f32 0.0, %v1848
  %v1850 = vpop.f32.mrf.mxu0
  %v1851 = vadd.f32 0.0, %v1850
  %1852 = vdwg.mxu0
  %v1853 = vadd.f32 %v1702, %v1782
  %v1854 = vadd.f32 %v1703, %v1784
  %v1855 = vadd.f32 %v1704, %v1835
  %v1856 = vadd.f32 %v1705, %v1837
  %v1857 = vadd.f32 %v1706, %v1786
  %v1858 = vadd.f32 %v1707, %v1788
  %v1859 = vadd.f32 %v1708, %v1839
  %v1860 = vadd.f32 %v1709, %v1841
  %v1861 = vadd.f32 %v1710, %v1792
  %v1862 = vadd.f32 %v1711, %v1794
  %v1863 = vadd.f32 %v1712, %v1845
  %v1864 = vadd.f32 %v1713, %v1847
  %v1865 = vadd.f32 %v1714, %v1796
  %v1866 = vadd.f32 %v1715, %v1798
  %v1867 = vadd.f32 %v1716, %v1849
  %v1868 = vadd.f32 %v1717, %v1851
  %1869 = vrot.lane.b32.xlu0 %v842, 127
  %v1870 = vpop.permute.xlu0 %1869
  %1871 = vrot.lane.b32.xlu0 %v846, 127
  %v1872 = vpop.permute.xlu0 %1871
  %1873 = vrot.lane.b32.xlu0 %v850, 127
  %v1874 = vpop.permute.xlu0 %1873
  %1875 = vrot.lane.b32.xlu0 %v854, 127
  %v1876 = vpop.permute.xlu0 %1875
  %1877 = vrot.lane.b32.xlu0 %v843, 127
  %v1878 = vpop.permute.xlu0 %1877
  %1879 = vrot.lane.b32.xlu0 %v847, 127
  %v1880 = vpop.permute.xlu0 %1879
  %1881 = vrot.lane.b32.xlu0 %v851, 127
  %v1882 = vpop.permute.xlu0 %1881
  %1883 = vrot.lane.b32.xlu0 %v855, 127
  %v1884 = vpop.permute.xlu0 %1883
  %1885 = vrot.lane.b32.xlu0 %v844, 127
  %v1886 = vpop.permute.xlu0 %1885
  %1887 = vrot.lane.b32.xlu0 %v848, 127
  %v1888 = vpop.permute.xlu0 %1887
  %1889 = vrot.lane.b32.xlu0 %v852, 127
  %v1890 = vpop.permute.xlu0 %1889
  %1891 = vrot.lane.b32.xlu0 %v856, 127
  %v1892 = vpop.permute.xlu0 %1891
  %1893 = vrot.lane.b32.xlu0 %v845, 127
  %v1894 = vpop.permute.xlu0 %1893
  %1895 = vrot.lane.b32.xlu0 %v849, 127
  %v1896 = vpop.permute.xlu0 %1895
  %1897 = vrot.lane.b32.xlu0 %v853, 127
  %v1898 = vpop.permute.xlu0 %1897
  %1899 = vrot.lane.b32.xlu0 %v857, 127
  %v1900 = vpop.permute.xlu0 %1899
  %v1901 = vsel %vm486, %v1886, %v1894
  %v1902 = vsel %vm486, %v1888, %v1896
  %v1903 = vsel %vm486, %v1890, %v1898
  %v1904 = vsel %vm486, %v1892, %v1900
  %v1905 = vsel %vm486, %v1878, %v1886
  %v1906 = vsel %vm486, %v1880, %v1888
  %v1907 = vsel %vm486, %v1882, %v1890
  %v1908 = vsel %vm486, %v1884, %v1892
  %v1909 = vsel %vm486, %v1870, %v1878
  %v1910 = vsel %vm486, %v1872, %v1880
  %v1911 = vsel %vm486, %v1874, %v1882
  %v1912 = vsel %vm486, %v1876, %v1884
  %v1913 = vsel %vm486, %v1894, %v1870
  %v1914 = vsel %vm486, %v1896, %v1872
  %v1915 = vsel %vm486, %v1898, %v1874
  %v1916 = vsel %vm486, %v1900, %v1876
  %v1917 = vsel %vm48, 1, 0
  %v1918 = vsel %vm49, 1, 0
  %v1919 = vsel %vm50, 1, 0
  %v1920 = vsel %vm51, 1, 0
  %vm1921 = vcmp.eq.s32.totalorder %v1917, 1
  %vm1922 = vcmp.eq.s32.totalorder %v1918, 1
  %vm1923 = vcmp.eq.s32.totalorder %v1919, 1
  %vm1924 = vcmp.eq.s32.totalorder %v1920, 1
  %v1925 = vsel %vm1921, %v1909, 0.0
  %v1926 = vsel %vm1922, %v1905, 0.0
  %v1927 = vsel %vm1923, %v1901, 0.0
  %v1928 = vsel %vm1924, %v1913, 0.0
  %v1929 = vsel %vm1921, %v1910, 0.0
  %v1930 = vsel %vm1922, %v1906, 0.0
  %v1931 = vsel %vm1923, %v1902, 0.0
  %v1932 = vsel %vm1924, %v1914, 0.0
  %v1933 = vsel %vm1921, %v1911, 0.0
  %v1934 = vsel %vm1922, %v1907, 0.0
  %v1935 = vsel %vm1923, %v1903, 0.0
  %v1936 = vsel %vm1924, %v1915, 0.0
  %v1937 = vsel %vm1921, %v1912, 0.0
  %v1938 = vsel %vm1922, %v1908, 0.0
  %v1939 = vsel %vm1923, %v1904, 0.0
  %v1940 = vsel %vm1924, %v1916, 0.0
  %s1941 = scalar_lea.vmem %s3, 80
  %v1942 = vld [vmem:[%s1941] sm:$0xf]
  %v1943 = vld [vmem:[%s1941 + $0x4] sm:$0xf]
  %v1944 = vld [vmem:[%s1941 + $0x8] sm:$0xf]
  %v1945 = vld [vmem:[%s1941 + $0xc] sm:$0xf]
  %v1946 = vpack.c.bf16 %v1929, %v1925
  %v1947 = vpack.c.bf16 %v1930, %v1926
  %v1948 = vpack.c.bf16 %v1931, %v1927
  %v1949 = vpack.c.bf16 %v1932, %v1928
  %v1950 = vpack.c.bf16 %v1937, %v1933
  %v1951 = vpack.c.bf16 %v1938, %v1934
  %v1952 = vpack.c.bf16 %v1939, %v1935
  %v1953 = vpack.c.bf16 %v1940, %v1936
  %v1958 = vunpack.c.l.b16 %v1942
  %v1959 = vunpack.c.l.b16 %v1943
  %v1960 = vunpack.c.l.b16 %v1944
  %v1961 = vunpack.c.l.b16 %v1945
  %v1962 = vpack.c.b16 %v1959, %v1958
  %v1963 = vpack.c.b16 %v1961, %v1960
  %v1965 = vsel %vm1037, %v1962, 0
  %v1968 = vsel %vm1037, %v1963, 0
  %1970 = vmatprep.subr.bf16.mxu0 0
  %1971 = vmatpush1.bf16.msra.mxu0 0
  %1972 = vmatprep.subr.bf16.mxu0 0
  %1973 = vmatpush1.bf16.msra.mxu0 0
  %1974 = vmatprep.subr.bf16.mxu0 0
  %1975 = vmatpush1.bf16.msra.mxu0 0
  %1976 = vmatprep.subr.bf16.mxu0 0
  %1977 = vmatpush1.bf16.msra.mxu0 0
  %1978 = vmatprep.subr.bf16.mxu0 0
  %1979 = vmatpush1.bf16.msra.mxu0 0
  %1980 = vmatprep.subr.bf16.mxu0 0
  %1981 = vmatpush1.bf16.msra.mxu0 0
  %1982 = vmatprep.subr.bf16.mxu0 %v1951
  %1983 = vmatpush1.bf16.msra.mxu0 %v1950
  %1984 = vmatprep.subr.bf16.mxu0 %v1947
  %1985 = vmatpush1.bf16.msra.mxu0 %v1946
  %1986 = vmatprep.subr.bf16.mxu0 0
  %1987 = vmatpush2.bf16.msra.mxu0 0
  %1988 = vmatprep.subr.bf16.mxu0 0
  %1989 = vmatpush2.bf16.msra.mxu0 0
  %1990 = vmatprep.subr.bf16.mxu0 0
  %1991 = vmatpush2.bf16.msra.mxu0 0
  %1992 = vmatprep.subr.bf16.mxu0 0
  %1993 = vmatpush2.bf16.msra.mxu0 0
  %1994 = vmatprep.subr.bf16.mxu0 0
  %1995 = vmatpush2.bf16.msra.mxu0 0
  %1996 = vmatprep.subr.bf16.mxu0 0
  %1997 = vmatpush2.bf16.msra.mxu0 0
  %1998 = vmatprep.subr.bf16.mxu0 0
  %1999 = vmatpush2.bf16.msra.mxu0 0
  %2000 = vmatprep.subr.bf16.mxu0 0
  %2001 = vmatpush2.bf16.msra.mxu0 0
  %2002 = vmatprep.mubr.bf16.mxu0 0
  %2003 = vmatmul.mubr.bf16.gmra.mxu0 %v1965
  %v2004 = vpop.f32.mrf.mxu0
  %v2005 = vadd.f32 0.0, %v2004
  %v2006 = vpop.f32.mrf.mxu0
  %v2007 = vadd.f32 0.0, %v2006
  %v2008 = vpop.f32.mrf.mxu0
  %v2009 = vadd.f32 0.0, %v2008
  %v2010 = vpop.f32.mrf.mxu0
  %v2011 = vadd.f32 0.0, %v2010
  %2012 = vmatprep.mubr.bf16.mxu0 0
  %2013 = vmatmul.mubr.bf16.gmra.mxu0 %v1968
  %v2014 = vpop.f32.mrf.mxu0
  %v2015 = vadd.f32 0.0, %v2014
  %v2016 = vpop.f32.mrf.mxu0
  %v2017 = vadd.f32 0.0, %v2016
  %v2018 = vpop.f32.mrf.mxu0
  %v2019 = vadd.f32 0.0, %v2018
  %v2020 = vpop.f32.mrf.mxu0
  %v2021 = vadd.f32 0.0, %v2020
  %2022 = vdwg.mxu0
  %2023 = vmatprep.subr.bf16.mxu0 0
  %2024 = vmatpush1.bf16.msra.mxu0 0
  %2025 = vmatprep.subr.bf16.mxu0 0
  %2026 = vmatpush1.bf16.msra.mxu0 0
  %2027 = vmatprep.subr.bf16.mxu0 0
  %2028 = vmatpush1.bf16.msra.mxu0 0
  %2029 = vmatprep.subr.bf16.mxu0 0
  %2030 = vmatpush1.bf16.msra.mxu0 0
  %2031 = vmatprep.subr.bf16.mxu0 0
  %2032 = vmatpush1.bf16.msra.mxu0 0
  %2033 = vmatprep.subr.bf16.mxu0 0
  %2034 = vmatpush1.bf16.msra.mxu0 0
  %2035 = vmatprep.subr.bf16.mxu0 %v1953
  %2036 = vmatpush1.bf16.msra.mxu0 %v1952
  %2037 = vmatprep.subr.bf16.mxu0 %v1949
  %2038 = vmatpush1.bf16.msra.mxu0 %v1948
  %2039 = vmatprep.subr.bf16.mxu0 0
  %2040 = vmatpush2.bf16.msra.mxu0 0
  %2041 = vmatprep.subr.bf16.mxu0 0
  %2042 = vmatpush2.bf16.msra.mxu0 0
  %2043 = vmatprep.subr.bf16.mxu0 0
  %2044 = vmatpush2.bf16.msra.mxu0 0
  %2045 = vmatprep.subr.bf16.mxu0 0
  %2046 = vmatpush2.bf16.msra.mxu0 0
  %2047 = vmatprep.subr.bf16.mxu0 0
  %2048 = vmatpush2.bf16.msra.mxu0 0
  %2049 = vmatprep.subr.bf16.mxu0 0
  %2050 = vmatpush2.bf16.msra.mxu0 0
  %2051 = vmatprep.subr.bf16.mxu0 0
  %2052 = vmatpush2.bf16.msra.mxu0 0
  %2053 = vmatprep.subr.bf16.mxu0 0
  %2054 = vmatpush2.bf16.msra.mxu0 0
  %2055 = vmatprep.mubr.bf16.mxu0 0
  %2056 = vmatmul.mubr.bf16.gmra.mxu0 %v1965
  %v2057 = vpop.f32.mrf.mxu0
  %v2058 = vadd.f32 0.0, %v2057
  %v2059 = vpop.f32.mrf.mxu0
  %v2060 = vadd.f32 0.0, %v2059
  %v2061 = vpop.f32.mrf.mxu0
  %v2062 = vadd.f32 0.0, %v2061
  %v2063 = vpop.f32.mrf.mxu0
  %v2064 = vadd.f32 0.0, %v2063
  %2065 = vmatprep.mubr.bf16.mxu0 0
  %2066 = vmatmul.mubr.bf16.gmra.mxu0 %v1968
  %v2067 = vpop.f32.mrf.mxu0
  %v2068 = vadd.f32 0.0, %v2067
  %v2069 = vpop.f32.mrf.mxu0
  %v2070 = vadd.f32 0.0, %v2069
  %v2071 = vpop.f32.mrf.mxu0
  %v2072 = vadd.f32 0.0, %v2071
  %v2073 = vpop.f32.mrf.mxu0
  %v2074 = vadd.f32 0.0, %v2073
  %2075 = vdwg.mxu0
  %v2076 = vadd.f32 %v1853, %v2005
  %v2077 = vadd.f32 %v1854, %v2007
  %v2078 = vadd.f32 %v1855, %v2058
  %v2079 = vadd.f32 %v1856, %v2060
  %v2080 = vadd.f32 %v1857, %v2009
  %v2081 = vadd.f32 %v1858, %v2011
  %v2082 = vadd.f32 %v1859, %v2062
  %v2083 = vadd.f32 %v1860, %v2064
  %v2084 = vadd.f32 %v1861, %v2015
  %v2085 = vadd.f32 %v1862, %v2017
  %v2086 = vadd.f32 %v1863, %v2068
  %v2087 = vadd.f32 %v1864, %v2070
  %v2088 = vadd.f32 %v1865, %v2019
  %v2089 = vadd.f32 %v1866, %v2021
  %v2090 = vadd.f32 %v1867, %v2072
  %v2091 = vadd.f32 %v1868, %v2074
  %2092 = vrot.lane.b32.xlu0 %v842, 113
  %v2093 = vpop.permute.xlu0 %2092
  %2094 = vrot.lane.b32.xlu0 %v846, 113
  %v2095 = vpop.permute.xlu0 %2094
  %2096 = vrot.lane.b32.xlu0 %v850, 113
  %v2097 = vpop.permute.xlu0 %2096
  %2098 = vrot.lane.b32.xlu0 %v854, 113
  %v2099 = vpop.permute.xlu0 %2098
  %2100 = vrot.lane.b32.xlu0 %v843, 113
  %v2101 = vpop.permute.xlu0 %2100
  %2102 = vrot.lane.b32.xlu0 %v847, 113
  %v2103 = vpop.permute.xlu0 %2102
  %2104 = vrot.lane.b32.xlu0 %v851, 113
  %v2105 = vpop.permute.xlu0 %2104
  %2106 = vrot.lane.b32.xlu0 %v855, 113
  %v2107 = vpop.permute.xlu0 %2106
  %2108 = vrot.lane.b32.xlu0 %v844, 113
  %v2109 = vpop.permute.xlu0 %2108
  %2110 = vrot.lane.b32.xlu0 %v848, 113
  %v2111 = vpop.permute.xlu0 %2110
  %2112 = vrot.lane.b32.xlu0 %v852, 113
  %v2113 = vpop.permute.xlu0 %2112
  %2114 = vrot.lane.b32.xlu0 %v856, 113
  %v2115 = vpop.permute.xlu0 %2114
  %2116 = vrot.lane.b32.xlu0 %v845, 113
  %v2117 = vpop.permute.xlu0 %2116
  %2118 = vrot.lane.b32.xlu0 %v849, 113
  %v2119 = vpop.permute.xlu0 %2118
  %2120 = vrot.lane.b32.xlu0 %v853, 113
  %v2121 = vpop.permute.xlu0 %2120
  %2122 = vrot.lane.b32.xlu0 %v857, 113
  %v2123 = vpop.permute.xlu0 %2122
  %v2124 = vsel %vm567, %v2109, %v2117
  %v2125 = vsel %vm567, %v2111, %v2119
  %v2126 = vsel %vm567, %v2113, %v2121
  %v2127 = vsel %vm567, %v2115, %v2123
  %v2128 = vsel %vm567, %v2101, %v2109
  %v2129 = vsel %vm567, %v2103, %v2111
  %v2130 = vsel %vm567, %v2105, %v2113
  %v2131 = vsel %vm567, %v2107, %v2115
  %v2132 = vsel %vm567, %v2093, %v2101
  %v2133 = vsel %vm567, %v2095, %v2103
  %v2134 = vsel %vm567, %v2097, %v2105
  %v2135 = vsel %vm567, %v2099, %v2107
  %v2136 = vsel %vm567, %v2117, %v2093
  %v2137 = vsel %vm567, %v2119, %v2095
  %v2138 = vsel %vm567, %v2121, %v2097
  %v2139 = vsel %vm567, %v2123, %v2099
  %v2140 = vsel %vm68, 1, 0
  %v2141 = vsel %vm69, 1, 0
  %v2142 = vsel %vm70, 1, 0
  %v2143 = vsel %vm71, 1, 0
  %vm2144 = vcmp.eq.s32.totalorder %v2140, 1
  %vm2145 = vcmp.eq.s32.totalorder %v2141, 1
  %vm2146 = vcmp.eq.s32.totalorder %v2142, 1
  %vm2147 = vcmp.eq.s32.totalorder %v2143, 1
  %v2148 = vsel %vm2144, %v2132, 0.0
  %v2149 = vsel %vm2145, %v2128, 0.0
  %v2150 = vsel %vm2146, %v2124, 0.0
  %v2151 = vsel %vm2147, %v2136, 0.0
  %v2152 = vsel %vm2144, %v2133, 0.0
  %v2153 = vsel %vm2145, %v2129, 0.0
  %v2154 = vsel %vm2146, %v2125, 0.0
  %v2155 = vsel %vm2147, %v2137, 0.0
  %v2156 = vsel %vm2144, %v2134, 0.0
  %v2157 = vsel %vm2145, %v2130, 0.0
  %v2158 = vsel %vm2146, %v2126, 0.0
  %v2159 = vsel %vm2147, %v2138, 0.0
  %v2160 = vsel %vm2144, %v2135, 0.0
  %v2161 = vsel %vm2145, %v2131, 0.0
  %v2162 = vsel %vm2146, %v2127, 0.0
  %v2163 = vsel %vm2147, %v2139, 0.0
  %s2164 = scalar_lea.vmem %s3, 96
  %v2165 = vld [vmem:[%s2164] sm:$0xf]
  %v2166 = vld [vmem:[%s2164 + $0x4] sm:$0xf]
  %v2167 = vld [vmem:[%s2164 + $0x8] sm:$0xf]
  %v2168 = vld [vmem:[%s2164 + $0xc] sm:$0xf]
  %v2169 = vpack.c.bf16 %v2152, %v2148
  %v2170 = vpack.c.bf16 %v2153, %v2149
  %v2171 = vpack.c.bf16 %v2154, %v2150
  %v2172 = vpack.c.bf16 %v2155, %v2151
  %v2173 = vpack.c.bf16 %v2160, %v2156
  %v2174 = vpack.c.bf16 %v2161, %v2157
  %v2175 = vpack.c.bf16 %v2162, %v2158
  %v2176 = vpack.c.bf16 %v2163, %v2159
  %v2181 = vunpack.c.l.b16 %v2165
  %v2182 = vunpack.c.l.b16 %v2166
  %v2183 = vunpack.c.l.b16 %v2167
  %v2184 = vunpack.c.l.b16 %v2168
  %v2185 = vpack.c.b16 %v2182, %v2181
  %v2186 = vpack.c.b16 %v2184, %v2183
  %v2188 = vsel %vm1037, %v2185, 0
  %v2191 = vsel %vm1037, %v2186, 0
  %2193 = vmatprep.subr.bf16.mxu0 0
  %2194 = vmatpush1.bf16.msra.mxu0 0
  %2195 = vmatprep.subr.bf16.mxu0 0
  %2196 = vmatpush1.bf16.msra.mxu0 0
  %2197 = vmatprep.subr.bf16.mxu0 0
  %2198 = vmatpush1.bf16.msra.mxu0 0
  %2199 = vmatprep.subr.bf16.mxu0 0
  %2200 = vmatpush1.bf16.msra.mxu0 0
  %2201 = vmatprep.subr.bf16.mxu0 0
  %2202 = vmatpush1.bf16.msra.mxu0 0
  %2203 = vmatprep.subr.bf16.mxu0 0
  %2204 = vmatpush1.bf16.msra.mxu0 0
  %2205 = vmatprep.subr.bf16.mxu0 %v2174
  %2206 = vmatpush1.bf16.msra.mxu0 %v2173
  %2207 = vmatprep.subr.bf16.mxu0 %v2170
  %2208 = vmatpush1.bf16.msra.mxu0 %v2169
  %2209 = vmatprep.subr.bf16.mxu0 0
  %2210 = vmatpush2.bf16.msra.mxu0 0
  %2211 = vmatprep.subr.bf16.mxu0 0
  %2212 = vmatpush2.bf16.msra.mxu0 0
  %2213 = vmatprep.subr.bf16.mxu0 0
  %2214 = vmatpush2.bf16.msra.mxu0 0
  %2215 = vmatprep.subr.bf16.mxu0 0
  %2216 = vmatpush2.bf16.msra.mxu0 0
  %2217 = vmatprep.subr.bf16.mxu0 0
  %2218 = vmatpush2.bf16.msra.mxu0 0
  %2219 = vmatprep.subr.bf16.mxu0 0
  %2220 = vmatpush2.bf16.msra.mxu0 0
  %2221 = vmatprep.subr.bf16.mxu0 0
  %2222 = vmatpush2.bf16.msra.mxu0 0
  %2223 = vmatprep.subr.bf16.mxu0 0
  %2224 = vmatpush2.bf16.msra.mxu0 0
  %2225 = vmatprep.mubr.bf16.mxu0 0
  %2226 = vmatmul.mubr.bf16.gmra.mxu0 %v2188
  %v2227 = vpop.f32.mrf.mxu0
  %v2228 = vadd.f32 0.0, %v2227
  %v2229 = vpop.f32.mrf.mxu0
  %v2230 = vadd.f32 0.0, %v2229
  %v2231 = vpop.f32.mrf.mxu0
  %v2232 = vadd.f32 0.0, %v2231
  %v2233 = vpop.f32.mrf.mxu0
  %v2234 = vadd.f32 0.0, %v2233
  %2235 = vmatprep.mubr.bf16.mxu0 0
  %2236 = vmatmul.mubr.bf16.gmra.mxu0 %v2191
  %v2237 = vpop.f32.mrf.mxu0
  %v2238 = vadd.f32 0.0, %v2237
  %v2239 = vpop.f32.mrf.mxu0
  %v2240 = vadd.f32 0.0, %v2239
  %v2241 = vpop.f32.mrf.mxu0
  %v2242 = vadd.f32 0.0, %v2241
  %v2243 = vpop.f32.mrf.mxu0
  %v2244 = vadd.f32 0.0, %v2243
  %2245 = vdwg.mxu0
  %2246 = vmatprep.subr.bf16.mxu0 0
  %2247 = vmatpush1.bf16.msra.mxu0 0
  %2248 = vmatprep.subr.bf16.mxu0 0
  %2249 = vmatpush1.bf16.msra.mxu0 0
  %2250 = vmatprep.subr.bf16.mxu0 0
  %2251 = vmatpush1.bf16.msra.mxu0 0
  %2252 = vmatprep.subr.bf16.mxu0 0
  %2253 = vmatpush1.bf16.msra.mxu0 0
  %2254 = vmatprep.subr.bf16.mxu0 0
  %2255 = vmatpush1.bf16.msra.mxu0 0
  %2256 = vmatprep.subr.bf16.mxu0 0
  %2257 = vmatpush1.bf16.msra.mxu0 0
  %2258 = vmatprep.subr.bf16.mxu0 %v2176
  %2259 = vmatpush1.bf16.msra.mxu0 %v2175
  %2260 = vmatprep.subr.bf16.mxu0 %v2172
  %2261 = vmatpush1.bf16.msra.mxu0 %v2171
  %2262 = vmatprep.subr.bf16.mxu0 0
  %2263 = vmatpush2.bf16.msra.mxu0 0
  %2264 = vmatprep.subr.bf16.mxu0 0
  %2265 = vmatpush2.bf16.msra.mxu0 0
  %2266 = vmatprep.subr.bf16.mxu0 0
  %2267 = vmatpush2.bf16.msra.mxu0 0
  %2268 = vmatprep.subr.bf16.mxu0 0
  %2269 = vmatpush2.bf16.msra.mxu0 0
  %2270 = vmatprep.subr.bf16.mxu0 0
  %2271 = vmatpush2.bf16.msra.mxu0 0
  %2272 = vmatprep.subr.bf16.mxu0 0
  %2273 = vmatpush2.bf16.msra.mxu0 0
  %2274 = vmatprep.subr.bf16.mxu0 0
  %2275 = vmatpush2.bf16.msra.mxu0 0
  %2276 = vmatprep.subr.bf16.mxu0 0
  %2277 = vmatpush2.bf16.msra.mxu0 0
  %2278 = vmatprep.mubr.bf16.mxu0 0
  %2279 = vmatmul.mubr.bf16.gmra.mxu0 %v2188
  %v2280 = vpop.f32.mrf.mxu0
  %v2281 = vadd.f32 0.0, %v2280
  %v2282 = vpop.f32.mrf.mxu0
  %v2283 = vadd.f32 0.0, %v2282
  %v2284 = vpop.f32.mrf.mxu0
  %v2285 = vadd.f32 0.0, %v2284
  %v2286 = vpop.f32.mrf.mxu0
  %v2287 = vadd.f32 0.0, %v2286
  %2288 = vmatprep.mubr.bf16.mxu0 0
  %2289 = vmatmul.mubr.bf16.gmra.mxu0 %v2191
  %v2290 = vpop.f32.mrf.mxu0
  %v2291 = vadd.f32 0.0, %v2290
  %v2292 = vpop.f32.mrf.mxu0
  %v2293 = vadd.f32 0.0, %v2292
  %v2294 = vpop.f32.mrf.mxu0
  %v2295 = vadd.f32 0.0, %v2294
  %v2296 = vpop.f32.mrf.mxu0
  %v2297 = vadd.f32 0.0, %v2296
  %2298 = vdwg.mxu0
  %v2299 = vadd.f32 %v2076, %v2228
  %v2300 = vadd.f32 %v2077, %v2230
  %v2301 = vadd.f32 %v2078, %v2281
  %v2302 = vadd.f32 %v2079, %v2283
  %v2303 = vadd.f32 %v2080, %v2232
  %v2304 = vadd.f32 %v2081, %v2234
  %v2305 = vadd.f32 %v2082, %v2285
  %v2306 = vadd.f32 %v2083, %v2287
  %v2307 = vadd.f32 %v2084, %v2238
  %v2308 = vadd.f32 %v2085, %v2240
  %v2309 = vadd.f32 %v2086, %v2291
  %v2310 = vadd.f32 %v2087, %v2293
  %v2311 = vadd.f32 %v2088, %v2242
  %v2312 = vadd.f32 %v2089, %v2244
  %v2313 = vadd.f32 %v2090, %v2295
  %v2314 = vadd.f32 %v2091, %v2297
  %2315 = vrot.lane.b32.xlu0 %v842, 112
  %v2316 = vpop.permute.xlu0 %2315
  %2317 = vrot.lane.b32.xlu0 %v846, 112
  %v2318 = vpop.permute.xlu0 %2317
  %2319 = vrot.lane.b32.xlu0 %v850, 112
  %v2320 = vpop.permute.xlu0 %2319
  %2321 = vrot.lane.b32.xlu0 %v854, 112
  %v2322 = vpop.permute.xlu0 %2321
  %2323 = vrot.lane.b32.xlu0 %v843, 112
  %v2324 = vpop.permute.xlu0 %2323
  %2325 = vrot.lane.b32.xlu0 %v847, 112
  %v2326 = vpop.permute.xlu0 %2325
  %2327 = vrot.lane.b32.xlu0 %v851, 112
  %v2328 = vpop.permute.xlu0 %2327
  %2329 = vrot.lane.b32.xlu0 %v855, 112
  %v2330 = vpop.permute.xlu0 %2329
  %2331 = vrot.lane.b32.xlu0 %v844, 112
  %v2332 = vpop.permute.xlu0 %2331
  %2333 = vrot.lane.b32.xlu0 %v848, 112
  %v2334 = vpop.permute.xlu0 %2333
  %2335 = vrot.lane.b32.xlu0 %v852, 112
  %v2336 = vpop.permute.xlu0 %2335
  %2337 = vrot.lane.b32.xlu0 %v856, 112
  %v2338 = vpop.permute.xlu0 %2337
  %2339 = vrot.lane.b32.xlu0 %v845, 112
  %v2340 = vpop.permute.xlu0 %2339
  %2341 = vrot.lane.b32.xlu0 %v849, 112
  %v2342 = vpop.permute.xlu0 %2341
  %2343 = vrot.lane.b32.xlu0 %v853, 112
  %v2344 = vpop.permute.xlu0 %2343
  %2345 = vrot.lane.b32.xlu0 %v857, 112
  %v2346 = vpop.permute.xlu0 %2345
  %v2347 = vsel %vm648, %v2332, %v2340
  %v2348 = vsel %vm648, %v2334, %v2342
  %v2349 = vsel %vm648, %v2336, %v2344
  %v2350 = vsel %vm648, %v2338, %v2346
  %v2351 = vsel %vm648, %v2324, %v2332
  %v2352 = vsel %vm648, %v2326, %v2334
  %v2353 = vsel %vm648, %v2328, %v2336
  %v2354 = vsel %vm648, %v2330, %v2338
  %v2355 = vsel %vm648, %v2316, %v2324
  %v2356 = vsel %vm648, %v2318, %v2326
  %v2357 = vsel %vm648, %v2320, %v2328
  %v2358 = vsel %vm648, %v2322, %v2330
  %v2359 = vsel %vm648, %v2340, %v2316
  %v2360 = vsel %vm648, %v2342, %v2318
  %v2361 = vsel %vm648, %v2344, %v2320
  %v2362 = vsel %vm648, %v2346, %v2322
  %v2363 = vsel %vm56, 1, 0
  %v2364 = vsel %vm57, 1, 0
  %v2365 = vsel %vm58, 1, 0
  %v2366 = vsel %vm59, 1, 0
  %vm2367 = vcmp.eq.s32.totalorder %v2363, 1
  %vm2368 = vcmp.eq.s32.totalorder %v2364, 1
  %vm2369 = vcmp.eq.s32.totalorder %v2365, 1
  %vm2370 = vcmp.eq.s32.totalorder %v2366, 1
  %v2371 = vsel %vm2367, %v2355, 0.0
  %v2372 = vsel %vm2368, %v2351, 0.0
  %v2373 = vsel %vm2369, %v2347, 0.0
  %v2374 = vsel %vm2370, %v2359, 0.0
  %v2375 = vsel %vm2367, %v2356, 0.0
  %v2376 = vsel %vm2368, %v2352, 0.0
  %v2377 = vsel %vm2369, %v2348, 0.0
  %v2378 = vsel %vm2370, %v2360, 0.0
  %v2379 = vsel %vm2367, %v2357, 0.0
  %v2380 = vsel %vm2368, %v2353, 0.0
  %v2381 = vsel %vm2369, %v2349, 0.0
  %v2382 = vsel %vm2370, %v2361, 0.0
  %v2383 = vsel %vm2367, %v2358, 0.0
  %v2384 = vsel %vm2368, %v2354, 0.0
  %v2385 = vsel %vm2369, %v2350, 0.0
  %v2386 = vsel %vm2370, %v2362, 0.0
  %s2387 = scalar_lea.vmem %s3, 112
  %v2388 = vld [vmem:[%s2387] sm:$0xf]
  %v2389 = vld [vmem:[%s2387 + $0x4] sm:$0xf]
  %v2390 = vld [vmem:[%s2387 + $0x8] sm:$0xf]
  %v2391 = vld [vmem:[%s2387 + $0xc] sm:$0xf]
  %v2392 = vpack.c.bf16 %v2375, %v2371
  %v2393 = vpack.c.bf16 %v2376, %v2372
  %v2394 = vpack.c.bf16 %v2377, %v2373
  %v2395 = vpack.c.bf16 %v2378, %v2374
  %v2396 = vpack.c.bf16 %v2383, %v2379
  %v2397 = vpack.c.bf16 %v2384, %v2380
  %v2398 = vpack.c.bf16 %v2385, %v2381
  %v2399 = vpack.c.bf16 %v2386, %v2382
  %v2404 = vunpack.c.l.b16 %v2388
  %v2405 = vunpack.c.l.b16 %v2389
  %v2406 = vunpack.c.l.b16 %v2390
  %v2407 = vunpack.c.l.b16 %v2391
  %v2408 = vpack.c.b16 %v2405, %v2404
  %v2409 = vpack.c.b16 %v2407, %v2406
  %v2411 = vsel %vm1037, %v2408, 0
  %v2414 = vsel %vm1037, %v2409, 0
  %2416 = vmatprep.subr.bf16.mxu0 0
  %2417 = vmatpush1.bf16.msra.mxu0 0
  %2418 = vmatprep.subr.bf16.mxu0 0
  %2419 = vmatpush1.bf16.msra.mxu0 0
  %2420 = vmatprep.subr.bf16.mxu0 0
  %2421 = vmatpush1.bf16.msra.mxu0 0
  %2422 = vmatprep.subr.bf16.mxu0 0
  %2423 = vmatpush1.bf16.msra.mxu0 0
  %2424 = vmatprep.subr.bf16.mxu0 0
  %2425 = vmatpush1.bf16.msra.mxu0 0
  %2426 = vmatprep.subr.bf16.mxu0 0
  %2427 = vmatpush1.bf16.msra.mxu0 0
  %2428 = vmatprep.subr.bf16.mxu0 %v2397
  %2429 = vmatpush1.bf16.msra.mxu0 %v2396
  %2430 = vmatprep.subr.bf16.mxu0 %v2393
  %2431 = vmatpush1.bf16.msra.mxu0 %v2392
  %2432 = vmatprep.subr.bf16.mxu0 0
  %2433 = vmatpush2.bf16.msra.mxu0 0
  %2434 = vmatprep.subr.bf16.mxu0 0
  %2435 = vmatpush2.bf16.msra.mxu0 0
  %2436 = vmatprep.subr.bf16.mxu0 0
  %2437 = vmatpush2.bf16.msra.mxu0 0
  %2438 = vmatprep.subr.bf16.mxu0 0
  %2439 = vmatpush2.bf16.msra.mxu0 0
  %2440 = vmatprep.subr.bf16.mxu0 0
  %2441 = vmatpush2.bf16.msra.mxu0 0
  %2442 = vmatprep.subr.bf16.mxu0 0
  %2443 = vmatpush2.bf16.msra.mxu0 0
  %2444 = vmatprep.subr.bf16.mxu0 0
  %2445 = vmatpush2.bf16.msra.mxu0 0
  %2446 = vmatprep.subr.bf16.mxu0 0
  %2447 = vmatpush2.bf16.msra.mxu0 0
  %2448 = vmatprep.mubr.bf16.mxu0 0
  %2449 = vmatmul.mubr.bf16.gmra.mxu0 %v2411
  %v2450 = vpop.f32.mrf.mxu0
  %v2451 = vadd.f32 0.0, %v2450
  %v2452 = vpop.f32.mrf.mxu0
  %v2453 = vadd.f32 0.0, %v2452
  %v2454 = vpop.f32.mrf.mxu0
  %v2455 = vadd.f32 0.0, %v2454
  %v2456 = vpop.f32.mrf.mxu0
  %v2457 = vadd.f32 0.0, %v2456
  %2458 = vmatprep.mubr.bf16.mxu0 0
  %2459 = vmatmul.mubr.bf16.gmra.mxu0 %v2414
  %v2460 = vpop.f32.mrf.mxu0
  %v2461 = vadd.f32 0.0, %v2460
  %v2462 = vpop.f32.mrf.mxu0
  %v2463 = vadd.f32 0.0, %v2462
  %v2464 = vpop.f32.mrf.mxu0
  %v2465 = vadd.f32 0.0, %v2464
  %v2466 = vpop.f32.mrf.mxu0
  %v2467 = vadd.f32 0.0, %v2466
  %2468 = vdwg.mxu0
  %2469 = vmatprep.subr.bf16.mxu0 0
  %2470 = vmatpush1.bf16.msra.mxu0 0
  %2471 = vmatprep.subr.bf16.mxu0 0
  %2472 = vmatpush1.bf16.msra.mxu0 0
  %2473 = vmatprep.subr.bf16.mxu0 0
  %2474 = vmatpush1.bf16.msra.mxu0 0
  %2475 = vmatprep.subr.bf16.mxu0 0
  %2476 = vmatpush1.bf16.msra.mxu0 0
  %2477 = vmatprep.subr.bf16.mxu0 0
  %2478 = vmatpush1.bf16.msra.mxu0 0
  %2479 = vmatprep.subr.bf16.mxu0 0
  %2480 = vmatpush1.bf16.msra.mxu0 0
  %2481 = vmatprep.subr.bf16.mxu0 %v2399
  %2482 = vmatpush1.bf16.msra.mxu0 %v2398
  %2483 = vmatprep.subr.bf16.mxu0 %v2395
  %2484 = vmatpush1.bf16.msra.mxu0 %v2394
  %2485 = vmatprep.subr.bf16.mxu0 0
  %2486 = vmatpush2.bf16.msra.mxu0 0
  %2487 = vmatprep.subr.bf16.mxu0 0
  %2488 = vmatpush2.bf16.msra.mxu0 0
  %2489 = vmatprep.subr.bf16.mxu0 0
  %2490 = vmatpush2.bf16.msra.mxu0 0
  %2491 = vmatprep.subr.bf16.mxu0 0
  %2492 = vmatpush2.bf16.msra.mxu0 0
  %2493 = vmatprep.subr.bf16.mxu0 0
  %2494 = vmatpush2.bf16.msra.mxu0 0
  %2495 = vmatprep.subr.bf16.mxu0 0
  %2496 = vmatpush2.bf16.msra.mxu0 0
  %2497 = vmatprep.subr.bf16.mxu0 0
  %2498 = vmatpush2.bf16.msra.mxu0 0
  %2499 = vmatprep.subr.bf16.mxu0 0
  %2500 = vmatpush2.bf16.msra.mxu0 0
  %2501 = vmatprep.mubr.bf16.mxu0 0
  %2502 = vmatmul.mubr.bf16.gmra.mxu0 %v2411
  %v2503 = vpop.f32.mrf.mxu0
  %v2504 = vadd.f32 0.0, %v2503
  %v2505 = vpop.f32.mrf.mxu0
  %v2506 = vadd.f32 0.0, %v2505
  %v2507 = vpop.f32.mrf.mxu0
  %v2508 = vadd.f32 0.0, %v2507
  %v2509 = vpop.f32.mrf.mxu0
  %v2510 = vadd.f32 0.0, %v2509
  %2511 = vmatprep.mubr.bf16.mxu0 0
  %2512 = vmatmul.mubr.bf16.gmra.mxu0 %v2414
  %v2513 = vpop.f32.mrf.mxu0
  %v2514 = vadd.f32 0.0, %v2513
  %v2515 = vpop.f32.mrf.mxu0
  %v2516 = vadd.f32 0.0, %v2515
  %v2517 = vpop.f32.mrf.mxu0
  %v2518 = vadd.f32 0.0, %v2517
  %v2519 = vpop.f32.mrf.mxu0
  %v2520 = vadd.f32 0.0, %v2519
  %2521 = vdwg.mxu0
  %v2522 = vadd.f32 %v2299, %v2451
  %v2523 = vadd.f32 %v2300, %v2453
  %v2524 = vadd.f32 %v2301, %v2504
  %v2525 = vadd.f32 %v2302, %v2506
  %v2526 = vadd.f32 %v2303, %v2455
  %v2527 = vadd.f32 %v2304, %v2457
  %v2528 = vadd.f32 %v2305, %v2508
  %v2529 = vadd.f32 %v2306, %v2510
  %v2530 = vadd.f32 %v2307, %v2461
  %v2531 = vadd.f32 %v2308, %v2463
  %v2532 = vadd.f32 %v2309, %v2514
  %v2533 = vadd.f32 %v2310, %v2516
  %v2534 = vadd.f32 %v2311, %v2465
  %v2535 = vadd.f32 %v2312, %v2467
  %v2536 = vadd.f32 %v2313, %v2518
  %v2537 = vadd.f32 %v2314, %v2520
  %2538 = vrot.lane.b32.xlu0 %v842, 111
  %v2539 = vpop.permute.xlu0 %2538
  %2540 = vrot.lane.b32.xlu0 %v846, 111
  %v2541 = vpop.permute.xlu0 %2540
  %2542 = vrot.lane.b32.xlu0 %v850, 111
  %v2543 = vpop.permute.xlu0 %2542
  %2544 = vrot.lane.b32.xlu0 %v854, 111
  %v2545 = vpop.permute.xlu0 %2544
  %2546 = vrot.lane.b32.xlu0 %v843, 111
  %v2547 = vpop.permute.xlu0 %2546
  %2548 = vrot.lane.b32.xlu0 %v847, 111
  %v2549 = vpop.permute.xlu0 %2548
  %2550 = vrot.lane.b32.xlu0 %v851, 111
  %v2551 = vpop.permute.xlu0 %2550
  %2552 = vrot.lane.b32.xlu0 %v855, 111
  %v2553 = vpop.permute.xlu0 %2552
  %2554 = vrot.lane.b32.xlu0 %v844, 111
  %v2555 = vpop.permute.xlu0 %2554
  %2556 = vrot.lane.b32.xlu0 %v848, 111
  %v2557 = vpop.permute.xlu0 %2556
  %2558 = vrot.lane.b32.xlu0 %v852, 111
  %v2559 = vpop.permute.xlu0 %2558
  %2560 = vrot.lane.b32.xlu0 %v856, 111
  %v2561 = vpop.permute.xlu0 %2560
  %2562 = vrot.lane.b32.xlu0 %v845, 111
  %v2563 = vpop.permute.xlu0 %2562
  %2564 = vrot.lane.b32.xlu0 %v849, 111
  %v2565 = vpop.permute.xlu0 %2564
  %2566 = vrot.lane.b32.xlu0 %v853, 111
  %v2567 = vpop.permute.xlu0 %2566
  %2568 = vrot.lane.b32.xlu0 %v857, 111
  %v2569 = vpop.permute.xlu0 %2568
  %v2570 = vsel %vm729, %v2555, %v2563
  %v2571 = vsel %vm729, %v2557, %v2565
  %v2572 = vsel %vm729, %v2559, %v2567
  %v2573 = vsel %vm729, %v2561, %v2569
  %v2574 = vsel %vm729, %v2547, %v2555
  %v2575 = vsel %vm729, %v2549, %v2557
  %v2576 = vsel %vm729, %v2551, %v2559
  %v2577 = vsel %vm729, %v2553, %v2561
  %v2578 = vsel %vm729, %v2539, %v2547
  %v2579 = vsel %vm729, %v2541, %v2549
  %v2580 = vsel %vm729, %v2543, %v2551
  %v2581 = vsel %vm729, %v2545, %v2553
  %v2582 = vsel %vm729, %v2563, %v2539
  %v2583 = vsel %vm729, %v2565, %v2541
  %v2584 = vsel %vm729, %v2567, %v2543
  %v2585 = vsel %vm729, %v2569, %v2545
  %v2586 = vsel %vm72, 1, 0
  %v2587 = vsel %vm73, 1, 0
  %v2588 = vsel %vm74, 1, 0
  %v2589 = vsel %vm75, 1, 0
  %vm2590 = vcmp.eq.s32.totalorder %v2586, 1
  %vm2591 = vcmp.eq.s32.totalorder %v2587, 1
  %vm2592 = vcmp.eq.s32.totalorder %v2588, 1
  %vm2593 = vcmp.eq.s32.totalorder %v2589, 1
  %v2594 = vsel %vm2590, %v2578, 0.0
  %v2595 = vsel %vm2591, %v2574, 0.0
  %v2596 = vsel %vm2592, %v2570, 0.0
  %v2597 = vsel %vm2593, %v2582, 0.0
  %v2598 = vsel %vm2590, %v2579, 0.0
  %v2599 = vsel %vm2591, %v2575, 0.0
  %v2600 = vsel %vm2592, %v2571, 0.0
  %v2601 = vsel %vm2593, %v2583, 0.0
  %v2602 = vsel %vm2590, %v2580, 0.0
  %v2603 = vsel %vm2591, %v2576, 0.0
  %v2604 = vsel %vm2592, %v2572, 0.0
  %v2605 = vsel %vm2593, %v2584, 0.0
  %v2606 = vsel %vm2590, %v2581, 0.0
  %v2607 = vsel %vm2591, %v2577, 0.0
  %v2608 = vsel %vm2592, %v2573, 0.0
  %v2609 = vsel %vm2593, %v2585, 0.0
  %s2610 = scalar_lea.vmem %s3, 128
  %v2611 = vld [vmem:[%s2610] sm:$0xf]
  %v2612 = vld [vmem:[%s2610 + $0x4] sm:$0xf]
  %v2613 = vld [vmem:[%s2610 + $0x8] sm:$0xf]
  %v2614 = vld [vmem:[%s2610 + $0xc] sm:$0xf]
  %v2615 = vpack.c.bf16 %v2598, %v2594
  %v2616 = vpack.c.bf16 %v2599, %v2595
  %v2617 = vpack.c.bf16 %v2600, %v2596
  %v2618 = vpack.c.bf16 %v2601, %v2597
  %v2619 = vpack.c.bf16 %v2606, %v2602
  %v2620 = vpack.c.bf16 %v2607, %v2603
  %v2621 = vpack.c.bf16 %v2608, %v2604
  %v2622 = vpack.c.bf16 %v2609, %v2605
  %v2627 = vunpack.c.l.b16 %v2611
  %v2628 = vunpack.c.l.b16 %v2612
  %v2629 = vunpack.c.l.b16 %v2613
  %v2630 = vunpack.c.l.b16 %v2614
  %v2631 = vpack.c.b16 %v2628, %v2627
  %v2632 = vpack.c.b16 %v2630, %v2629
  %v2634 = vsel %vm1037, %v2631, 0
  %v2637 = vsel %vm1037, %v2632, 0
  %2639 = vmatprep.subr.bf16.mxu0 0
  %2640 = vmatpush1.bf16.msra.mxu0 0
  %2641 = vmatprep.subr.bf16.mxu0 0
  %2642 = vmatpush1.bf16.msra.mxu0 0
  %2643 = vmatprep.subr.bf16.mxu0 0
  %2644 = vmatpush1.bf16.msra.mxu0 0
  %2645 = vmatprep.subr.bf16.mxu0 0
  %2646 = vmatpush1.bf16.msra.mxu0 0
  %2647 = vmatprep.subr.bf16.mxu0 0
  %2648 = vmatpush1.bf16.msra.mxu0 0
  %2649 = vmatprep.subr.bf16.mxu0 0
  %2650 = vmatpush1.bf16.msra.mxu0 0
  %2651 = vmatprep.subr.bf16.mxu0 %v2620
  %2652 = vmatpush1.bf16.msra.mxu0 %v2619
  %2653 = vmatprep.subr.bf16.mxu0 %v2616
  %2654 = vmatpush1.bf16.msra.mxu0 %v2615
  %2655 = vmatprep.subr.bf16.mxu0 0
  %2656 = vmatpush2.bf16.msra.mxu0 0
  %2657 = vmatprep.subr.bf16.mxu0 0
  %2658 = vmatpush2.bf16.msra.mxu0 0
  %2659 = vmatprep.subr.bf16.mxu0 0
  %2660 = vmatpush2.bf16.msra.mxu0 0
  %2661 = vmatprep.subr.bf16.mxu0 0
  %2662 = vmatpush2.bf16.msra.mxu0 0
  %2663 = vmatprep.subr.bf16.mxu0 0
  %2664 = vmatpush2.bf16.msra.mxu0 0
  %2665 = vmatprep.subr.bf16.mxu0 0
  %2666 = vmatpush2.bf16.msra.mxu0 0
  %2667 = vmatprep.subr.bf16.mxu0 0
  %2668 = vmatpush2.bf16.msra.mxu0 0
  %2669 = vmatprep.subr.bf16.mxu0 0
  %2670 = vmatpush2.bf16.msra.mxu0 0
  %2671 = vmatprep.mubr.bf16.mxu0 0
  %2672 = vmatmul.mubr.bf16.gmra.mxu0 %v2634
  %v2673 = vpop.f32.mrf.mxu0
  %v2674 = vadd.f32 0.0, %v2673
  %v2675 = vpop.f32.mrf.mxu0
  %v2676 = vadd.f32 0.0, %v2675
  %v2677 = vpop.f32.mrf.mxu0
  %v2678 = vadd.f32 0.0, %v2677
  %v2679 = vpop.f32.mrf.mxu0
  %v2680 = vadd.f32 0.0, %v2679
  %2681 = vmatprep.mubr.bf16.mxu0 0
  %2682 = vmatmul.mubr.bf16.gmra.mxu0 %v2637
  %v2683 = vpop.f32.mrf.mxu0
  %v2684 = vadd.f32 0.0, %v2683
  %v2685 = vpop.f32.mrf.mxu0
  %v2686 = vadd.f32 0.0, %v2685
  %v2687 = vpop.f32.mrf.mxu0
  %v2688 = vadd.f32 0.0, %v2687
  %v2689 = vpop.f32.mrf.mxu0
  %v2690 = vadd.f32 0.0, %v2689
  %2691 = vdwg.mxu0
  %2692 = vmatprep.subr.bf16.mxu0 0
  %2693 = vmatpush1.bf16.msra.mxu0 0
  %2694 = vmatprep.subr.bf16.mxu0 0
  %2695 = vmatpush1.bf16.msra.mxu0 0
  %2696 = vmatprep.subr.bf16.mxu0 0
  %2697 = vmatpush1.bf16.msra.mxu0 0
  %2698 = vmatprep.subr.bf16.mxu0 0
  %2699 = vmatpush1.bf16.msra.mxu0 0
  %2700 = vmatprep.subr.bf16.mxu0 0
  %2701 = vmatpush1.bf16.msra.mxu0 0
  %2702 = vmatprep.subr.bf16.mxu0 0
  %2703 = vmatpush1.bf16.msra.mxu0 0
  %2704 = vmatprep.subr.bf16.mxu0 %v2622
  %2705 = vmatpush1.bf16.msra.mxu0 %v2621
  %2706 = vmatprep.subr.bf16.mxu0 %v2618
  %2707 = vmatpush1.bf16.msra.mxu0 %v2617
  %2708 = vmatprep.subr.bf16.mxu0 0
  %2709 = vmatpush2.bf16.msra.mxu0 0
  %2710 = vmatprep.subr.bf16.mxu0 0
  %2711 = vmatpush2.bf16.msra.mxu0 0
  %2712 = vmatprep.subr.bf16.mxu0 0
  %2713 = vmatpush2.bf16.msra.mxu0 0
  %2714 = vmatprep.subr.bf16.mxu0 0
  %2715 = vmatpush2.bf16.msra.mxu0 0
  %2716 = vmatprep.subr.bf16.mxu0 0
  %2717 = vmatpush2.bf16.msra.mxu0 0
  %2718 = vmatprep.subr.bf16.mxu0 0
  %2719 = vmatpush2.bf16.msra.mxu0 0
  %2720 = vmatprep.subr.bf16.mxu0 0
  %2721 = vmatpush2.bf16.msra.mxu0 0
  %2722 = vmatprep.subr.bf16.mxu0 0
  %2723 = vmatpush2.bf16.msra.mxu0 0
  %2724 = vmatprep.mubr.bf16.mxu0 0
  %2725 = vmatmul.mubr.bf16.gmra.mxu0 %v2634
  %v2726 = vpop.f32.mrf.mxu0
  %v2727 = vadd.f32 0.0, %v2726
  %v2728 = vpop.f32.mrf.mxu0
  %v2729 = vadd.f32 0.0, %v2728
  %v2730 = vpop.f32.mrf.mxu0
  %v2731 = vadd.f32 0.0, %v2730
  %v2732 = vpop.f32.mrf.mxu0
  %v2733 = vadd.f32 0.0, %v2732
  %2734 = vmatprep.mubr.bf16.mxu0 0
  %2735 = vmatmul.mubr.bf16.gmra.mxu0 %v2637
  %v2736 = vpop.f32.mrf.mxu0
  %v2737 = vadd.f32 0.0, %v2736
  %v2738 = vpop.f32.mrf.mxu0
  %v2739 = vadd.f32 0.0, %v2738
  %v2740 = vpop.f32.mrf.mxu0
  %v2741 = vadd.f32 0.0, %v2740
  %v2742 = vpop.f32.mrf.mxu0
  %v2743 = vadd.f32 0.0, %v2742
  %2744 = vdwg.mxu0
  %v2745 = vadd.f32 %v2522, %v2674
  %v2746 = vadd.f32 %v2523, %v2676
  %v2747 = vadd.f32 %v2524, %v2727
  %v2748 = vadd.f32 %v2525, %v2729
  %v2749 = vadd.f32 %v2526, %v2678
  %v2750 = vadd.f32 %v2527, %v2680
  %v2751 = vadd.f32 %v2528, %v2731
  %v2752 = vadd.f32 %v2529, %v2733
  %v2753 = vadd.f32 %v2530, %v2684
  %v2754 = vadd.f32 %v2531, %v2686
  %v2755 = vadd.f32 %v2532, %v2737
  %v2756 = vadd.f32 %v2533, %v2739
  %v2757 = vadd.f32 %v2534, %v2688
  %v2758 = vadd.f32 %v2535, %v2690
  %v2759 = vadd.f32 %v2536, %v2741
  %v2760 = vadd.f32 %v2537, %v2743
  %v2761 = vld [vmem:[%s4] sm:$0xff]
  %v2762 = vld [vmem:[%s4 + $0x8] sm:$0xff]
  %v2763 = vld [vmem:[%s4 + $0x10] sm:$0xff]
  %v2764 = vld [vmem:[%s4 + $0x18] sm:$0xff]
  %2766 = vset.pattern.permute.xlu0 0
  %2767 = vperm.xlu0 %2766, %v2761
  %v2768 = vpop.permute.xlu0 %2767
  %2771 = vset.pattern.permute.xlu0 0
  %2772 = vperm.xlu0 %2771, %v2762
  %v2773 = vpop.permute.xlu0 %2772
  %2776 = vset.pattern.permute.xlu0 0
  %2777 = vperm.xlu0 %2776, %v2763
  %v2778 = vpop.permute.xlu0 %2777
  %2781 = vset.pattern.permute.xlu0 0
  %2782 = vperm.xlu0 %2781, %v2764
  %v2783 = vpop.permute.xlu0 %2782
  %v2785 = vadd.f32 %v2745, %v2768
  %v2786 = vadd.f32 %v2746, %v2768
  %v2787 = vadd.f32 %v2747, %v2768
  %v2788 = vadd.f32 %v2748, %v2768
  %v2789 = vadd.f32 %v2749, %v2773
  %v2790 = vadd.f32 %v2750, %v2773
  %v2791 = vadd.f32 %v2751, %v2773
  %v2792 = vadd.f32 %v2752, %v2773
  %v2793 = vadd.f32 %v2753, %v2778
  %v2794 = vadd.f32 %v2754, %v2778
  %v2795 = vadd.f32 %v2755, %v2778
  %v2796 = vadd.f32 %v2756, %v2778
  %v2797 = vadd.f32 %v2757, %v2783
  %v2798 = vadd.f32 %v2758, %v2783
  %v2799 = vadd.f32 %v2759, %v2783
  %v2800 = vadd.f32 %v2760, %v2783
  %v2801 = vmax.f32 %v2785, 0.0
  %v2802 = vmax.f32 %v2786, 0.0
  %v2803 = vmax.f32 %v2787, 0.0
  %v2804 = vmax.f32 %v2788, 0.0
  %v2805 = vmax.f32 %v2789, 0.0
  %v2806 = vmax.f32 %v2790, 0.0
  %v2807 = vmax.f32 %v2791, 0.0
  %v2808 = vmax.f32 %v2792, 0.0
  %v2809 = vmax.f32 %v2793, 0.0
  %v2810 = vmax.f32 %v2794, 0.0
  %v2811 = vmax.f32 %v2795, 0.0
  %v2812 = vmax.f32 %v2796, 0.0
  %v2813 = vmax.f32 %v2797, 0.0
  %v2814 = vmax.f32 %v2798, 0.0
  %v2815 = vmax.f32 %v2799, 0.0
  %v2816 = vmax.f32 %v2800, 0.0
  %v2817 = vld [vmem:[%s5] sm:$0x3]
  %v2818 = vpack.c.bf16 %v2805, %v2801
  %v2819 = vpack.c.bf16 %v2806, %v2802
  %v2820 = vpack.c.bf16 %v2807, %v2803
  %v2821 = vpack.c.bf16 %v2808, %v2804
  %v2822 = vpack.c.bf16 %v2813, %v2809
  %v2823 = vpack.c.bf16 %v2814, %v2810
  %v2824 = vpack.c.bf16 %v2815, %v2811
  %v2825 = vpack.c.bf16 %v2816, %v2812
  %v2826 = vld [vmem:[%s6] sm:$0xf]
  %2828 = vset.pattern.permute.xlu0 0
  %2829 = vperm.xlu0 %2828, %v2826
  %v2830 = vpop.permute.xlu0 %2829
  %v2833 = vsel %vm1037, %v2817, 0
  %2835 = vmatprep.subr.bf16.mxu0 0
  %2836 = vmatpush1.bf16.msra.mxu0 0
  %2837 = vmatprep.subr.bf16.mxu0 0
  %2838 = vmatpush1.bf16.msra.mxu0 0
  %2839 = vmatprep.subr.bf16.mxu0 0
  %2840 = vmatpush1.bf16.msra.mxu0 0
  %2841 = vmatprep.subr.bf16.mxu0 0
  %2842 = vmatpush1.bf16.msra.mxu0 0
  %2843 = vmatprep.subr.bf16.mxu0 0
  %2844 = vmatpush1.bf16.msra.mxu0 0
  %2845 = vmatprep.subr.bf16.mxu0 0
  %2846 = vmatpush1.bf16.msra.mxu0 0
  %2847 = vmatprep.subr.bf16.mxu0 %v2823
  %2848 = vmatpush1.bf16.msra.mxu0 %v2822
  %2849 = vmatprep.subr.bf16.mxu0 %v2819
  %2850 = vmatpush1.bf16.msra.mxu0 %v2818
  %2851 = vmatprep.subr.bf16.mxu0 0
  %2852 = vmatpush2.bf16.msra.mxu0 0
  %2853 = vmatprep.subr.bf16.mxu0 0
  %2854 = vmatpush2.bf16.msra.mxu0 0
  %2855 = vmatprep.subr.bf16.mxu0 0
  %2856 = vmatpush2.bf16.msra.mxu0 0
  %2857 = vmatprep.subr.bf16.mxu0 0
  %2858 = vmatpush2.bf16.msra.mxu0 0
  %2859 = vmatprep.subr.bf16.mxu0 0
  %2860 = vmatpush2.bf16.msra.mxu0 0
  %2861 = vmatprep.subr.bf16.mxu0 0
  %2862 = vmatpush2.bf16.msra.mxu0 0
  %2863 = vmatprep.subr.bf16.mxu0 0
  %2864 = vmatpush2.bf16.msra.mxu0 0
  %2865 = vmatprep.subr.bf16.mxu0 0
  %2866 = vmatpush2.bf16.msra.mxu0 0
  %2867 = vmatprep.mubr.bf16.mxu0 0
  %2868 = vmatmul.mubr.bf16.gmra.mxu0 %v2833
  %v2869 = vpop.f32.mrf.mxu0
  %v2870 = vadd.f32 %v2830, %v2869
  %v2871 = vpop.f32.mrf.mxu0
  %v2872 = vadd.f32 %v2830, %v2871
  %v2873 = vpop.f32.mrf.mxu0
  %v2874 = vpop.f32.mrf.mxu0
  %2875 = vdwg.mxu0
  %2876 = vmatprep.subr.bf16.mxu0 0
  %2877 = vmatpush1.bf16.msra.mxu0 0
  %2878 = vmatprep.subr.bf16.mxu0 0
  %2879 = vmatpush1.bf16.msra.mxu0 0
  %2880 = vmatprep.subr.bf16.mxu0 0
  %2881 = vmatpush1.bf16.msra.mxu0 0
  %2882 = vmatprep.subr.bf16.mxu0 0
  %2883 = vmatpush1.bf16.msra.mxu0 0
  %2884 = vmatprep.subr.bf16.mxu0 0
  %2885 = vmatpush1.bf16.msra.mxu0 0
  %2886 = vmatprep.subr.bf16.mxu0 0
  %2887 = vmatpush1.bf16.msra.mxu0 0
  %2888 = vmatprep.subr.bf16.mxu0 %v2825
  %2889 = vmatpush1.bf16.msra.mxu0 %v2824
  %2890 = vmatprep.subr.bf16.mxu0 %v2821
  %2891 = vmatpush1.bf16.msra.mxu0 %v2820
  %2892 = vmatprep.subr.bf16.mxu0 0
  %2893 = vmatpush2.bf16.msra.mxu0 0
  %2894 = vmatprep.subr.bf16.mxu0 0
  %2895 = vmatpush2.bf16.msra.mxu0 0
  %2896 = vmatprep.subr.bf16.mxu0 0
  %2897 = vmatpush2.bf16.msra.mxu0 0
  %2898 = vmatprep.subr.bf16.mxu0 0
  %2899 = vmatpush2.bf16.msra.mxu0 0
  %2900 = vmatprep.subr.bf16.mxu0 0
  %2901 = vmatpush2.bf16.msra.mxu0 0
  %2902 = vmatprep.subr.bf16.mxu0 0
  %2903 = vmatpush2.bf16.msra.mxu0 0
  %2904 = vmatprep.subr.bf16.mxu0 0
  %2905 = vmatpush2.bf16.msra.mxu0 0
  %2906 = vmatprep.subr.bf16.mxu0 0
  %2907 = vmatpush2.bf16.msra.mxu0 0
  %2908 = vmatprep.mubr.bf16.mxu0 0
  %2909 = vmatmul.mubr.bf16.gmra.mxu0 %v2833
  %v2910 = vpop.f32.mrf.mxu0
  %v2911 = vadd.f32 %v2830, %v2910
  %v2912 = vpop.f32.mrf.mxu0
  %v2913 = vadd.f32 %v2830, %v2912
  %v2914 = vpop.f32.mrf.mxu0
  %v2915 = vpop.f32.mrf.mxu0
  %2916 = vdwg.mxu0
  %vm2917 = vcmask 1043456
  %v2918 = vsel %vm2917, %v2870, -inf
  %v2919 = vrot.slane %v2918, 4
  %v2920 = vmax.f32 %v2918, %v2919
  %v2921 = vrot.slane %v2920, 2
  %v2922 = vmax.f32 %v2920, %v2921
  %v2923 = vrot.slane %v2922, 1
  %v2924 = vmax.f32 %v2922, %v2923
  %v2925 = vsel %vm2917, %v2872, -inf
  %v2926 = vrot.slane %v2925, 4
  %v2927 = vmax.f32 %v2925, %v2926
  %v2928 = vrot.slane %v2927, 2
  %v2929 = vmax.f32 %v2927, %v2928
  %v2930 = vrot.slane %v2929, 1
  %v2931 = vmax.f32 %v2929, %v2930
  %v2932 = vsel %vm2917, %v2911, -inf
  %v2933 = vrot.slane %v2932, 4
  %v2934 = vmax.f32 %v2932, %v2933
  %v2935 = vrot.slane %v2934, 2
  %v2936 = vmax.f32 %v2934, %v2935
  %v2937 = vrot.slane %v2936, 1
  %v2938 = vmax.f32 %v2936, %v2937
  %v2939 = vsel %vm2917, %v2913, -inf
  %v2940 = vrot.slane %v2939, 4
  %v2941 = vmax.f32 %v2939, %v2940
  %v2942 = vrot.slane %v2941, 2
  %v2943 = vmax.f32 %v2941, %v2942
  %v2944 = vrot.slane %v2943, 1
  %v2945 = vmax.f32 %v2943, %v2944
  %v2946 = vsub.f32 %v2870, %v2924
  %v2947 = vsub.f32 %v2872, %v2931
  %v2948 = vsub.f32 %v2911, %v2938
  %v2949 = vsub.f32 %v2913, %v2945
  %v2950 = vmul.f32 %v2946, 1.442695
  %v2951 = vpow.pop %v2950
  %v2952 = vmul.f32 %v2947, 1.442695
  %v2953 = vpow.pop %v2952
  %v2954 = vmul.f32 %v2948, 1.442695
  %v2955 = vpow.pop %v2954
  %v2956 = vmul.f32 %v2949, 1.442695
  %v2957 = vpow.pop %v2956
  %v2958 = vsel %vm2917, %v2951, 0.0
  %v2959 = vrot.slane %v2958, 4
  %v2960 = vadd.f32 %v2958, %v2959
  %v2961 = vrot.slane %v2960, 2
  %v2962 = vadd.f32 %v2960, %v2961
  %v2963 = vrot.slane %v2962, 1
  %v2964 = vadd.f32 %v2962, %v2963
  %v2965 = vsel %vm2917, %v2953, 0.0
  %v2966 = vrot.slane %v2965, 4
  %v2967 = vadd.f32 %v2965, %v2966
  %v2968 = vrot.slane %v2967, 2
  %v2969 = vadd.f32 %v2967, %v2968
  %v2970 = vrot.slane %v2969, 1
  %v2971 = vadd.f32 %v2969, %v2970
  %v2972 = vsel %vm2917, %v2955, 0.0
  %v2973 = vrot.slane %v2972, 4
  %v2974 = vadd.f32 %v2972, %v2973
  %v2975 = vrot.slane %v2974, 2
  %v2976 = vadd.f32 %v2974, %v2975
  %v2977 = vrot.slane %v2976, 1
  %v2978 = vadd.f32 %v2976, %v2977
  %v2979 = vsel %vm2917, %v2957, 0.0
  %v2980 = vrot.slane %v2979, 4
  %v2981 = vadd.f32 %v2979, %v2980
  %v2982 = vrot.slane %v2981, 2
  %v2983 = vadd.f32 %v2981, %v2982
  %v2984 = vrot.slane %v2983, 1
  %v2985 = vadd.f32 %v2983, %v2984
  %v2986 = vrcp.pop %v2964
  %v2987 = vrcp.pop %v2971
  %v2988 = vrcp.pop %v2978
  %v2989 = vrcp.pop %v2985
  %v2990 = vmul.f32 %v2951, %v2986
  %v2991 = vmul.f32 %v2953, %v2987
  %v2992 = vmul.f32 %v2955, %v2988
  %v2993 = vmul.f32 %v2957, %v2989
  %v2996 = vcombine.low %v2990, %v2991
  %2998 = vst [vmem:[%s7] sm:$0xff] %v2996
  %v3001 = vcombine.low %v2992, %v2993
  %s3003 = scalar_lea.vmem %s7, 8
  %3004 = vst [vmem:[%s3003] sm:$0xff] %v3001
  // Predicated region
  $region30: #{synthseg_forward.1} parent=0 // pred_check
    _
  $region31: #{synthseg_forward.1} parent=0 // pred_check_branch
    %3006 = sbr.rel (0) target = $region33
  $region32: #{synthseg_forward.1} parent=0 // pred_region
    _
  $region33: #{synthseg_forward.1} parent=0 // pred_fallthru
    _
  // Predicated region
  $region34: #{synthseg_forward.1} parent=0 // pred_check
    _
  $region35: #{synthseg_forward.1} parent=0 // pred_check_branch
    %3008 = sbr.rel (0) target = $region37
  $region36: #{synthseg_forward.1} parent=0 // pred_region
    _
  $region37: #{synthseg_forward.1} parent=0 // pred_fallthru
    _

</llo_original>
